<compile_context>
chip_gen: v7x
topology: tpu7x:2x2x1
jax: 0.10.0
libtpu: 0.0.40
codegen_flags: <defaults>
</compile_context>

<pallas_src>
import functools

import jax
import jax.numpy as jnp
from jax import lax
from jax.experimental import pallas as pl
from jax.experimental.pallas import tpu as pltpu


# ------------------------------------------------------------------ fused kernel
def _stnkd_kernel(x_ref, w1_ref, b1_ref, w2_ref, b2_ref, w3_ref, b3_ref,
                  fw1_ref, fb1_ref, fw2_ref, fb2_ref, fw3_ref, fb3_ref,
                  out_ref, g_ref, *, n_points, tile_n, ch_chunk, k):
    n = pl.program_id(1)
    n_tiles = pl.num_programs(1)
    f32, bf16 = jnp.float32, jnp.bfloat16

    # running channel-max accumulator (per batch element).  Zero init is safe
    # because ReLU is applied before every compare (values are >= 0).
    @pl.when(n == 0)
    def _():
        g_ref[...] = jnp.zeros_like(g_ref)

    # ---- point-wise MLP on this tile of points --------------------------------
    x = x_ref[0].astype(bf16)                                        # (tile_n, k)
    h1 = jnp.maximum(
        jnp.dot(x, w1_ref[...], preferred_element_type=f32) + b1_ref[...], 0.0)
    h2 = jnp.maximum(
        jnp.dot(h1.astype(bf16), w2_ref[...], preferred_element_type=f32)
        + b2_ref[...], 0.0)
    h2b = h2.astype(bf16)

    # validity mask for the ragged last tile (n_points is static -> only built
    # when actually needed).  Invalid rows hold stale/garbage VMEM data.
    ragged = (n_points % tile_n) != 0
    if ragged:
        row = lax.broadcasted_iota(jnp.int32, (tile_n, 1), 0) + n * tile_n
        valid = row < n_points                                       # (tile_n, 1)

    # conv3 in output-channel chunks; row-max first, then bias + ReLU on the
    # reduced row, folded straight into the matching lane slice of the scratch.
    n_out = w3_ref.shape[1]
    for c in range(0, n_out, ch_chunk):
        d3 = jnp.dot(h2b, w3_ref[:, c:c + ch_chunk],
                     preferred_element_type=f32)                     # (tile_n, cc)
        if ragged:
            d3 = jnp.where(valid, d3, -jnp.inf)
        rmax = jnp.max(d3, axis=0, keepdims=True)                    # (1, cc)
        tile_max = jnp.maximum(rmax + b3_ref[:, c:c + ch_chunk], 0.0)
        g_ref[:, c:c + ch_chunk] = jnp.maximum(g_ref[:, c:c + ch_chunk], tile_max)

    # ---- fused FC head epilogue on the last N tile -----------------------------
    @pl.when(n == n_tiles - 1)
    def _():
        g = g_ref[...].astype(bf16)                                  # (1, 1024)
        f1 = jnp.maximum(
            jnp.dot(g, fw1_ref[...], preferred_element_type=f32) + fb1_ref[...], 0.0)
        f2 = jnp.maximum(
            jnp.dot(f1.astype(bf16), fw2_ref[...], preferred_element_type=f32)
            + fb2_ref[...], 0.0)
        f3 = jnp.dot(f2.astype(bf16), fw3_ref[...],
                     preferred_element_type=f32) + fb3_ref[...]      # (1, k*k)
        # flattened identity: flat index i is on the diagonal iff i % (k+1) == 0.
        col = lax.broadcasted_iota(jnp.int32, f3.shape, 1)
        iden = jnp.where(col % (k + 1) == 0, 1.0, 0.0)
        out_ref[0] = f3 + iden


# ----------------------------------------------------------------------- wrapper
def stnkd_forward(x_bkn, params, k, *, tile_n=512, ch_chunk=512):
    """x_bkn: (B, k, N) float32 (PyTorch layout).  Returns (B, k, k) float32."""
    B, k_in, N = x_bkn.shape
    assert k_in == k
    kk = k * k
    f32, bf16 = jnp.float32, jnp.bfloat16

    (w1, b1, w2, b2, w3, b3, fw1, fb1, fw2, fb2, fw3, fb3) = params

    # single wrapper pass over x: channels onto lanes; stays f32 (cast in-kernel).
    x_bnk = jnp.transpose(x_bkn, (0, 2, 1))

    # tile sizing: multiple-of-8 tiles with in-kernel tail masking; if N fits in
    # one tile, the block equals the full dim (always legal).
    if N <= tile_n:
        tile_n = N
    else:
        tile_n = max(8, (tile_n // 8) * 8)
    n_tiles = -(-N // tile_n)

    # bf16 MXU weights; f32 accumulation / bias / ReLU / max.
    w1b, w2b, w3b = w1.astype(bf16), w2.astype(bf16), w3.astype(bf16)
    fw1b, fw2b, fw3b = fw1.astype(bf16), fw2.astype(bf16), fw3.astype(bf16)

    flops = (2 * B * N * (k * 64 + 64 * 128 + 128 * 1024)
             + 2 * B * (1024 * 512 + 512 * 256 + 256 * kk))
    bytes_acc = (x_bnk.size * 4
                 + (w1b.size + w2b.size + w3b.size
                    + fw1b.size + fw2b.size + fw3b.size) * 2
                 + (b1.size + b2.size + b3.size
                    + fb1.size + fb2.size + fb3.size) * 4
                 + B * kk * 4)

    def w2d(shp):
        return pl.BlockSpec(shp, lambda b, n: (0, 0))

    out = pl.pallas_call(
        functools.partial(_stnkd_kernel, n_points=N, tile_n=tile_n,
                          ch_chunk=ch_chunk, k=k),
        out_shape=jax.ShapeDtypeStruct((B, 1, kk), f32),
        grid_spec=pltpu.PrefetchScalarGridSpec(
            num_scalar_prefetch=0,
            grid=(B, n_tiles),
            in_specs=[
                pl.BlockSpec((1, tile_n, k), lambda b, n: (b, n, 0)),    # x (f32)
                w2d(w1b.shape), w2d(b1.shape),
                w2d(w2b.shape), w2d(b2.shape),
                w2d(w3b.shape), w2d(b3.shape),
                w2d(fw1b.shape), w2d(fb1.shape),
                w2d(fw2b.shape), w2d(fb2.shape),
                w2d(fw3b.shape), w2d(fb3.shape),
            ],
            out_specs=pl.BlockSpec((1, 1, kk), lambda b, n: (b, 0, 0)),
            scratch_shapes=[pltpu.VMEM((1, 1024), f32)],
        ),
        compiler_params=pltpu.CompilerParams(
            dimension_semantics=("parallel", "arbitrary"),
            vmem_limit_bytes=32 * 1024 * 1024),
        cost_estimate=pl.CostEstimate(flops=int(flops), transcendentals=0,
                                      bytes_accessed=int(bytes_acc)),
    )(x_bnk, w1b, b1, w2b, b2, w3b, b3, fw1b, fb1, fw2b, fb2, fw3b, fb3)

    return out.reshape(B, k, k)


# ------------------------------------------------------------------------ params
def make_params(key, k):
    """Deterministic synthetic weights.  BatchNorm (inference mode, running stats)
    is folded into the preceding layer: W_eff = W * s, b_eff = b * s + t, with
    s = gamma / sqrt(running_var + eps), t = beta - running_mean * s."""
    eps = 1e-5
    dims = [(k, 64), (64, 128), (128, 1024), (1024, 512), (512, 256), (256, k * k)]
    keys = jax.random.split(key, 6 * 7)

    def bn_fold(W, b, kset):
        c = W.shape[1]
        gamma = 1.0 + 0.1 * jax.random.normal(kset[0], (c,), jnp.float32)
        beta = 0.1 * jax.random.normal(kset[1], (c,), jnp.float32)
        rmean = 0.1 * jax.random.normal(kset[2], (c,), jnp.float32)
        rvar = 1.0 + 0.1 * jax.random.uniform(kset[3], (c,), jnp.float32)
        s = gamma / jnp.sqrt(rvar + eps)
        t = beta - rmean * s
        return W * s[None, :], (b * s + t)[None, :]

    params = []
    ki = 0
    for li, (cin, cout) in enumerate(dims):
        bound = 1.0 / jnp.sqrt(cin)
        W = jax.random.uniform(keys[ki], (cin, cout), jnp.float32, -bound, bound)
        b = jax.random.uniform(keys[ki + 1], (cout,), jnp.float32, -bound, bound)
        if li < 5:   # conv1/conv2/conv3/fc1/fc2 have a BatchNorm after them
            W, b = bn_fold(W, b, keys[ki + 2: ki + 6])
        else:        # fc3: plain bias
            b = b[None, :]
        params += [W, b]
        ki += 7
    return tuple(params)


# --------------------------------------------------------------------- reference
def stnkd_reference(x_bnk, params, k):
    """Pure-JAX reference mirroring the kernel's mixed precision (bf16 MXU inputs,
    f32 accumulation / bias / ReLU / max)."""
    (w1, b1, w2, b2, w3, b3, fw1, fb1, fw2, fb2, fw3, fb3) = params
    bf16 = jnp.bfloat16
    d = lambda a, w: jnp.dot(a.astype(bf16), w.astype(bf16),
                             preferred_element_type=jnp.float32)
    h = jnp.maximum(d(x_bnk, w1) + b1, 0.0)
    h = jnp.maximum(d(h, w2) + b2, 0.0)
    h = jnp.maximum(d(h, w3) + b3, 0.0)
    g = jnp.max(h, axis=1)                     # (B, 1024)
    f = jnp.maximum(d(g, fw1) + fb1, 0.0)
    f = jnp.maximum(d(f, fw2) + fb2, 0.0)
    f = d(f, fw3) + fb3
    f = f + jnp.eye(k, dtype=jnp.float32).reshape(1, k * k)
    return f.reshape(-1, k, k)


# -------------------------------------------------------------------------- main
if __name__ == "__main__":
    # small shapes: batch=2, k=16 feature dims, 200 points (ragged vs tile_n=128
    # to exercise the in-kernel tail mask and the multi-tile running max).
    B, k, N = 2, 16, 200
    key = jax.random.PRNGKey(0)
    kx, kp = jax.random.split(key)

    # PyTorch input layout is (B, k, N).
    x_bkn = jax.random.normal(kx, (B, k, N), jnp.float32)
    params = make_params(kp, k)

    out = stnkd_forward(x_bkn, params, k, tile_n=128, ch_chunk=512)
    out = jax.block_until_ready(out)

    ref = stnkd_reference(jnp.transpose(x_bkn, (0, 2, 1)), params, k)
    assert out.shape == (B, k, k)
    assert jnp.allclose(out, ref, atol=5e-3, rtol=5e-3), "mismatch vs reference"

    print("KERNEL_OK")
</pallas_src>

<mosaic_0001>
module attributes {stable_mosaic.version = 11 : i64} {
  func.func @_stnkd_kernel(%arg0: i32, %arg1: i32, %arg2: memref<1x128x16xf32, #tpu.memory_space<vmem>>, %arg3: memref<16x64xbf16, #tpu.memory_space<vmem>>, %arg4: memref<1x64xf32, #tpu.memory_space<vmem>>, %arg5: memref<64x128xbf16, #tpu.memory_space<vmem>>, %arg6: memref<1x128xf32, #tpu.memory_space<vmem>>, %arg7: memref<128x1024xbf16, #tpu.memory_space<vmem>>, %arg8: memref<1x1024xf32, #tpu.memory_space<vmem>>, %arg9: memref<1024x512xbf16, #tpu.memory_space<vmem>>, %arg10: memref<1x512xf32, #tpu.memory_space<vmem>>, %arg11: memref<512x256xbf16, #tpu.memory_space<vmem>>, %arg12: memref<1x256xf32, #tpu.memory_space<vmem>>, %arg13: memref<256x256xbf16, #tpu.memory_space<vmem>>, %arg14: memref<1x256xf32, #tpu.memory_space<vmem>>, %arg15: memref<1x1x256xf32, #tpu.memory_space<vmem>>, %arg16: memref<1x1024xf32, #tpu.memory_space<vmem>>) attributes {dimension_semantics = [#tpu.dimension_semantics<parallel>, #tpu.dimension_semantics<arbitrary>], iteration_bounds = array<i64: 2, 2>, scalar_prefetch = 0 : i64, scratch_operands = 1 : i64, tpu.core_type = #tpu.core_type<tc>, window_params = [{transform_indices = @transform_0, window_bounds = array<i64: 1, 128, 16>}, {pipeline_mode = #tpu.pipeline_mode<synchronous>, transform_indices = @transform_1, window_bounds = array<i64: 16, 64>}, {pipeline_mode = #tpu.pipeline_mode<synchronous>, transform_indices = @transform_2, window_bounds = array<i64: 1, 64>}, {pipeline_mode = #tpu.pipeline_mode<synchronous>, transform_indices = @transform_3, window_bounds = array<i64: 64, 128>}, {pipeline_mode = #tpu.pipeline_mode<synchronous>, transform_indices = @transform_4, window_bounds = array<i64: 1, 128>}, {pipeline_mode = #tpu.pipeline_mode<synchronous>, transform_indices = @transform_5, window_bounds = array<i64: 128, 1024>}, {pipeline_mode = #tpu.pipeline_mode<synchronous>, transform_indices = @transform_6, window_bounds = array<i64: 1, 1024>}, {pipeline_mode = #tpu.pipeline_mode<synchronous>, transform_indices = @transform_7, window_bounds = array<i64: 1024, 512>}, {pipeline_mode = #tpu.pipeline_mode<synchronous>, transform_indices = @transform_8, window_bounds = array<i64: 1, 512>}, {pipeline_mode = #tpu.pipeline_mode<synchronous>, transform_indices = @transform_9, window_bounds = array<i64: 512, 256>}, {pipeline_mode = #tpu.pipeline_mode<synchronous>, transform_indices = @transform_10, window_bounds = array<i64: 1, 256>}, {pipeline_mode = #tpu.pipeline_mode<synchronous>, transform_indices = @transform_11, window_bounds = array<i64: 256, 256>}, {pipeline_mode = #tpu.pipeline_mode<synchronous>, transform_indices = @transform_12, window_bounds = array<i64: 1, 256>}, {transform_indices = @transform_13, window_bounds = array<i64: 1, 1, 256>}]} {
    %c0_i32 = arith.constant 0 : i32
    %0 = arith.cmpi eq, %arg1, %c0_i32 : i32
    %1 = arith.extui %0 : i1 to i32
    %c0_i32_0 = arith.constant 0 : i32
    %2 = arith.cmpi ne, %1, %c0_i32_0 : i32
    scf.if %2 {
      %cst_38 = arith.constant 0.000000e+00 : f32
      %61 = vector.broadcast %cst_38 : f32 to vector<1x1024xf32>
      %c0_39 = arith.constant 0 : index
      %c0_40 = arith.constant 0 : index
      %62 = vector.load %arg16[%c0_39, %c0_40] : memref<1x1024xf32, #tpu.memory_space<vmem>>, vector<1x1024xf32>
      tpu.vector_store %arg16[%c0_39, %c0_40], %61 {strides = array<i32>} : memref<1x1024xf32, #tpu.memory_space<vmem>>, vector<1x1024xf32>,
    } else {
    }
    %c0 = arith.constant 0 : index
    %c0_1 = arith.constant 0 : index
    %c0_2 = arith.constant 0 : index
    %3 = vector.load %arg2[%c0, %c0_1, %c0_2] : memref<1x128x16xf32, #tpu.memory_space<vmem>>, vector<1x128x16xf32>
    %4 = vector.shape_cast %3 : vector<1x128x16xf32> to vector<128x16xf32>
    %5 = arith.truncf %4 : vector<128x16xf32> to vector<128x16xbf16>
    %c0_3 = arith.constant 0 : index
    %c0_4 = arith.constant 0 : index
    %6 = vector.load %arg3[%c0_3, %c0_4] : memref<16x64xbf16, #tpu.memory_space<vmem>>, vector<16x64xbf16>
    %cst = arith.constant dense<0.000000e+00> : vector<128x64xf32>
    %7 = tpu.matmul %5, %6, %cst {dimension_numbers = #tpu.dot_dimension_numbers<[1], [0], [0], [1], [0, 0, 1, 1], [], []>} : vector<128x16xbf16>, vector<16x64xbf16>, vector<128x64xf32> -> vector<128x64xf32>
    %c0_5 = arith.constant 0 : index
    %c0_6 = arith.constant 0 : index
    %8 = vector.load %arg4[%c0_5, %c0_6] : memref<1x64xf32, #tpu.memory_space<vmem>>, vector<1x64xf32>
    %9 = vector.broadcast %8 : vector<1x64xf32> to vector<128x64xf32>
    %10 = arith.addf %7, %9 : vector<128x64xf32>
    %cst_7 = arith.constant 0.000000e+00 : f32
    %11 = vector.broadcast %cst_7 : f32 to vector<128x64xf32>
    %12 = arith.maximumf %10, %11 : vector<128x64xf32>
    %13 = arith.truncf %12 : vector<128x64xf32> to vector<128x64xbf16>
    %c0_8 = arith.constant 0 : index
    %c0_9 = arith.constant 0 : index
    %14 = vector.load %arg5[%c0_8, %c0_9] : memref<64x128xbf16, #tpu.memory_space<vmem>>, vector<64x128xbf16>
    %cst_10 = arith.constant dense<0.000000e+00> : vector<128x128xf32>
    %15 = tpu.matmul %13, %14, %cst_10 {dimension_numbers = #tpu.dot_dimension_numbers<[1], [0], [0], [1], [0, 0, 1, 1], [], []>} : vector<128x64xbf16>, vector<64x128xbf16>, vector<128x128xf32> -> vector<128x128xf32>
    %c0_11 = arith.constant 0 : index
    %c0_12 = arith.constant 0 : index
    %16 = vector.load %arg6[%c0_11, %c0_12] : memref<1x128xf32, #tpu.memory_space<vmem>>, vector<1x128xf32>
    %17 = vector.broadcast %16 : vector<1x128xf32> to vector<128x128xf32>
    %18 = arith.addf %15, %17 : vector<128x128xf32>
    %cst_13 = arith.constant 0.000000e+00 : f32
    %19 = vector.broadcast %cst_13 : f32 to vector<128x128xf32>
    %20 = arith.maximumf %18, %19 : vector<128x128xf32>
    %21 = arith.truncf %20 : vector<128x128xf32> to vector<128x128xbf16>
    %22 = tpu.iota {dimensions = array<i32: 0>} : vector<128x1xi32>
    %c128_i32 = arith.constant 128 : i32
    %23 = arith.muli %arg1, %c128_i32 : i32
    %24 = vector.broadcast %23 : i32 to vector<128x1xi32>
    %25 = arith.addi %22, %24 : vector<128x1xi32>
    %c200_i32 = arith.constant 200 : i32
    %26 = vector.broadcast %c200_i32 : i32 to vector<128x1xi32>
    %27 = arith.cmpi slt, %25, %26 : vector<128x1xi32>
    %c0_14 = arith.constant 0 : index
    %c0_15 = arith.constant 0 : index
    %28 = vector.load %arg7[%c0_14, %c0_15] : memref<128x1024xbf16, #tpu.memory_space<vmem>>, vector<128x512xbf16>
    %cst_16 = arith.constant dense<0.000000e+00> : vector<128x512xf32>
    %29 = tpu.matmul %21, %28, %cst_16 {dimension_numbers = #tpu.dot_dimension_numbers<[1], [0], [0], [1], [0, 0, 1, 1], [], []>} : vector<128x128xbf16>, vector<128x512xbf16>, vector<128x512xf32> -> vector<128x512xf32>
    %cst_17 = arith.constant 0xFF800000 : f32
    %30 = vector.shape_cast %27 : vector<128x1xi1> to vector<128x1xi1>
    %31 = vector.broadcast %30 : vector<128x1xi1> to vector<128x512xi1>
    %32 = vector.broadcast %cst_17 : f32 to vector<128x512xf32>
    %33 = arith.select %31, %29, %32 : vector<128x512xi1>, vector<128x512xf32>
    %cst_18 = arith.constant dense<0xFF800000> : vector<512xf32>
    %34 = vector.multi_reduction <maximumf>, %33, %cst_18 [0] : vector<128x512xf32> to vector<512xf32>
    %35 = vector.shape_cast %34 : vector<512xf32> to vector<1x512xf32>
    %c0_19 = arith.constant 0 : index
    %c0_20 = arith.constant 0 : index
    %36 = vector.load %arg8[%c0_19, %c0_20] : memref<1x1024xf32, #tpu.memory_space<vmem>>, vector<1x512xf32>
    %37 = arith.addf %35, %36 : vector<1x512xf32>
    %cst_21 = arith.constant 0.000000e+00 : f32
    %38 = vector.broadcast %cst_21 : f32 to vector<1x512xf32>
    %39 = arith.maximumf %37, %38 : vector<1x512xf32>
    %c0_22 = arith.constant 0 : index
    %c0_23 = arith.constant 0 : index
    %40 = vector.load %arg16[%c0_22, %c0_23] : memref<1x1024xf32, #tpu.memory_space<vmem>>, vector<1x512xf32>
    %41 = arith.maximumf %40, %39 : vector<1x512xf32>
    %c0_24 = arith.constant 0 : index
    %c0_25 = arith.constant 0 : index
    %42 = vector.load %arg16[%c0_24, %c0_25] : memref<1x1024xf32, #tpu.memory_space<vmem>>, vector<1x512xf32>
    tpu.vector_store %arg16[%c0_24, %c0_25], %41 {strides = array<i32>} : memref<1x1024xf32, #tpu.memory_space<vmem>>, vector<1x512xf32>,
    %c0_26 = arith.constant 0 : index
    %c512 = arith.constant 512 : index
    %43 = vector.load %arg7[%c0_26, %c512] : memref<128x1024xbf16, #tpu.memory_space<vmem>>, vector<128x512xbf16>
    %cst_27 = arith.constant dense<0.000000e+00> : vector<128x512xf32>
    %44 = tpu.matmul %21, %43, %cst_27 {dimension_numbers = #tpu.dot_dimension_numbers<[1], [0], [0], [1], [0, 0, 1, 1], [], []>} : vector<128x128xbf16>, vector<128x512xbf16>, vector<128x512xf32> -> vector<128x512xf32>
    %cst_28 = arith.constant 0xFF800000 : f32
    %45 = vector.shape_cast %27 : vector<128x1xi1> to vector<128x1xi1>
    %46 = vector.broadcast %45 : vector<128x1xi1> to vector<128x512xi1>
    %47 = vector.broadcast %cst_28 : f32 to vector<128x512xf32>
    %48 = arith.select %46, %44, %47 : vector<128x512xi1>, vector<128x512xf32>
    %cst_29 = arith.constant dense<0xFF800000> : vector<512xf32>
    %49 = vector.multi_reduction <maximumf>, %48, %cst_29 [0] : vector<128x512xf32> to vector<512xf32>
    %50 = vector.shape_cast %49 : vector<512xf32> to vector<1x512xf32>
    %c0_30 = arith.constant 0 : index
    %c512_31 = arith.constant 512 : index
    %51 = vector.load %arg8[%c0_30, %c512_31] : memref<1x1024xf32, #tpu.memory_space<vmem>>, vector<1x512xf32>
    %52 = arith.addf %50, %51 : vector<1x512xf32>
    %cst_32 = arith.constant 0.000000e+00 : f32
    %53 = vector.broadcast %cst_32 : f32 to vector<1x512xf32>
    %54 = arith.maximumf %52, %53 : vector<1x512xf32>
    %c0_33 = arith.constant 0 : index
    %c512_34 = arith.constant 512 : index
    %55 = vector.load %arg16[%c0_33, %c512_34] : memref<1x1024xf32, #tpu.memory_space<vmem>>, vector<1x512xf32>
    %56 = arith.maximumf %55, %54 : vector<1x512xf32>
    %c0_35 = arith.constant 0 : index
    %c512_36 = arith.constant 512 : index
    %57 = vector.load %arg16[%c0_35, %c512_36] : memref<1x1024xf32, #tpu.memory_space<vmem>>, vector<1x512xf32>
    tpu.vector_store %arg16[%c0_35, %c512_36], %56 {strides = array<i32>} : memref<1x1024xf32, #tpu.memory_space<vmem>>, vector<1x512xf32>,
    %c1_i32 = arith.constant 1 : i32
    %58 = arith.cmpi eq, %arg1, %c1_i32 : i32
    %59 = arith.extui %58 : i1 to i32
    %c0_i32_37 = arith.constant 0 : i32
    %60 = arith.cmpi ne, %59, %c0_i32_37 : i32
    scf.if %60 {
      %c0_38 = arith.constant 0 : index
      %c0_39 = arith.constant 0 : index
      %61 = vector.load %arg16[%c0_38, %c0_39] : memref<1x1024xf32, #tpu.memory_space<vmem>>, vector<1x1024xf32>
      %62 = arith.truncf %61 : vector<1x1024xf32> to vector<1x1024xbf16>
      %c0_40 = arith.constant 0 : index
      %c0_41 = arith.constant 0 : index
      %63 = vector.load %arg9[%c0_40, %c0_41] : memref<1024x512xbf16, #tpu.memory_space<vmem>>, vector<1024x512xbf16>
      %cst_42 = arith.constant dense<0.000000e+00> : vector<1x512xf32>
      %64 = tpu.matmul %62, %63, %cst_42 {dimension_numbers = #tpu.dot_dimension_numbers<[1], [0], [0], [1], [0, 0, 1, 1], [], []>} : vector<1x1024xbf16>, vector<1024x512xbf16>, vector<1x512xf32> -> vector<1x512xf32>
      %c0_43 = arith.constant 0 : index
      %c0_44 = arith.constant 0 : index
      %65 = vector.load %arg10[%c0_43, %c0_44] : memref<1x512xf32, #tpu.memory_space<vmem>>, vector<1x512xf32>
      %66 = arith.addf %64, %65 : vector<1x512xf32>
      %cst_45 = arith.constant 0.000000e+00 : f32
      %67 = vector.broadcast %cst_45 : f32 to vector<1x512xf32>
      %68 = arith.maximumf %66, %67 : vector<1x512xf32>
      %69 = arith.truncf %68 : vector<1x512xf32> to vector<1x512xbf16>
      %c0_46 = arith.constant 0 : index
      %c0_47 = arith.constant 0 : index
      %70 = vector.load %arg11[%c0_46, %c0_47] : memref<512x256xbf16, #tpu.memory_space<vmem>>, vector<512x256xbf16>
      %cst_48 = arith.constant dense<0.000000e+00> : vector<1x256xf32>
      %71 = tpu.matmul %69, %70, %cst_48 {dimension_numbers = #tpu.dot_dimension_numbers<[1], [0], [0], [1], [0, 0, 1, 1], [], []>} : vector<1x512xbf16>, vector<512x256xbf16>, vector<1x256xf32> -> vector<1x256xf32>
      %c0_49 = arith.constant 0 : index
      %c0_50 = arith.constant 0 : index
      %72 = vector.load %arg12[%c0_49, %c0_50] : memref<1x256xf32, #tpu.memory_space<vmem>>, vector<1x256xf32>
      %73 = arith.addf %71, %72 : vector<1x256xf32>
      %cst_51 = arith.constant 0.000000e+00 : f32
      %74 = vector.broadcast %cst_51 : f32 to vector<1x256xf32>
      %75 = arith.maximumf %73, %74 : vector<1x256xf32>
      %76 = arith.truncf %75 : vector<1x256xf32> to vector<1x256xbf16>
      %c0_52 = arith.constant 0 : index
      %c0_53 = arith.constant 0 : index
      %77 = vector.load %arg13[%c0_52, %c0_53] : memref<256x256xbf16, #tpu.memory_space<vmem>>, vector<256x256xbf16>
      %cst_54 = arith.constant dense<0.000000e+00> : vector<1x256xf32>
      %78 = tpu.matmul %76, %77, %cst_54 {dimension_numbers = #tpu.dot_dimension_numbers<[1], [0], [0], [1], [0, 0, 1, 1], [], []>} : vector<1x256xbf16>, vector<256x256xbf16>, vector<1x256xf32> -> vector<1x256xf32>
      %c0_55 = arith.constant 0 : index
      %c0_56 = arith.constant 0 : index
      %79 = vector.load %arg14[%c0_55, %c0_56] : memref<1x256xf32, #tpu.memory_space<vmem>>, vector<1x256xf32>
      %80 = arith.addf %78, %79 : vector<1x256xf32>
      %81 = tpu.iota {dimensions = array<i32: 1>} : vector<1x256xi32>
      %c17_i32 = arith.constant 17 : i32
      %c0_i32_57 = arith.constant 0 : i32
      %82 = arith.cmpi eq, %c17_i32, %c0_i32_57 : i32
      %c1_i32_58 = arith.constant 1 : i32
      %83 = arith.select %82, %c1_i32_58, %c17_i32 : i32
      %84 = vector.broadcast %83 : i32 to vector<1x256xi32>
      %85 = arith.remsi %81, %84 : vector<1x256xi32>
      %c0_i32_59 = arith.constant 0 : i32
      %86 = vector.broadcast %c0_i32_59 : i32 to vector<1x256xi32>
      %87 = arith.cmpi ne, %85, %86 : vector<1x256xi32>
      %c0_i32_60 = arith.constant 0 : i32
      %88 = vector.broadcast %c0_i32_60 : i32 to vector<1x256xi32>
      %89 = arith.cmpi slt, %85, %88 : vector<1x256xi32>
      %c0_i32_61 = arith.constant 0 : i32
      %90 = arith.cmpi slt, %83, %c0_i32_61 : i32
      %91 = vector.broadcast %90 : i1 to vector<1x256xi1>
      %92 = vector.broadcast %91 : vector<1x256xi1> to vector<1x256xi1>
      %93 = arith.xori %89, %92 : vector<1x256xi1>
      %94 = arith.andi %93, %87 : vector<1x256xi1>
      %95 = vector.broadcast %83 : i32 to vector<1x256xi32>
      %96 = arith.addi %85, %95 : vector<1x256xi32>
      %97 = arith.select %94, %96, %85 : vector<1x256xi1>, vector<1x256xi32>
      %c0_i32_62 = arith.constant 0 : i32
      %98 = vector.broadcast %c0_i32_62 : i32 to vector<1x256xi32>
      %99 = arith.cmpi eq, %97, %98 : vector<1x256xi32>
      %cst_63 = arith.constant 1.000000e+00 : f32
      %cst_64 = arith.constant 0.000000e+00 : f32
      %100 = vector.broadcast %cst_63 : f32 to vector<1x256xf32>
      %101 = vector.broadcast %cst_64 : f32 to vector<1x256xf32>
      %102 = arith.select %99, %100, %101 : vector<1x256xi1>, vector<1x256xf32>
      %103 = arith.addf %80, %102 : vector<1x256xf32>
      %c0_65 = arith.constant 0 : index
      %c0_66 = arith.constant 0 : index
      %c0_67 = arith.constant 0 : index
      %104 = vector.load %arg15[%c0_65, %c0_66, %c0_67] : memref<1x1x256xf32, #tpu.memory_space<vmem>>, vector<1x1x256xf32>
      %105 = vector.shape_cast %104 : vector<1x1x256xf32> to vector<1x256xf32>
      %106 = vector.shape_cast %103 : vector<1x256xf32> to vector<1x1x256xf32>
      tpu.vector_store %arg15[%c0_65, %c0_66, %c0_67], %106 {strides = array<i32>} : memref<1x1x256xf32, #tpu.memory_space<vmem>>, vector<1x1x256xf32>,
    } else {
    }
    return
  }
  func.func @transform_0(%arg0: i32, %arg1: i32) -> (i32, i32, i32) {
    %c0_i32 = arith.constant 0 : i32
    %c0_i32_0 = arith.constant 0 : i32
    return %arg0, %arg1, %c0_i32 : i32, i32, i32
  }
  func.func @transform_1(%arg0: i32, %arg1: i32) -> (i32, i32) {
    %c0_i32 = arith.constant 0 : i32
    %c0_i32_0 = arith.constant 0 : i32
    %c0_i32_1 = arith.constant 0 : i32
    return %c0_i32, %c0_i32_0 : i32, i32
  }
  func.func @transform_2(%arg0: i32, %arg1: i32) -> (i32, i32) {
    %c0_i32 = arith.constant 0 : i32
    %c0_i32_0 = arith.constant 0 : i32
    %c0_i32_1 = arith.constant 0 : i32
    return %c0_i32, %c0_i32_0 : i32, i32
  }
  func.func @transform_3(%arg0: i32, %arg1: i32) -> (i32, i32) {
    %c0_i32 = arith.constant 0 : i32
    %c0_i32_0 = arith.constant 0 : i32
    %c0_i32_1 = arith.constant 0 : i32
    return %c0_i32, %c0_i32_0 : i32, i32
  }
  func.func @transform_4(%arg0: i32, %arg1: i32) -> (i32, i32) {
    %c0_i32 = arith.constant 0 : i32
    %c0_i32_0 = arith.constant 0 : i32
    %c0_i32_1 = arith.constant 0 : i32
    return %c0_i32, %c0_i32_0 : i32, i32
  }
  func.func @transform_5(%arg0: i32, %arg1: i32) -> (i32, i32) {
    %c0_i32 = arith.constant 0 : i32
    %c0_i32_0 = arith.constant 0 : i32
    %c0_i32_1 = arith.constant 0 : i32
    return %c0_i32, %c0_i32_0 : i32, i32
  }
  func.func @transform_6(%arg0: i32, %arg1: i32) -> (i32, i32) {
    %c0_i32 = arith.constant 0 : i32
    %c0_i32_0 = arith.constant 0 : i32
    %c0_i32_1 = arith.constant 0 : i32
    return %c0_i32, %c0_i32_0 : i32, i32
  }
  func.func @transform_7(%arg0: i32, %arg1: i32) -> (i32, i32) {
    %c0_i32 = arith.constant 0 : i32
    %c0_i32_0 = arith.constant 0 : i32
    %c0_i32_1 = arith.constant 0 : i32
    return %c0_i32, %c0_i32_0 : i32, i32
  }
  func.func @transform_8(%arg0: i32, %arg1: i32) -> (i32, i32) {
    %c0_i32 = arith.constant 0 : i32
    %c0_i32_0 = arith.constant 0 : i32
    %c0_i32_1 = arith.constant 0 : i32
    return %c0_i32, %c0_i32_0 : i32, i32
  }
  func.func @transform_9(%arg0: i32, %arg1: i32) -> (i32, i32) {
    %c0_i32 = arith.constant 0 : i32
    %c0_i32_0 = arith.constant 0 : i32
    %c0_i32_1 = arith.constant 0 : i32
    return %c0_i32, %c0_i32_0 : i32, i32
  }
  func.func @transform_10(%arg0: i32, %arg1: i32) -> (i32, i32) {
    %c0_i32 = arith.constant 0 : i32
    %c0_i32_0 = arith.constant 0 : i32
    %c0_i32_1 = arith.constant 0 : i32
    return %c0_i32, %c0_i32_0 : i32, i32
  }
  func.func @transform_11(%arg0: i32, %arg1: i32) -> (i32, i32) {
    %c0_i32 = arith.constant 0 : i32
    %c0_i32_0 = arith.constant 0 : i32
    %c0_i32_1 = arith.constant 0 : i32
    return %c0_i32, %c0_i32_0 : i32, i32
  }
  func.func @transform_12(%arg0: i32, %arg1: i32) -> (i32, i32) {
    %c0_i32 = arith.constant 0 : i32
    %c0_i32_0 = arith.constant 0 : i32
    %c0_i32_1 = arith.constant 0 : i32
    return %c0_i32, %c0_i32_0 : i32, i32
  }
  func.func @transform_13(%arg0: i32, %arg1: i32) -> (i32, i32, i32) {
    %c0_i32 = arith.constant 0 : i32
    %c0_i32_0 = arith.constant 0 : i32
    %c0_i32_1 = arith.constant 0 : i32
    return %arg0, %c0_i32, %c0_i32_0 : i32, i32, i32
  }
}

</mosaic_0001>

<llo_original>
// kernel: tpu_custom_call.1
$region0: #{tpu_custom_call.1}
  #allocation0 [shape = 'u32[]', space=smem, size = 0x4, offset = 0x4, fixed_abs, tag = 'smem constant byte address 0x4 - core index']
  #allocation1 [shape = 'u32[144,128]{1,0:T(1,128)}', space=vmem, size = 0x12000, scoped, tag = 'internal scratch']
  #allocation2 [shape = 'f32[1,1024]{1,0:T(1,128)}', space=vmem, size = 0x1000, scoped, tag = 'scratch operand']
  %s0 = inlined_call_operand.vmem [shape: f32[2,200,16], index: 0, kind: input, shape index: {}]
  %s1 = inlined_call_operand.vmem [shape: bf16[16,64], index: 1, kind: input, shape index: {}]
  %s2 = inlined_call_operand.vmem [shape: f32[1,64], index: 2, kind: input, shape index: {}]
  %s3 = inlined_call_operand.vmem [shape: bf16[64,128], index: 3, kind: input, shape index: {}]
  %s4 = inlined_call_operand.vmem [shape: f32[1,128], index: 4, kind: input, shape index: {}]
  %s5 = inlined_call_operand.hbm [shape: bf16[128,1024], index: 5, kind: input, shape index: {}]
  %s6 = inlined_call_operand.vmem [shape: f32[1,1024], index: 6, kind: input, shape index: {}]
  %s7 = inlined_call_operand.hbm [shape: bf16[1024,512], index: 7, kind: input, shape index: {}]
  %s8 = inlined_call_operand.vmem [shape: f32[1,512], index: 8, kind: input, shape index: {}]
  %s9 = inlined_call_operand.hbm [shape: bf16[512,256], index: 9, kind: input, shape index: {}]
  %s10 = inlined_call_operand.vmem [shape: f32[1,256], index: 10, kind: input, shape index: {}]
  %s11 = inlined_call_operand.vmem [shape: bf16[256,256], index: 11, kind: input, shape index: {}]
  %s12 = inlined_call_operand.vmem [shape: f32[1,256], index: 12, kind: input, shape index: {}]
  %s13 = inlined_call_operand.hbm [shape: f32[2,1,256], index: 13, kind: output, shape index: {}]
  %s14 = sld [smem:[#allocation0]]
  $region105: #{tpu_custom_call.1} parent=0
    _
  %s16 = ssub.s32 1, %s14
  %s17 = scalar_select 0, %s16, %s14
  $region1: #{tpu_custom_call.1} parent=0
    #allocation3 [shape = 'u8[262144]{0}', space=vmem, size = 0x40000, scoped, tag = 'input window, operand 5, single buffered']
    #allocation4 [shape = 's32[2]{0}', space=sflag, size = 0x8, scoped, tag = 'scoped memory for tpu_custom_call.1']
    #allocation5 [shape = 's32[2]{0}', space=sflag, size = 0x8, scoped, tag = 'scoped memory for tpu_custom_call.1']
    #allocation6 [shape = 'u8[1048576]{0}', space=vmem, size = 0x100000, scoped, tag = 'input window, operand 7, single buffered']
    #allocation7 [shape = 's32[1]{0}', space=sflag, size = 0x4, scoped, tag = 'scoped memory for tpu_custom_call.1']
    #allocation8 [shape = 'u8[262144]{0}', space=vmem, size = 0x40000, scoped, tag = 'input window, operand 9, single buffered']
    #allocation9 [shape = 'u8[2048]{0}', space=vmem, size = 0x800, scoped, tag = 'output window, operand 0']
    %18 = vsyncpa [#allocation4], 0
    %19 = vsyncpa [#allocation7], 0
    %20 = vsyncpa [#allocation5], 0
    %s21 = scalar_lea.sflag [#allocation5], 1
    %22 = vsyncpa %s21, 0
    loop: start=0, step=1, limit=6
    $region2: #{tpu_custom_call.1} parent=1 // loop_pre_header
      _
    $region3: #{tpu_custom_call.1} parent=1 // loop_header
      %s24 = sphi 0, %s28
      %p25 = scmp.ge.s32.totalorder %s24, 6
      %s31 = sphi 0, %s43
      %s32 = sphi 0, %s39
      %s33 = sphi 0, %s31
      %s34 = sphi 0, %s32
      %s35 = sphi 0, %s33
      %s36 = sphi 0, %s34
      %s48 = sphi 0, %s50
      %s51 = sphi 0, %s48
      %s52 = sphi 0, %s51
      %s68 = sphi 0, %s52
      %s72 = sphi 0, %s72
      %s74 = sphi 0, %s72
      %s75 = sphi 0, %s74
      %s89 = sphi 0, %s75
      %s93 = sphi 0, %s93
      %s95 = sphi 0, %s93
      %s96 = sphi 0, %s95
      %s110 = sphi 0, %s96
      %s114 = sphi 0, %s114
      %s116 = sphi 0, %s114
      %s117 = sphi 0, %s116
      %s131 = sphi 0, %s117
      %s135 = sphi 0, %s135
      %s137 = sphi 0, %s135
      %s138 = sphi 0, %s137
      %s152 = sphi 0, %s138
      %s156 = sphi 0, %s156
      %s158 = sphi 0, %s156
      %s159 = sphi 0, %s158
      %s173 = sphi 0, %s159
      %s177 = sphi 0, %s177
      %s179 = sphi 0, %s177
      %s180 = sphi 0, %s179
      %s194 = sphi 0, %s180
      %s198 = sphi 0, %s198
      %s200 = sphi 0, %s198
      %s201 = sphi 0, %s200
      %s215 = sphi 0, %s201
      %s219 = sphi 0, %s219
      %s221 = sphi 0, %s219
      %s222 = sphi 0, %s221
      %s236 = sphi 0, %s222
      %s240 = sphi 0, %s240
      %s242 = sphi 0, %s240
      %s243 = sphi 0, %s242
      %s257 = sphi 0, %s243
      %s261 = sphi 0, %s261
      %s263 = sphi 0, %s261
      %s264 = sphi 0, %s263
      %s278 = sphi 0, %s264
      %s282 = sphi 0, %s282
      %s284 = sphi 0, %s282
      %s285 = sphi 0, %s284
      %s299 = sphi 0, %s285
      %s303 = sphi 0, %s303
      %s305 = sphi 0, %s303
      %s306 = sphi 0, %s305
      %s320 = sphi 0, %s306
      %s326 = sphi 0, %s328
      %s329 = sphi 0, %s326
      %s330 = sphi 0, %s329
      %s346 = sphi 0, %s330
    $region4: #{tpu_custom_call.1} parent=1 // loop_header_branch
      %27 = sbr.rel (%p25) target = $region8
    $region5: #{tpu_custom_call.1} parent=1 // loop_body
      %s29 = ssub.s32 %s24, 1
      %s30 = ssub.s32 %s24, 2
      %s37 = sadd.s32 1, %s32
      %p38 = scmp.ge.s32.totalorder %s37, 2
      %s39 = scalar_select %p38, 0, %s37
      %s40 = sadd.s32 1, %s31
      %s41 = scalar_select %p38, %s40, %s31
      %p42 = scmp.ge.s32.totalorder %s41, 2
      %s43 = scalar_select %p42, 0, %s41
      %s44 = ssub.s32 %s31, %s43
      %s45 = ssub.s32 %s32, %s39
      %s46 = sor.u32 %s44, %s45
      %p47 = scmp.eq.s32.totalorder %s46, 0
      %s49 = sadd.s32 %s48, 1
      %s50 = scalar_select %p47, %s48, %s49
      %p53 = pneg %p47
      %p54 = scmp.eq.s32.totalorder %s24, 3
      %p55 = por %p53, %p54
      %p56 = scmp.ne.s32.totalorder %s48, %s51
      %p57 = scmp.eq.s32.totalorder %s24, 0
      %p58 = por %p56, %p57
      %p59 = scmp.ne.s32.totalorder %s48, %s51
      %p60 = scmp.eq.s32.totalorder %s29, 3
      %p61 = por %p59, %p60
      %p62 = scmp.ne.s32.totalorder %s51, %s52
      %p63 = scmp.eq.s32.totalorder %s29, 0
      %p64 = por %p62, %p63
      %p65 = scmp.ne.s32.totalorder %s51, %s52
      %p66 = scmp.eq.s32.totalorder %s30, 3
      %p67 = por %p65, %p66
      %p69 = scmp.ne.s32.totalorder %s52, %s68
      %p70 = scmp.eq.s32.totalorder %s30, 0
      %p71 = por %p69, %p70
      %s73 = sadd.s32 %s72, 1
      %p76 = scmp.eq.s32.totalorder %s24, 3
      %p77 = scmp.ne.s32.totalorder %s72, %s74
      %p78 = scmp.eq.s32.totalorder %s24, 0
      %p79 = por %p77, %p78
      %p80 = scmp.ne.s32.totalorder %s72, %s74
      %p81 = scmp.eq.s32.totalorder %s29, 3
      %p82 = por %p80, %p81
      %p83 = scmp.ne.s32.totalorder %s74, %s75
      %p84 = scmp.eq.s32.totalorder %s29, 0
      %p85 = por %p83, %p84
      %p86 = scmp.ne.s32.totalorder %s74, %s75
      %p87 = scmp.eq.s32.totalorder %s30, 3
      %p88 = por %p86, %p87
      %p90 = scmp.ne.s32.totalorder %s75, %s89
      %p91 = scmp.eq.s32.totalorder %s30, 0
      %p92 = por %p90, %p91
      %s94 = sadd.s32 %s93, 1
      %p97 = scmp.eq.s32.totalorder %s24, 3
      %p98 = scmp.ne.s32.totalorder %s93, %s95
      %p99 = scmp.eq.s32.totalorder %s24, 0
      %p100 = por %p98, %p99
      %p101 = scmp.ne.s32.totalorder %s93, %s95
      %p102 = scmp.eq.s32.totalorder %s29, 3
      %p103 = por %p101, %p102
      %p104 = scmp.ne.s32.totalorder %s95, %s96
      %p105 = scmp.eq.s32.totalorder %s29, 0
      %p106 = por %p104, %p105
      %p107 = scmp.ne.s32.totalorder %s95, %s96
      %p108 = scmp.eq.s32.totalorder %s30, 3
      %p109 = por %p107, %p108
      %p111 = scmp.ne.s32.totalorder %s96, %s110
      %p112 = scmp.eq.s32.totalorder %s30, 0
      %p113 = por %p111, %p112
      %s115 = sadd.s32 %s114, 1
      %p118 = scmp.eq.s32.totalorder %s24, 3
      %p119 = scmp.ne.s32.totalorder %s114, %s116
      %p120 = scmp.eq.s32.totalorder %s24, 0
      %p121 = por %p119, %p120
      %p122 = scmp.ne.s32.totalorder %s114, %s116
      %p123 = scmp.eq.s32.totalorder %s29, 3
      %p124 = por %p122, %p123
      %p125 = scmp.ne.s32.totalorder %s116, %s117
      %p126 = scmp.eq.s32.totalorder %s29, 0
      %p127 = por %p125, %p126
      %p128 = scmp.ne.s32.totalorder %s116, %s117
      %p129 = scmp.eq.s32.totalorder %s30, 3
      %p130 = por %p128, %p129
      %p132 = scmp.ne.s32.totalorder %s117, %s131
      %p133 = scmp.eq.s32.totalorder %s30, 0
      %p134 = por %p132, %p133
      %s136 = sadd.s32 %s135, 1
      %p139 = scmp.eq.s32.totalorder %s24, 3
      %p140 = scmp.ne.s32.totalorder %s135, %s137
      %p141 = scmp.eq.s32.totalorder %s24, 0
      %p142 = por %p140, %p141
      %p143 = scmp.ne.s32.totalorder %s135, %s137
      %p144 = scmp.eq.s32.totalorder %s29, 3
      %p145 = por %p143, %p144
      %p146 = scmp.ne.s32.totalorder %s137, %s138
      %p147 = scmp.eq.s32.totalorder %s29, 0
      %p148 = por %p146, %p147
      %p149 = scmp.ne.s32.totalorder %s137, %s138
      %p150 = scmp.eq.s32.totalorder %s30, 3
      %p151 = por %p149, %p150
      %p153 = scmp.ne.s32.totalorder %s138, %s152
      %p154 = scmp.eq.s32.totalorder %s30, 0
      %p155 = por %p153, %p154
      %s157 = sadd.s32 %s156, 1
      %p160 = scmp.eq.s32.totalorder %s24, 3
      %p161 = scmp.ne.s32.totalorder %s156, %s158
      %p162 = scmp.eq.s32.totalorder %s24, 0
      %p163 = por %p161, %p162
      %p164 = scmp.ne.s32.totalorder %s156, %s158
      %p165 = scmp.eq.s32.totalorder %s29, 3
      %p166 = por %p164, %p165
      %p167 = scmp.ne.s32.totalorder %s158, %s159
      %p168 = scmp.eq.s32.totalorder %s29, 0
      %p169 = por %p167, %p168
      %p170 = scmp.ne.s32.totalorder %s158, %s159
      %p171 = scmp.eq.s32.totalorder %s30, 3
      %p172 = por %p170, %p171
      %p174 = scmp.ne.s32.totalorder %s159, %s173
      %p175 = scmp.eq.s32.totalorder %s30, 0
      %p176 = por %p174, %p175
      %s178 = sadd.s32 %s177, 1
      %p181 = scmp.eq.s32.totalorder %s24, 3
      %p182 = scmp.ne.s32.totalorder %s177, %s179
      %p183 = scmp.eq.s32.totalorder %s24, 0
      %p184 = por %p182, %p183
      %p185 = scmp.ne.s32.totalorder %s177, %s179
      %p186 = scmp.eq.s32.totalorder %s29, 3
      %p187 = por %p185, %p186
      %p188 = scmp.ne.s32.totalorder %s179, %s180
      %p189 = scmp.eq.s32.totalorder %s29, 0
      %p190 = por %p188, %p189
      %p191 = scmp.ne.s32.totalorder %s179, %s180
      %p192 = scmp.eq.s32.totalorder %s30, 3
      %p193 = por %p191, %p192
      %p195 = scmp.ne.s32.totalorder %s180, %s194
      %p196 = scmp.eq.s32.totalorder %s30, 0
      %p197 = por %p195, %p196
      %s199 = sadd.s32 %s198, 1
      %p202 = scmp.eq.s32.totalorder %s24, 3
      %p203 = scmp.ne.s32.totalorder %s198, %s200
      %p204 = scmp.eq.s32.totalorder %s24, 0
      %p205 = por %p203, %p204
      %p206 = scmp.ne.s32.totalorder %s198, %s200
      %p207 = scmp.eq.s32.totalorder %s29, 3
      %p208 = por %p206, %p207
      %p209 = scmp.ne.s32.totalorder %s200, %s201
      %p210 = scmp.eq.s32.totalorder %s29, 0
      %p211 = por %p209, %p210
      %p212 = scmp.ne.s32.totalorder %s200, %s201
      %p213 = scmp.eq.s32.totalorder %s30, 3
      %p214 = por %p212, %p213
      %p216 = scmp.ne.s32.totalorder %s201, %s215
      %p217 = scmp.eq.s32.totalorder %s30, 0
      %p218 = por %p216, %p217
      %s220 = sadd.s32 %s219, 1
      %p223 = scmp.eq.s32.totalorder %s24, 3
      %p224 = scmp.ne.s32.totalorder %s219, %s221
      %p225 = scmp.eq.s32.totalorder %s24, 0
      %p226 = por %p224, %p225
      %p227 = scmp.ne.s32.totalorder %s219, %s221
      %p228 = scmp.eq.s32.totalorder %s29, 3
      %p229 = por %p227, %p228
      %p230 = scmp.ne.s32.totalorder %s221, %s222
      %p231 = scmp.eq.s32.totalorder %s29, 0
      %p232 = por %p230, %p231
      %p233 = scmp.ne.s32.totalorder %s221, %s222
      %p234 = scmp.eq.s32.totalorder %s30, 3
      %p235 = por %p233, %p234
      %p237 = scmp.ne.s32.totalorder %s222, %s236
      %p238 = scmp.eq.s32.totalorder %s30, 0
      %p239 = por %p237, %p238
      %s241 = sadd.s32 %s240, 1
      %p244 = scmp.eq.s32.totalorder %s24, 3
      %p245 = scmp.ne.s32.totalorder %s240, %s242
      %p246 = scmp.eq.s32.totalorder %s24, 0
      %p247 = por %p245, %p246
      %p248 = scmp.ne.s32.totalorder %s240, %s242
      %p249 = scmp.eq.s32.totalorder %s29, 3
      %p250 = por %p248, %p249
      %p251 = scmp.ne.s32.totalorder %s242, %s243
      %p252 = scmp.eq.s32.totalorder %s29, 0
      %p253 = por %p251, %p252
      %p254 = scmp.ne.s32.totalorder %s242, %s243
      %p255 = scmp.eq.s32.totalorder %s30, 3
      %p256 = por %p254, %p255
      %p258 = scmp.ne.s32.totalorder %s243, %s257
      %p259 = scmp.eq.s32.totalorder %s30, 0
      %p260 = por %p258, %p259
      %s262 = sadd.s32 %s261, 1
      %p265 = scmp.eq.s32.totalorder %s24, 3
      %p266 = scmp.ne.s32.totalorder %s261, %s263
      %p267 = scmp.eq.s32.totalorder %s24, 0
      %p268 = por %p266, %p267
      %p269 = scmp.ne.s32.totalorder %s261, %s263
      %p270 = scmp.eq.s32.totalorder %s29, 3
      %p271 = por %p269, %p270
      %p272 = scmp.ne.s32.totalorder %s263, %s264
      %p273 = scmp.eq.s32.totalorder %s29, 0
      %p274 = por %p272, %p273
      %p275 = scmp.ne.s32.totalorder %s263, %s264
      %p276 = scmp.eq.s32.totalorder %s30, 3
      %p277 = por %p275, %p276
      %p279 = scmp.ne.s32.totalorder %s264, %s278
      %p280 = scmp.eq.s32.totalorder %s30, 0
      %p281 = por %p279, %p280
      %s283 = sadd.s32 %s282, 1
      %p286 = scmp.eq.s32.totalorder %s24, 3
      %p287 = scmp.ne.s32.totalorder %s282, %s284
      %p288 = scmp.eq.s32.totalorder %s24, 0
      %p289 = por %p287, %p288
      %p290 = scmp.ne.s32.totalorder %s282, %s284
      %p291 = scmp.eq.s32.totalorder %s29, 3
      %p292 = por %p290, %p291
      %p293 = scmp.ne.s32.totalorder %s284, %s285
      %p294 = scmp.eq.s32.totalorder %s29, 0
      %p295 = por %p293, %p294
      %p296 = scmp.ne.s32.totalorder %s284, %s285
      %p297 = scmp.eq.s32.totalorder %s30, 3
      %p298 = por %p296, %p297
      %p300 = scmp.ne.s32.totalorder %s285, %s299
      %p301 = scmp.eq.s32.totalorder %s30, 0
      %p302 = por %p300, %p301
      %s304 = sadd.s32 %s303, 1
      %p307 = scmp.eq.s32.totalorder %s24, 3
      %p308 = scmp.ne.s32.totalorder %s303, %s305
      %p309 = scmp.eq.s32.totalorder %s24, 0
      %p310 = por %p308, %p309
      %p311 = scmp.ne.s32.totalorder %s303, %s305
      %p312 = scmp.eq.s32.totalorder %s29, 3
      %p313 = por %p311, %p312
      %p314 = scmp.ne.s32.totalorder %s305, %s306
      %p315 = scmp.eq.s32.totalorder %s29, 0
      %p316 = por %p314, %p315
      %p317 = scmp.ne.s32.totalorder %s305, %s306
      %p318 = scmp.eq.s32.totalorder %s30, 3
      %p319 = por %p317, %p318
      %p321 = scmp.ne.s32.totalorder %s306, %s320
      %p322 = scmp.eq.s32.totalorder %s30, 0
      %p323 = por %p321, %p322
      %s324 = ssub.s32 %s31, %s43
      %p325 = scmp.eq.s32.totalorder %s324, 0
      %s327 = sadd.s32 %s326, 1
      %s328 = scalar_select %p325, %s326, %s327
      %p331 = pneg %p325
      %p332 = scmp.eq.s32.totalorder %s24, 3
      %p333 = por %p331, %p332
      %p334 = scmp.ne.s32.totalorder %s326, %s329
      %p335 = scmp.eq.s32.totalorder %s24, 0
      %p336 = por %p334, %p335
      %p337 = scmp.ne.s32.totalorder %s326, %s329
      %p338 = scmp.eq.s32.totalorder %s29, 3
      %p339 = por %p337, %p338
      %p340 = scmp.ne.s32.totalorder %s329, %s330
      %p341 = scmp.eq.s32.totalorder %s29, 0
      %p342 = por %p340, %p341
      %p343 = scmp.ne.s32.totalorder %s329, %s330
      %p344 = scmp.eq.s32.totalorder %s30, 3
      %p345 = por %p343, %p344
      %p347 = scmp.ne.s32.totalorder %s330, %s346
      %p348 = scmp.eq.s32.totalorder %s30, 0
      %p349 = por %p347, %p348
      %p350 = scmp.le.s32.totalorder 1, %s24
      %p351 = scmp.lt.s32.totalorder %s24, 5
      %p352 = pnand %p350, %p351
      %p353 = pneg %p352
      // Predicated region
      $region9: #{tpu_custom_call.1} parent=5 // pred_check
        _
      $region10: #{tpu_custom_call.1} parent=5 // pred_check_branch
        %355 = sbr.rel (%p352) target = $region12
      $region11: #{tpu_custom_call.1} parent=5 // pred_region
        %s356 = ssub.s32 %s24, 1
        // Predicated region
        $region13: #{tpu_custom_call.1} parent=11 // pred_check
          %p357 = pneg %p85
        $region14: #{tpu_custom_call.1} parent=11 // pred_check_branch
          %359 = sbr.rel (%p357) target = $region16
        $region15: #{tpu_custom_call.1} parent=11 // pred_region
          _
        $region16: #{tpu_custom_call.1} parent=11 // pred_fallthru
          _
        // Predicated region
        $region17: #{tpu_custom_call.1} parent=11 // pred_check
          %p360 = pneg %p106
        $region18: #{tpu_custom_call.1} parent=11 // pred_check_branch
          %362 = sbr.rel (%p360) target = $region20
        $region19: #{tpu_custom_call.1} parent=11 // pred_region
          _
        $region20: #{tpu_custom_call.1} parent=11 // pred_fallthru
          _
        // Predicated region
        $region21: #{tpu_custom_call.1} parent=11 // pred_check
          %p363 = pneg %p127
        $region22: #{tpu_custom_call.1} parent=11 // pred_check_branch
          %365 = sbr.rel (%p363) target = $region24
        $region23: #{tpu_custom_call.1} parent=11 // pred_region
          _
        $region24: #{tpu_custom_call.1} parent=11 // pred_fallthru
          _
        // Predicated region
        $region25: #{tpu_custom_call.1} parent=11 // pred_check
          %p366 = pneg %p148
        $region26: #{tpu_custom_call.1} parent=11 // pred_check_branch
          %368 = sbr.rel (%p366) target = $region28
        $region27: #{tpu_custom_call.1} parent=11 // pred_region
          _
        $region28: #{tpu_custom_call.1} parent=11 // pred_fallthru
          _
        // Predicated region
        $region29: #{tpu_custom_call.1} parent=11 // pred_check
          %p369 = pneg %p169
        $region30: #{tpu_custom_call.1} parent=11 // pred_check_branch
          %371 = sbr.rel (%p369) target = $region32
        $region31: #{tpu_custom_call.1} parent=11 // pred_region
          %s373 = ssub.s32 8192, 8192
          %374 = vsyncadd [#allocation4], %s373
          %s375 = sshll.u32 [#allocation3], 4
          %s376 = int_to_ptr.vmem [resolvable:$true] %s375
          %381 = dma.hbm_to_vmem [thread:$0]  %s5, 8192, %s376, [#allocation4], 512, 512, 32
        $region32: #{tpu_custom_call.1} parent=11 // pred_fallthru
          _
        // Predicated region
        $region33: #{tpu_custom_call.1} parent=11 // pred_check
          %p382 = pneg %p190
        $region34: #{tpu_custom_call.1} parent=11 // pred_check_branch
          %384 = sbr.rel (%p382) target = $region36
        $region35: #{tpu_custom_call.1} parent=11 // pred_region
          _
        $region36: #{tpu_custom_call.1} parent=11 // pred_fallthru
          _
        // Predicated region
        $region37: #{tpu_custom_call.1} parent=11 // pred_check
          %p385 = pneg %p211
        $region38: #{tpu_custom_call.1} parent=11 // pred_check_branch
          %387 = sbr.rel (%p385) target = $region40
        $region39: #{tpu_custom_call.1} parent=11 // pred_region
          %s389 = ssub.s32 32768, 32768
          %390 = vsyncadd [#allocation7], %s389
          %s391 = sshll.u32 [#allocation6], 4
          %s392 = int_to_ptr.vmem [resolvable:$true] %s391
          %397 = dma.hbm_to_vmem [thread:$0]  %s7, 32768, %s392, [#allocation7], 256, 256, 16
        $region40: #{tpu_custom_call.1} parent=11 // pred_fallthru
          _
        // Predicated region
        $region41: #{tpu_custom_call.1} parent=11 // pred_check
          %p398 = pneg %p232
        $region42: #{tpu_custom_call.1} parent=11 // pred_check_branch
          %400 = sbr.rel (%p398) target = $region44
        $region43: #{tpu_custom_call.1} parent=11 // pred_region
          _
        $region44: #{tpu_custom_call.1} parent=11 // pred_fallthru
          _
        // Predicated region
        $region45: #{tpu_custom_call.1} parent=11 // pred_check
          %p401 = pneg %p253
        $region46: #{tpu_custom_call.1} parent=11 // pred_check_branch
          %403 = sbr.rel (%p401) target = $region48
        $region47: #{tpu_custom_call.1} parent=11 // pred_region
          %s405 = ssub.s32 8192, 8192
          %406 = vsyncadd [#allocation7], %s405
          %s407 = sshll.u32 [#allocation8], 4
          %s408 = int_to_ptr.vmem [resolvable:$true] %s407
          %413 = dma.hbm_to_vmem [thread:$0]  %s9, 8192, %s408, [#allocation7], 128, 128, 8
        $region48: #{tpu_custom_call.1} parent=11 // pred_fallthru
          _
        // Predicated region
        $region49: #{tpu_custom_call.1} parent=11 // pred_check
          %p414 = pneg %p274
        $region50: #{tpu_custom_call.1} parent=11 // pred_check_branch
          %416 = sbr.rel (%p414) target = $region52
        $region51: #{tpu_custom_call.1} parent=11 // pred_region
          _
        $region52: #{tpu_custom_call.1} parent=11 // pred_fallthru
          _
        // Predicated region
        $region53: #{tpu_custom_call.1} parent=11 // pred_check
          %p417 = pneg %p295
        $region54: #{tpu_custom_call.1} parent=11 // pred_check_branch
          %419 = sbr.rel (%p417) target = $region56
        $region55: #{tpu_custom_call.1} parent=11 // pred_region
          _
        $region56: #{tpu_custom_call.1} parent=11 // pred_fallthru
          _
        // Predicated region
        $region57: #{tpu_custom_call.1} parent=11 // pred_check
          %p420 = pneg %p316
        $region58: #{tpu_custom_call.1} parent=11 // pred_check_branch
          %422 = sbr.rel (%p420) target = $region60
        $region59: #{tpu_custom_call.1} parent=11 // pred_region
          _
        $region60: #{tpu_custom_call.1} parent=11 // pred_fallthru
          _
      $region12: #{tpu_custom_call.1} parent=5 // pred_fallthru
        _
      %p423 = scmp.lt.s32.totalorder %s24, 4
      // Predicated region
      $region61: #{tpu_custom_call.1} parent=5 // pred_check
        %p424 = pneg %p423
      $region62: #{tpu_custom_call.1} parent=5 // pred_check_branch
        %426 = sbr.rel (%p424) target = $region64
      $region63: #{tpu_custom_call.1} parent=5 // pred_region
        // Predicated region
        $region65: #{tpu_custom_call.1} parent=63 // pred_check
          %p427 = pneg %p58
        $region66: #{tpu_custom_call.1} parent=63 // pred_check_branch
          %429 = sbr.rel (%p427) target = $region68
        $region67: #{tpu_custom_call.1} parent=63 // pred_region
          %s430 = smul.u32 16, %s32
          %s431 = ssub.s32 25, %s430
          %p432 = scmp.lt.s32.totalorder %s431, 16
          %s433 = scalar_select %p432, %s431, 16
          %s434 = smul.u32 128, %s433
          %p435 = scmp.lt.s32.totalorder %s31, 1
          %s436 = scalar_select %p435, %s31, 1
          %p437 = scmp.lt.s32.totalorder %s430, 24
          %s438 = scalar_select %p437, %s430, 24
          %s439 = smul.addr %s436, 25
          %s440 = sadd.s32 %s438, %s439
          %s441 = smul.addr %s440, 8
          %s442 = scalar_lea.vmem %s0, %s441
          %s443 = smul.u32 16, %s32
          %s444 = ssub.s32 25, %s443
          %p445 = scmp.lt.s32.totalorder %s444, 16
          %s446 = scalar_select %p445, %s444, 16
          %s447 = smul.u32 128, %s446
        $region68: #{tpu_custom_call.1} parent=63 // pred_fallthru
          _
      $region64: #{tpu_custom_call.1} parent=5 // pred_fallthru
        _
      %p448 = scmp.le.s32.totalorder 1, %s24
      %p449 = scmp.lt.s32.totalorder %s24, 5
      %p450 = pnand %p448, %p449
      %p451 = pneg %p450
      // Predicated region
      $region69: #{tpu_custom_call.1} parent=5 // pred_check
        _
      $region70: #{tpu_custom_call.1} parent=5 // pred_check_branch
        %453 = sbr.rel (%p450) target = $region72
      $region71: #{tpu_custom_call.1} parent=5 // pred_region
        %s454 = ssub.s32 %s24, 1
        // Predicated region
        $region73: #{tpu_custom_call.1} parent=71 // pred_check
          %p455 = pneg %p169
        $region74: #{tpu_custom_call.1} parent=71 // pred_check_branch
          %457 = sbr.rel (%p455) target = $region76
        $region75: #{tpu_custom_call.1} parent=71 // pred_region
          %458 = dma.done [#allocation4], 8192
        $region76: #{tpu_custom_call.1} parent=71 // pred_fallthru
          _
        // Predicated region
        $region77: #{tpu_custom_call.1} parent=71 // pred_check
          %p459 = pneg %p211
        $region78: #{tpu_custom_call.1} parent=71 // pred_check_branch
          %461 = sbr.rel (%p459) target = $region80
        $region79: #{tpu_custom_call.1} parent=71 // pred_region
          %462 = dma.done [#allocation7], 32768
        $region80: #{tpu_custom_call.1} parent=71 // pred_fallthru
          _
        // Predicated region
        $region81: #{tpu_custom_call.1} parent=71 // pred_check
          %p463 = pneg %p253
        $region82: #{tpu_custom_call.1} parent=71 // pred_check_branch
          %465 = sbr.rel (%p463) target = $region84
        $region83: #{tpu_custom_call.1} parent=71 // pred_region
          %466 = dma.done [#allocation7], 8192
        $region84: #{tpu_custom_call.1} parent=71 // pred_fallthru
          _
        %s467 = smul.u32 16, %s34
        %s468 = ssub.s32 25, %s467
        %p469 = scmp.lt.s32.totalorder %s468, 16
        %s470 = scalar_select %p469, %s468, 16
        %s471 = smul.u32 128, %s470
        %p472 = scmp.lt.s32.totalorder %s33, 1
        %s473 = scalar_select %p472, %s33, 1
        %p474 = scmp.lt.s32.totalorder %s467, 24
        %s475 = scalar_select %p474, %s467, 24
        %s476 = smul.addr %s473, 25
        %s477 = sadd.s32 %s475, %s476
        %s478 = smul.addr %s477, 8
        %s479 = scalar_lea.vmem %s0, %s478
        %p480 = pneg %p64
        %p481 = pneg %p61
        %p482 = pneg %p85
        %p483 = pneg %p82
        %p484 = pneg %p106
        %p485 = pneg %p103
        %p486 = pneg %p127
        %p487 = pneg %p124
        %p488 = pneg %p148
        %p489 = pneg %p145
        %p490 = pneg %p169
        %p491 = pneg %p166
        %p492 = pneg %p190
        %p493 = pneg %p187
        %p494 = pneg %p211
        %p495 = pneg %p208
        %p496 = pneg %p232
        %p497 = pneg %p229
        %p498 = pneg %p253
        %p499 = pneg %p250
        %p500 = pneg %p274
        %p501 = pneg %p271
        %p502 = pneg %p295
        %p503 = pneg %p292
        %p504 = pneg %p316
        %p505 = pneg %p313
        %p506 = pneg %p342
        %p507 = pneg %p339
        %s508 = sand.u32 %s329, 1
        %s509 = scalar_lea.sflag [#allocation5], %s508
        %s510 = sand.u32 %s329, 1
        %s511 = smul.addr %s510, 2
        %s512 = scalar_lea.vmem [#allocation9], %s511
        %s513 = smul.u32 16, %s34
        %s514 = ssub.s32 25, %s513
        %p515 = scmp.lt.s32.totalorder %s514, 16
        %s516 = scalar_select %p515, %s514, 16
        %s517 = smul.u32 128, %s516
        %p518 = scmp.lt.s32.totalorder %s33, 1
        %s519 = scalar_select %p518, %s33, 1
        %p520 = scmp.lt.s32.totalorder %s513, 24
        %s521 = scalar_select %p520, %s513, 24
        %s522 = smul.addr %s519, 25
        %s523 = sadd.s32 %s521, %s522
        %s524 = smul.addr %s523, 8
        %s525 = scalar_lea.vmem %s0, %s524
        %s526 = smul.u32 16, %s34
        %s527 = ssub.s32 25, %s526
        %p528 = scmp.lt.s32.totalorder %s527, 16
        %s529 = scalar_select %p528, %s527, 16
        %s530 = smul.u32 128, %s529
        %p532 = scmp.eq.s32.totalorder %s34, 0
        // Predicated region
        $region85: #{tpu_custom_call.1} parent=71 // pred_check
          %p533 = pneg %p532
        $region86: #{tpu_custom_call.1} parent=71 // pred_check_branch
          %535 = sbr.rel (%p533) target = $region88
        $region87: #{tpu_custom_call.1} parent=71 // pred_region
          %536 = vst [vmem:[#allocation2] sm:$0xff] 0.0
        $region88: #{tpu_custom_call.1} parent=71 // pred_fallthru
          _
        %v537 = vld [vmem:[%s525] sm:$0xff]
        %v538 = vld [vmem:[%s525 + $0x8] sm:$0xff]
        %v539 = vld [vmem:[%s525 + $0x10] sm:$0xff]
        %v540 = vld [vmem:[%s525 + $0x18] sm:$0xff]
        %v541 = vld [vmem:[%s525 + $0x20] sm:$0xff]
        %v542 = vld [vmem:[%s525 + $0x28] sm:$0xff]
        %v543 = vld [vmem:[%s525 + $0x30] sm:$0xff]
        %v544 = vld [vmem:[%s525 + $0x38] sm:$0xff]
        %v545 = vld [vmem:[%s525 + $0x40] sm:$0xff]
        %v546 = vld [vmem:[%s525 + $0x48] sm:$0xff]
        %v547 = vld [vmem:[%s525 + $0x50] sm:$0xff]
        %v548 = vld [vmem:[%s525 + $0x58] sm:$0xff]
        %v549 = vld [vmem:[%s525 + $0x60] sm:$0xff]
        %v550 = vld [vmem:[%s525 + $0x68] sm:$0xff]
        %v551 = vld [vmem:[%s525 + $0x70] sm:$0xff]
        %v552 = vld [vmem:[%s525 + $0x78] sm:$0xff]
        %v553 = vpack.c.bf16 %v538, %v537
        %v554 = vpack.c.bf16 %v540, %v539
        %v555 = vpack.c.bf16 %v542, %v541
        %v556 = vpack.c.bf16 %v544, %v543
        %v557 = vpack.c.bf16 %v546, %v545
        %v558 = vpack.c.bf16 %v548, %v547
        %v559 = vpack.c.bf16 %v550, %v549
        %v560 = vpack.c.bf16 %v552, %v551
        %v561 = vld [vmem:[%s1] sm:$0xf]
        %v562 = vld [vmem:[%s1 + $0x4] sm:$0xf]
        %v563 = vld [vmem:[%s2] sm:$0x1]
        %v565 = vlaneseq
        %v566 = vshrl.u32 %v565, 7
        %v567 = vsub.s32 0, %v566
        %v568 = vrot.slane %v563, %v567
        %v572 = vunpack.c.l.b16 %v561
        %v573 = vunpack.c.l.b16 %v562
        %v574 = vpack.c.b16 %v573, %v572
        %vm576 = vcmask 130048
        %v578 = vsel %vm576, %v553, 0
        %v581 = vsel %vm576, %v554, 0
        %v584 = vsel %vm576, %v555, 0
        %v587 = vsel %vm576, %v556, 0
        %v590 = vsel %vm576, %v557, 0
        %v593 = vsel %vm576, %v558, 0
        %v596 = vsel %vm576, %v559, 0
        %v599 = vsel %vm576, %v560, 0
        %601 = vmatprep.subr.bf16.mxu0 0
        %602 = vmatpush1.bf16.msra.mxu0 %v574
        %603 = vmatprep.subr.bf16.mxu0 0
        %604 = vmatpush1.bf16.msra.mxu0 0
        %605 = vmatprep.subr.bf16.mxu0 0
        %606 = vmatpush1.bf16.msra.mxu0 0
        %607 = vmatprep.subr.bf16.mxu0 0
        %608 = vmatpush1.bf16.msra.mxu0 0
        %609 = vmatprep.subr.bf16.mxu0 0
        %610 = vmatpush1.bf16.msra.mxu0 0
        %611 = vmatprep.subr.bf16.mxu0 0
        %612 = vmatpush1.bf16.msra.mxu0 0
        %613 = vmatprep.subr.bf16.mxu0 0
        %614 = vmatpush1.bf16.msra.mxu0 0
        %615 = vmatprep.subr.bf16.mxu0 0
        %616 = vmatpush1.bf16.msra.mxu0 0
        %617 = vmatprep.subr.bf16.mxu0 0
        %618 = vmatpush1.bf16.msra.mxu0 0
        %619 = vmatprep.subr.bf16.mxu0 0
        %620 = vmatpush1.bf16.msra.mxu0 0
        %621 = vmatprep.subr.bf16.mxu0 0
        %622 = vmatpush1.bf16.msra.mxu0 0
        %623 = vmatprep.subr.bf16.mxu0 0
        %624 = vmatpush1.bf16.msra.mxu0 0
        %625 = vmatprep.subr.bf16.mxu0 0
        %626 = vmatpush1.bf16.msra.mxu0 0
        %627 = vmatprep.subr.bf16.mxu0 0
        %628 = vmatpush1.bf16.msra.mxu0 0
        %629 = vmatprep.subr.bf16.mxu0 0
        %630 = vmatpush1.bf16.msra.mxu0 0
        %631 = vmatprep.subr.bf16.mxu0 0
        %632 = vmatpush1.bf16.msra.mxu0 0
        %633 = vmatprep.mubr.bf16.mxu0 0
        %634 = vmatmul.mubr.bf16.gmra.mrb[0].mxu0 %v578
        %v635 = vpop.f32.mrb[0].mxu0
        %v636 = vadd.f32 %v568, %v635
        %v637 = vpop.f32.mrb[0].mxu0
        %v638 = vpop.f32.mrb[0].mxu0
        %v639 = vadd.f32 %v568, %v638
        %v640 = vpop.f32.mrb[0].mxu0
        %641 = vmatprep.mubr.bf16.mxu0 0
        %642 = vmatmul.mubr.bf16.gmra.mrb[0].mxu0 %v581
        %v643 = vpop.f32.mrb[0].mxu0
        %v644 = vadd.f32 %v568, %v643
        %v645 = vpop.f32.mrb[0].mxu0
        %v646 = vpop.f32.mrb[0].mxu0
        %v647 = vadd.f32 %v568, %v646
        %v648 = vpop.f32.mrb[0].mxu0
        %649 = vmatprep.mubr.bf16.mxu0 0
        %650 = vmatmul.mubr.bf16.gmra.mrb[0].mxu0 %v584
        %v651 = vpop.f32.mrb[0].mxu0
        %v652 = vadd.f32 %v568, %v651
        %v653 = vpop.f32.mrb[0].mxu0
        %v654 = vpop.f32.mrb[0].mxu0
        %v655 = vadd.f32 %v568, %v654
        %v656 = vpop.f32.mrb[0].mxu0
        %657 = vmatprep.mubr.bf16.mxu0 0
        %658 = vmatmul.mubr.bf16.gmra.mrb[0].mxu0 %v587
        %v659 = vpop.f32.mrb[0].mxu0
        %v660 = vadd.f32 %v568, %v659
        %v661 = vpop.f32.mrb[0].mxu0
        %v662 = vpop.f32.mrb[0].mxu0
        %v663 = vadd.f32 %v568, %v662
        %v664 = vpop.f32.mrb[0].mxu0
        %665 = vmatprep.mubr.bf16.mxu0 0
        %666 = vmatmul.mubr.bf16.gmra.mrb[0].mxu0 %v590
        %v667 = vpop.f32.mrb[0].mxu0
        %v668 = vadd.f32 %v568, %v667
        %v669 = vpop.f32.mrb[0].mxu0
        %v670 = vpop.f32.mrb[0].mxu0
        %v671 = vadd.f32 %v568, %v670
        %v672 = vpop.f32.mrb[0].mxu0
        %673 = vmatprep.mubr.bf16.mxu0 0
        %674 = vmatmul.mubr.bf16.gmra.mrb[0].mxu0 %v593
        %v675 = vpop.f32.mrb[0].mxu0
        %v676 = vadd.f32 %v568, %v675
        %v677 = vpop.f32.mrb[0].mxu0
        %v678 = vpop.f32.mrb[0].mxu0
        %v679 = vadd.f32 %v568, %v678
        %v680 = vpop.f32.mrb[0].mxu0
        %681 = vmatprep.mubr.bf16.mxu0 0
        %682 = vmatmul.mubr.bf16.gmra.mrb[0].mxu0 %v596
        %v683 = vpop.f32.mrb[0].mxu0
        %v684 = vadd.f32 %v568, %v683
        %v685 = vpop.f32.mrb[0].mxu0
        %v686 = vpop.f32.mrb[0].mxu0
        %v687 = vadd.f32 %v568, %v686
        %v688 = vpop.f32.mrb[0].mxu0
        %689 = vmatprep.mubr.bf16.mxu0 0
        %690 = vmatmul.mubr.bf16.gmra.mrb[0].mxu0 %v599
        %v691 = vpop.f32.mrb[0].mxu0
        %v692 = vadd.f32 %v568, %v691
        %v693 = vpop.f32.mrb[0].mxu0
        %v694 = vpop.f32.mrb[0].mxu0
        %v695 = vadd.f32 %v568, %v694
        %v696 = vpop.f32.mrb[0].mxu0
        %697 = vdwg.mxu0
        %v698 = vmax.f32 %v636, 0.0
        %v699 = vmax.f32 %v639, 0.0
        %v700 = vmax.f32 %v644, 0.0
        %v701 = vmax.f32 %v647, 0.0
        %v702 = vmax.f32 %v652, 0.0
        %v703 = vmax.f32 %v655, 0.0
        %v704 = vmax.f32 %v660, 0.0
        %v705 = vmax.f32 %v663, 0.0
        %v706 = vmax.f32 %v668, 0.0
        %v707 = vmax.f32 %v671, 0.0
        %v708 = vmax.f32 %v676, 0.0
        %v709 = vmax.f32 %v679, 0.0
        %v710 = vmax.f32 %v684, 0.0
        %v711 = vmax.f32 %v687, 0.0
        %v712 = vmax.f32 %v692, 0.0
        %v713 = vmax.f32 %v695, 0.0
        %v714 = vpack.c.bf16 %v699, %v698
        %v715 = vpack.c.bf16 %v701, %v700
        %v716 = vpack.c.bf16 %v703, %v702
        %v717 = vpack.c.bf16 %v705, %v704
        %v718 = vpack.c.bf16 %v707, %v706
        %v719 = vpack.c.bf16 %v709, %v708
        %v720 = vpack.c.bf16 %v711, %v710
        %v721 = vpack.c.bf16 %v713, %v712
        %v722 = vld [vmem:[%s3] sm:$0xf]
        %v723 = vld [vmem:[%s3 + $0x4] sm:$0xf]
        %v724 = vld [vmem:[%s3 + $0x8] sm:$0xf]
        %v725 = vld [vmem:[%s3 + $0xc] sm:$0xf]
        %v726 = vld [vmem:[%s3 + $0x10] sm:$0xf]
        %v727 = vld [vmem:[%s3 + $0x14] sm:$0xf]
        %v728 = vld [vmem:[%s3 + $0x18] sm:$0xf]
        %v729 = vld [vmem:[%s3 + $0x1c] sm:$0xf]
        %v730 = vld [vmem:[%s4] sm:$0x1]
        %v732 = vlaneseq
        %v733 = vshrl.u32 %v732, 7
        %v734 = vsub.s32 0, %v733
        %v735 = vrot.slane %v730, %v734
        %v745 = vunpack.c.l.b16 %v722
        %v746 = vunpack.c.l.b16 %v723
        %v747 = vunpack.c.l.b16 %v724
        %v748 = vunpack.c.l.b16 %v725
        %v749 = vunpack.c.l.b16 %v726
        %v750 = vunpack.c.l.b16 %v727
        %v751 = vunpack.c.l.b16 %v728
        %v752 = vunpack.c.l.b16 %v729
        %v753 = vpack.c.b16 %v746, %v745
        %v754 = vpack.c.b16 %v748, %v747
        %v755 = vpack.c.b16 %v750, %v749
        %v756 = vpack.c.b16 %v752, %v751
        %vm761 = vcmask 523264
        %v763 = vsel %vm761, %v714, 0
        %v766 = vsel %vm761, %v715, 0
        %v769 = vsel %vm761, %v716, 0
        %v772 = vsel %vm761, %v717, 0
        %v775 = vsel %vm761, %v718, 0
        %v778 = vsel %vm761, %v719, 0
        %v781 = vsel %vm761, %v720, 0
        %v784 = vsel %vm761, %v721, 0
        %786 = vmatprep.subr.bf16.mxu0 0
        %787 = vmatpush1.bf16.msra.mxu0 %v753
        %788 = vmatprep.subr.bf16.mxu0 0
        %789 = vmatpush1.bf16.msra.mxu0 %v754
        %790 = vmatprep.subr.bf16.mxu0 0
        %791 = vmatpush1.bf16.msra.mxu0 %v755
        %792 = vmatprep.subr.bf16.mxu0 0
        %793 = vmatpush1.bf16.msra.mxu0 %v756
        %794 = vmatprep.subr.bf16.mxu0 0
        %795 = vmatpush1.bf16.msra.mxu0 0
        %796 = vmatprep.subr.bf16.mxu0 0
        %797 = vmatpush1.bf16.msra.mxu0 0
        %798 = vmatprep.subr.bf16.mxu0 0
        %799 = vmatpush1.bf16.msra.mxu0 0
        %800 = vmatprep.subr.bf16.mxu0 0
        %801 = vmatpush1.bf16.msra.mxu0 0
        %802 = vmatprep.subr.bf16.mxu0 0
        %803 = vmatpush1.bf16.msra.mxu0 0
        %804 = vmatprep.subr.bf16.mxu0 0
        %805 = vmatpush1.bf16.msra.mxu0 0
        %806 = vmatprep.subr.bf16.mxu0 0
        %807 = vmatpush1.bf16.msra.mxu0 0
        %808 = vmatprep.subr.bf16.mxu0 0
        %809 = vmatpush1.bf16.msra.mxu0 0
        %810 = vmatprep.subr.bf16.mxu0 0
        %811 = vmatpush1.bf16.msra.mxu0 0
        %812 = vmatprep.subr.bf16.mxu0 0
        %813 = vmatpush1.bf16.msra.mxu0 0
        %814 = vmatprep.subr.bf16.mxu0 0
        %815 = vmatpush1.bf16.msra.mxu0 0
        %816 = vmatprep.subr.bf16.mxu0 0
        %817 = vmatpush1.bf16.msra.mxu0 0
        %818 = vmatprep.mubr.bf16.mxu0 0
        %819 = vmatmul.mubr.bf16.gmra.mrb[0].mxu0 %v763
        %v820 = vpop.f32.mrb[0].mxu0
        %v821 = vadd.f32 %v735, %v820
        %v822 = vpop.f32.mrb[0].mxu0
        %v823 = vpop.f32.mrb[0].mxu0
        %v824 = vadd.f32 %v735, %v823
        %v825 = vpop.f32.mrb[0].mxu0
        %826 = vmatprep.mubr.bf16.mxu0 0
        %827 = vmatmul.mubr.bf16.gmra.mrb[0].mxu0 %v766
        %v828 = vpop.f32.mrb[0].mxu0
        %v829 = vadd.f32 %v735, %v828
        %v830 = vpop.f32.mrb[0].mxu0
        %v831 = vpop.f32.mrb[0].mxu0
        %v832 = vadd.f32 %v735, %v831
        %v833 = vpop.f32.mrb[0].mxu0
        %834 = vmatprep.mubr.bf16.mxu0 0
        %835 = vmatmul.mubr.bf16.gmra.mrb[0].mxu0 %v769
        %v836 = vpop.f32.mrb[0].mxu0
        %v837 = vadd.f32 %v735, %v836
        %v838 = vpop.f32.mrb[0].mxu0
        %v839 = vpop.f32.mrb[0].mxu0
        %v840 = vadd.f32 %v735, %v839
        %v841 = vpop.f32.mrb[0].mxu0
        %842 = vmatprep.mubr.bf16.mxu0 0
        %843 = vmatmul.mubr.bf16.gmra.mrb[0].mxu0 %v772
        %v844 = vpop.f32.mrb[0].mxu0
        %v845 = vadd.f32 %v735, %v844
        %v846 = vpop.f32.mrb[0].mxu0
        %v847 = vpop.f32.mrb[0].mxu0
        %v848 = vadd.f32 %v735, %v847
        %v849 = vpop.f32.mrb[0].mxu0
        %850 = vmatprep.mubr.bf16.mxu0 0
        %851 = vmatmul.mubr.bf16.gmra.mrb[0].mxu0 %v775
        %v852 = vpop.f32.mrb[0].mxu0
        %v853 = vadd.f32 %v735, %v852
        %v854 = vpop.f32.mrb[0].mxu0
        %v855 = vpop.f32.mrb[0].mxu0
        %v856 = vadd.f32 %v735, %v855
        %v857 = vpop.f32.mrb[0].mxu0
        %858 = vmatprep.mubr.bf16.mxu0 0
        %859 = vmatmul.mubr.bf16.gmra.mrb[0].mxu0 %v778
        %v860 = vpop.f32.mrb[0].mxu0
        %v861 = vadd.f32 %v735, %v860
        %v862 = vpop.f32.mrb[0].mxu0
        %v863 = vpop.f32.mrb[0].mxu0
        %v864 = vadd.f32 %v735, %v863
        %v865 = vpop.f32.mrb[0].mxu0
        %866 = vmatprep.mubr.bf16.mxu0 0
        %867 = vmatmul.mubr.bf16.gmra.mrb[0].mxu0 %v781
        %v868 = vpop.f32.mrb[0].mxu0
        %v869 = vadd.f32 %v735, %v868
        %v870 = vpop.f32.mrb[0].mxu0
        %v871 = vpop.f32.mrb[0].mxu0
        %v872 = vadd.f32 %v735, %v871
        %v873 = vpop.f32.mrb[0].mxu0
        %874 = vmatprep.mubr.bf16.mxu0 0
        %875 = vmatmul.mubr.bf16.gmra.mrb[0].mxu0 %v784
        %v876 = vpop.f32.mrb[0].mxu0
        %v877 = vadd.f32 %v735, %v876
        %v878 = vpop.f32.mrb[0].mxu0
        %v879 = vpop.f32.mrb[0].mxu0
        %v880 = vadd.f32 %v735, %v879
        %v881 = vpop.f32.mrb[0].mxu0
        %882 = vdwg.mxu0
        %v883 = vmax.f32 %v821, 0.0
        %v884 = vmax.f32 %v824, 0.0
        %v885 = vmax.f32 %v829, 0.0
        %v886 = vmax.f32 %v832, 0.0
        %v887 = vmax.f32 %v837, 0.0
        %v888 = vmax.f32 %v840, 0.0
        %v889 = vmax.f32 %v845, 0.0
        %v890 = vmax.f32 %v848, 0.0
        %v891 = vmax.f32 %v853, 0.0
        %v892 = vmax.f32 %v856, 0.0
        %v893 = vmax.f32 %v861, 0.0
        %v894 = vmax.f32 %v864, 0.0
        %v895 = vmax.f32 %v869, 0.0
        %v896 = vmax.f32 %v872, 0.0
        %v897 = vmax.f32 %v877, 0.0
        %v898 = vmax.f32 %v880, 0.0
        %v899 = vpack.c.bf16 %v884, %v883
        %v900 = vpack.c.bf16 %v886, %v885
        %v901 = vpack.c.bf16 %v888, %v887
        %v902 = vpack.c.bf16 %v890, %v889
        %v903 = vpack.c.bf16 %v892, %v891
        %v904 = vpack.c.bf16 %v894, %v893
        %v905 = vpack.c.bf16 %v896, %v895
        %v906 = vpack.c.bf16 %v898, %v897
        %v907 = vlaneseq
        %v908 = vshrl.u32 %v907, 7
        %v909 = vadd.s32 %v908, 8
        %v910 = vadd.s32 %v908, 16
        %v911 = vadd.s32 %v908, 24
        %v912 = vadd.s32 %v908, 32
        %v913 = vadd.s32 %v908, 40
        %v914 = vadd.s32 %v908, 48
        %v915 = vadd.s32 %v908, 56
        %v916 = vadd.s32 %v908, 64
        %v917 = vadd.s32 %v908, 72
        %v918 = vadd.s32 %v908, 80
        %v919 = vadd.s32 %v908, 88
        %v920 = vadd.s32 %v908, 96
        %v921 = vadd.s32 %v908, 104
        %v922 = vadd.s32 %v908, 112
        %v923 = vadd.s32 %v908, 120
        %s924 = smul.u32 %s34, 128
        %v925 = vstv %s924
        %v926 = vadd.s32 %v908, %v925
        %v927 = vadd.s32 %v909, %v925
        %v928 = vadd.s32 %v910, %v925
        %v929 = vadd.s32 %v911, %v925
        %v930 = vadd.s32 %v912, %v925
        %v931 = vadd.s32 %v913, %v925
        %v932 = vadd.s32 %v914, %v925
        %v933 = vadd.s32 %v915, %v925
        %v934 = vadd.s32 %v916, %v925
        %v935 = vadd.s32 %v917, %v925
        %v936 = vadd.s32 %v918, %v925
        %v937 = vadd.s32 %v919, %v925
        %v938 = vadd.s32 %v920, %v925
        %v939 = vadd.s32 %v921, %v925
        %v940 = vadd.s32 %v922, %v925
        %v941 = vadd.s32 %v923, %v925
        %vm942 = vcmp.lt.s32.totalorder %v926, 200
        %vm943 = vcmp.lt.s32.totalorder %v927, 200
        %vm944 = vcmp.lt.s32.totalorder %v928, 200
        %vm945 = vcmp.lt.s32.totalorder %v929, 200
        %vm946 = vcmp.lt.s32.totalorder %v930, 200
        %vm947 = vcmp.lt.s32.totalorder %v931, 200
        %vm948 = vcmp.lt.s32.totalorder %v932, 200
        %vm949 = vcmp.lt.s32.totalorder %v933, 200
        %vm950 = vcmp.lt.s32.totalorder %v934, 200
        %vm951 = vcmp.lt.s32.totalorder %v935, 200
        %vm952 = vcmp.lt.s32.totalorder %v936, 200
        %vm953 = vcmp.lt.s32.totalorder %v937, 200
        %vm954 = vcmp.lt.s32.totalorder %v938, 200
        %vm955 = vcmp.lt.s32.totalorder %v939, 200
        %vm956 = vcmp.lt.s32.totalorder %v940, 200
        %vm957 = vcmp.lt.s32.totalorder %v941, 200
        %v958 = vld [vmem:[#allocation3] sm:$0xff]
        %v959 = vld [vmem:[#allocation3 + $0x8] sm:$0xff]
        %v960 = vld [vmem:[#allocation3 + $0x20] sm:$0xff]
        %v961 = vld [vmem:[#allocation3 + $0x28] sm:$0xff]
        %v962 = vld [vmem:[#allocation3 + $0x40] sm:$0xff]
        %v963 = vld [vmem:[#allocation3 + $0x48] sm:$0xff]
        %v964 = vld [vmem:[#allocation3 + $0x60] sm:$0xff]
        %v965 = vld [vmem:[#allocation3 + $0x68] sm:$0xff]
        %v966 = vld [vmem:[#allocation3 + $0x80] sm:$0xff]
        %v967 = vld [vmem:[#allocation3 + $0x88] sm:$0xff]
        %v968 = vld [vmem:[#allocation3 + $0xa0] sm:$0xff]
        %v969 = vld [vmem:[#allocation3 + $0xa8] sm:$0xff]
        %v970 = vld [vmem:[#allocation3 + $0xc0] sm:$0xff]
        %v971 = vld [vmem:[#allocation3 + $0xc8] sm:$0xff]
        %v972 = vld [vmem:[#allocation3 + $0xe0] sm:$0xff]
        %v973 = vld [vmem:[#allocation3 + $0xe8] sm:$0xff]
        %v974 = vld [vmem:[#allocation3 + $0x100] sm:$0xff]
        %v975 = vld [vmem:[#allocation3 + $0x108] sm:$0xff]
        %v976 = vld [vmem:[#allocation3 + $0x120] sm:$0xff]
        %v977 = vld [vmem:[#allocation3 + $0x128] sm:$0xff]
        %v978 = vld [vmem:[#allocation3 + $0x140] sm:$0xff]
        %v979 = vld [vmem:[#allocation3 + $0x148] sm:$0xff]
        %v980 = vld [vmem:[#allocation3 + $0x160] sm:$0xff]
        %v981 = vld [vmem:[#allocation3 + $0x168] sm:$0xff]
        %v982 = vld [vmem:[#allocation3 + $0x180] sm:$0xff]
        %v983 = vld [vmem:[#allocation3 + $0x188] sm:$0xff]
        %v984 = vld [vmem:[#allocation3 + $0x1a0] sm:$0xff]
        %v985 = vld [vmem:[#allocation3 + $0x1a8] sm:$0xff]
        %v986 = vld [vmem:[#allocation3 + $0x1c0] sm:$0xff]
        %v987 = vld [vmem:[#allocation3 + $0x1c8] sm:$0xff]
        %v988 = vld [vmem:[#allocation3 + $0x1e0] sm:$0xff]
        %v989 = vld [vmem:[#allocation3 + $0x1e8] sm:$0xff]
        %v1022 = vunpack.c.l.b16 %v958
        %v1023 = vunpack.c.h.b16 %v958
        %v1024 = vunpack.c.l.b16 %v959
        %v1025 = vunpack.c.h.b16 %v959
        %v1026 = vunpack.c.l.b16 %v960
        %v1027 = vunpack.c.h.b16 %v960
        %v1028 = vunpack.c.l.b16 %v961
        %v1029 = vunpack.c.h.b16 %v961
        %v1030 = vunpack.c.l.b16 %v962
        %v1031 = vunpack.c.h.b16 %v962
        %v1032 = vunpack.c.l.b16 %v963
        %v1033 = vunpack.c.h.b16 %v963
        %v1034 = vunpack.c.l.b16 %v964
        %v1035 = vunpack.c.h.b16 %v964
        %v1036 = vunpack.c.l.b16 %v965
        %v1037 = vunpack.c.h.b16 %v965
        %v1038 = vunpack.c.l.b16 %v966
        %v1039 = vunpack.c.h.b16 %v966
        %v1040 = vunpack.c.l.b16 %v967
        %v1041 = vunpack.c.h.b16 %v967
        %v1042 = vunpack.c.l.b16 %v968
        %v1043 = vunpack.c.h.b16 %v968
        %v1044 = vunpack.c.l.b16 %v969
        %v1045 = vunpack.c.h.b16 %v969
        %v1046 = vunpack.c.l.b16 %v970
        %v1047 = vunpack.c.h.b16 %v970
        %v1048 = vunpack.c.l.b16 %v971
        %v1049 = vunpack.c.h.b16 %v971
        %v1050 = vunpack.c.l.b16 %v972
        %v1051 = vunpack.c.h.b16 %v972
        %v1052 = vunpack.c.l.b16 %v973
        %v1053 = vunpack.c.h.b16 %v973
        %v1054 = vunpack.c.l.b16 %v974
        %v1055 = vunpack.c.h.b16 %v974
        %v1056 = vunpack.c.l.b16 %v975
        %v1057 = vunpack.c.h.b16 %v975
        %v1058 = vunpack.c.l.b16 %v976
        %v1059 = vunpack.c.h.b16 %v976
        %v1060 = vunpack.c.l.b16 %v977
        %v1061 = vunpack.c.h.b16 %v977
        %v1062 = vunpack.c.l.b16 %v978
        %v1063 = vunpack.c.h.b16 %v978
        %v1064 = vunpack.c.l.b16 %v979
        %v1065 = vunpack.c.h.b16 %v979
        %v1066 = vunpack.c.l.b16 %v980
        %v1067 = vunpack.c.h.b16 %v980
        %v1068 = vunpack.c.l.b16 %v981
        %v1069 = vunpack.c.h.b16 %v981
        %v1070 = vunpack.c.l.b16 %v982
        %v1071 = vunpack.c.h.b16 %v982
        %v1072 = vunpack.c.l.b16 %v983
        %v1073 = vunpack.c.h.b16 %v983
        %v1074 = vunpack.c.l.b16 %v984
        %v1075 = vunpack.c.h.b16 %v984
        %v1076 = vunpack.c.l.b16 %v985
        %v1077 = vunpack.c.h.b16 %v985
        %v1078 = vunpack.c.l.b16 %v986
        %v1079 = vunpack.c.h.b16 %v986
        %v1080 = vunpack.c.l.b16 %v987
        %v1081 = vunpack.c.h.b16 %v987
        %v1082 = vunpack.c.l.b16 %v988
        %v1083 = vunpack.c.h.b16 %v988
        %v1084 = vunpack.c.l.b16 %v989
        %v1085 = vunpack.c.h.b16 %v989
        %v1086 = vpack.c.b16 %v1026, %v1022
        %v1087 = vpack.c.b16 %v1027, %v1023
        %v1088 = vpack.c.b16 %v1028, %v1024
        %v1089 = vpack.c.b16 %v1029, %v1025
        %v1090 = vpack.c.b16 %v1034, %v1030
        %v1091 = vpack.c.b16 %v1035, %v1031
        %v1092 = vpack.c.b16 %v1036, %v1032
        %v1093 = vpack.c.b16 %v1037, %v1033
        %v1094 = vpack.c.b16 %v1042, %v1038
        %v1095 = vpack.c.b16 %v1043, %v1039
        %v1096 = vpack.c.b16 %v1044, %v1040
        %v1097 = vpack.c.b16 %v1045, %v1041
        %v1098 = vpack.c.b16 %v1050, %v1046
        %v1099 = vpack.c.b16 %v1051, %v1047
        %v1100 = vpack.c.b16 %v1052, %v1048
        %v1101 = vpack.c.b16 %v1053, %v1049
        %v1102 = vpack.c.b16 %v1058, %v1054
        %v1103 = vpack.c.b16 %v1059, %v1055
        %v1104 = vpack.c.b16 %v1060, %v1056
        %v1105 = vpack.c.b16 %v1061, %v1057
        %v1106 = vpack.c.b16 %v1066, %v1062
        %v1107 = vpack.c.b16 %v1067, %v1063
        %v1108 = vpack.c.b16 %v1068, %v1064
        %v1109 = vpack.c.b16 %v1069, %v1065
        %v1110 = vpack.c.b16 %v1074, %v1070
        %v1111 = vpack.c.b16 %v1075, %v1071
        %v1112 = vpack.c.b16 %v1076, %v1072
        %v1113 = vpack.c.b16 %v1077, %v1073
        %v1114 = vpack.c.b16 %v1082, %v1078
        %v1115 = vpack.c.b16 %v1083, %v1079
        %v1116 = vpack.c.b16 %v1084, %v1080
        %v1117 = vpack.c.b16 %v1085, %v1081
        %1150 = vmatprep.subr.bf16.mxu0 %v1087
        %1151 = vmatpush1.bf16.msra.mxu0 %v1086
        %1152 = vmatprep.subr.bf16.mxu0 %v1091
        %1153 = vmatpush1.bf16.msra.mxu0 %v1090
        %1154 = vmatprep.subr.bf16.mxu0 %v1095
        %1155 = vmatpush1.bf16.msra.mxu0 %v1094
        %1156 = vmatprep.subr.bf16.mxu0 %v1099
        %1157 = vmatpush1.bf16.msra.mxu0 %v1098
        %1158 = vmatprep.subr.bf16.mxu0 %v1103
        %1159 = vmatpush1.bf16.msra.mxu0 %v1102
        %1160 = vmatprep.subr.bf16.mxu0 %v1107
        %1161 = vmatpush1.bf16.msra.mxu0 %v1106
        %1162 = vmatprep.subr.bf16.mxu0 %v1111
        %1163 = vmatpush1.bf16.msra.mxu0 %v1110
        %1164 = vmatprep.subr.bf16.mxu0 %v1115
        %1165 = vmatpush1.bf16.msra.mxu0 %v1114
        %1166 = vmatprep.subr.bf16.mxu0 0
        %1167 = vmatpush1.bf16.msra.mxu0 0
        %1168 = vmatprep.subr.bf16.mxu0 0
        %1169 = vmatpush1.bf16.msra.mxu0 0
        %1170 = vmatprep.subr.bf16.mxu0 0
        %1171 = vmatpush1.bf16.msra.mxu0 0
        %1172 = vmatprep.subr.bf16.mxu0 0
        %1173 = vmatpush1.bf16.msra.mxu0 0
        %1174 = vmatprep.subr.bf16.mxu0 0
        %1175 = vmatpush1.bf16.msra.mxu0 0
        %1176 = vmatprep.subr.bf16.mxu0 0
        %1177 = vmatpush1.bf16.msra.mxu0 0
        %1178 = vmatprep.subr.bf16.mxu0 0
        %1179 = vmatpush1.bf16.msra.mxu0 0
        %1180 = vmatprep.subr.bf16.mxu0 0
        %1181 = vmatpush1.bf16.msra.mxu0 0
        %1182 = vmatprep.mubr.bf16.mxu0 0
        %1183 = vmatmul.mubr.bf16.gmra.mrb[0].mxu0 %v899
        %v1184 = vpop.f32.mrb[0].mxu0
        %v1185 = vadd.f32 0.0, %v1184
        %v1186 = vpop.f32.mrb[0].mxu0
        %v1187 = vadd.f32 0.0, %v1186
        %v1188 = vpop.f32.mrb[0].mxu0
        %v1189 = vadd.f32 0.0, %v1188
        %v1190 = vpop.f32.mrb[0].mxu0
        %v1191 = vadd.f32 0.0, %v1190
        %1192 = vmatprep.mubr.bf16.mxu0 0
        %1193 = vmatmul.mubr.bf16.gmra.mrb[0].mxu0 %v900
        %v1194 = vpop.f32.mrb[0].mxu0
        %v1195 = vadd.f32 0.0, %v1194
        %v1196 = vpop.f32.mrb[0].mxu0
        %v1197 = vadd.f32 0.0, %v1196
        %v1198 = vpop.f32.mrb[0].mxu0
        %v1199 = vadd.f32 0.0, %v1198
        %v1200 = vpop.f32.mrb[0].mxu0
        %v1201 = vadd.f32 0.0, %v1200
        %1202 = vmatprep.mubr.bf16.mxu0 0
        %1203 = vmatmul.mubr.bf16.gmra.mrb[0].mxu0 %v901
        %v1204 = vpop.f32.mrb[0].mxu0
        %v1205 = vadd.f32 0.0, %v1204
        %v1206 = vpop.f32.mrb[0].mxu0
        %v1207 = vadd.f32 0.0, %v1206
        %v1208 = vpop.f32.mrb[0].mxu0
        %v1209 = vadd.f32 0.0, %v1208
        %v1210 = vpop.f32.mrb[0].mxu0
        %v1211 = vadd.f32 0.0, %v1210
        %1212 = vmatprep.mubr.bf16.mxu0 0
        %1213 = vmatmul.mubr.bf16.gmra.mrb[0].mxu0 %v902
        %v1214 = vpop.f32.mrb[0].mxu0
        %v1215 = vadd.f32 0.0, %v1214
        %v1216 = vpop.f32.mrb[0].mxu0
        %v1217 = vadd.f32 0.0, %v1216
        %v1218 = vpop.f32.mrb[0].mxu0
        %v1219 = vadd.f32 0.0, %v1218
        %v1220 = vpop.f32.mrb[0].mxu0
        %v1221 = vadd.f32 0.0, %v1220
        %1222 = vmatprep.mubr.bf16.mxu0 0
        %1223 = vmatmul.mubr.bf16.gmra.mrb[0].mxu0 %v903
        %v1224 = vpop.f32.mrb[0].mxu0
        %v1225 = vadd.f32 0.0, %v1224
        %v1226 = vpop.f32.mrb[0].mxu0
        %v1227 = vadd.f32 0.0, %v1226
        %v1228 = vpop.f32.mrb[0].mxu0
        %v1229 = vadd.f32 0.0, %v1228
        %v1230 = vpop.f32.mrb[0].mxu0
        %v1231 = vadd.f32 0.0, %v1230
        %1232 = vmatprep.mubr.bf16.mxu0 0
        %1233 = vmatmul.mubr.bf16.gmra.mrb[0].mxu0 %v904
        %v1234 = vpop.f32.mrb[0].mxu0
        %v1235 = vadd.f32 0.0, %v1234
        %v1236 = vpop.f32.mrb[0].mxu0
        %v1237 = vadd.f32 0.0, %v1236
        %v1238 = vpop.f32.mrb[0].mxu0
        %v1239 = vadd.f32 0.0, %v1238
        %v1240 = vpop.f32.mrb[0].mxu0
        %v1241 = vadd.f32 0.0, %v1240
        %1242 = vmatprep.mubr.bf16.mxu0 0
        %1243 = vmatmul.mubr.bf16.gmra.mrb[0].mxu0 %v905
        %v1244 = vpop.f32.mrb[0].mxu0
        %v1245 = vadd.f32 0.0, %v1244
        %v1246 = vpop.f32.mrb[0].mxu0
        %v1247 = vadd.f32 0.0, %v1246
        %v1248 = vpop.f32.mrb[0].mxu0
        %v1249 = vadd.f32 0.0, %v1248
        %v1250 = vpop.f32.mrb[0].mxu0
        %v1251 = vadd.f32 0.0, %v1250
        %1252 = vmatprep.mubr.bf16.mxu0 0
        %1253 = vmatmul.mubr.bf16.gmra.mrb[0].mxu0 %v906
        %v1254 = vpop.f32.mrb[0].mxu0
        %v1255 = vadd.f32 0.0, %v1254
        %v1256 = vpop.f32.mrb[0].mxu0
        %v1257 = vadd.f32 0.0, %v1256
        %v1258 = vpop.f32.mrb[0].mxu0
        %v1259 = vadd.f32 0.0, %v1258
        %v1260 = vpop.f32.mrb[0].mxu0
        %v1261 = vadd.f32 0.0, %v1260
        %1262 = vdwg.mxu0
        %1263 = vmatprep.subr.bf16.mxu0 %v1089
        %1264 = vmatpush1.bf16.msra.mxu0 %v1088
        %1265 = vmatprep.subr.bf16.mxu0 %v1093
        %1266 = vmatpush1.bf16.msra.mxu0 %v1092
        %1267 = vmatprep.subr.bf16.mxu0 %v1097
        %1268 = vmatpush1.bf16.msra.mxu0 %v1096
        %1269 = vmatprep.subr.bf16.mxu0 %v1101
        %1270 = vmatpush1.bf16.msra.mxu0 %v1100
        %1271 = vmatprep.subr.bf16.mxu0 %v1105
        %1272 = vmatpush1.bf16.msra.mxu0 %v1104
        %1273 = vmatprep.subr.bf16.mxu0 %v1109
        %1274 = vmatpush1.bf16.msra.mxu0 %v1108
        %1275 = vmatprep.subr.bf16.mxu0 %v1113
        %1276 = vmatpush1.bf16.msra.mxu0 %v1112
        %1277 = vmatprep.subr.bf16.mxu0 %v1117
        %1278 = vmatpush1.bf16.msra.mxu0 %v1116
        %1279 = vmatprep.subr.bf16.mxu0 0
        %1280 = vmatpush1.bf16.msra.mxu0 0
        %1281 = vmatprep.subr.bf16.mxu0 0
        %1282 = vmatpush1.bf16.msra.mxu0 0
        %1283 = vmatprep.subr.bf16.mxu0 0
        %1284 = vmatpush1.bf16.msra.mxu0 0
        %1285 = vmatprep.subr.bf16.mxu0 0
        %1286 = vmatpush1.bf16.msra.mxu0 0
        %1287 = vmatprep.subr.bf16.mxu0 0
        %1288 = vmatpush1.bf16.msra.mxu0 0
        %1289 = vmatprep.subr.bf16.mxu0 0
        %1290 = vmatpush1.bf16.msra.mxu0 0
        %1291 = vmatprep.subr.bf16.mxu0 0
        %1292 = vmatpush1.bf16.msra.mxu0 0
        %1293 = vmatprep.subr.bf16.mxu0 0
        %1294 = vmatpush1.bf16.msra.mxu0 0
        %1295 = vmatprep.mubr.bf16.mxu0 0
        %1296 = vmatmul.mubr.bf16.gmra.mrb[0].mxu0 %v899
        %v1297 = vpop.f32.mrb[0].mxu0
        %v1298 = vadd.f32 0.0, %v1297
        %v1299 = vpop.f32.mrb[0].mxu0
        %v1300 = vadd.f32 0.0, %v1299
        %v1301 = vpop.f32.mrb[0].mxu0
        %v1302 = vadd.f32 0.0, %v1301
        %v1303 = vpop.f32.mrb[0].mxu0
        %v1304 = vadd.f32 0.0, %v1303
        %1305 = vmatprep.mubr.bf16.mxu0 0
        %1306 = vmatmul.mubr.bf16.gmra.mrb[0].mxu0 %v900
        %v1307 = vpop.f32.mrb[0].mxu0
        %v1308 = vadd.f32 0.0, %v1307
        %v1309 = vpop.f32.mrb[0].mxu0
        %v1310 = vadd.f32 0.0, %v1309
        %v1311 = vpop.f32.mrb[0].mxu0
        %v1312 = vadd.f32 0.0, %v1311
        %v1313 = vpop.f32.mrb[0].mxu0
        %v1314 = vadd.f32 0.0, %v1313
        %1315 = vmatprep.mubr.bf16.mxu0 0
        %1316 = vmatmul.mubr.bf16.gmra.mrb[0].mxu0 %v901
        %v1317 = vpop.f32.mrb[0].mxu0
        %v1318 = vadd.f32 0.0, %v1317
        %v1319 = vpop.f32.mrb[0].mxu0
        %v1320 = vadd.f32 0.0, %v1319
        %v1321 = vpop.f32.mrb[0].mxu0
        %v1322 = vadd.f32 0.0, %v1321
        %v1323 = vpop.f32.mrb[0].mxu0
        %v1324 = vadd.f32 0.0, %v1323
        %1325 = vmatprep.mubr.bf16.mxu0 0
        %1326 = vmatmul.mubr.bf16.gmra.mrb[0].mxu0 %v902
        %v1327 = vpop.f32.mrb[0].mxu0
        %v1328 = vadd.f32 0.0, %v1327
        %v1329 = vpop.f32.mrb[0].mxu0
        %v1330 = vadd.f32 0.0, %v1329
        %v1331 = vpop.f32.mrb[0].mxu0
        %v1332 = vadd.f32 0.0, %v1331
        %v1333 = vpop.f32.mrb[0].mxu0
        %v1334 = vadd.f32 0.0, %v1333
        %1335 = vmatprep.mubr.bf16.mxu0 0
        %1336 = vmatmul.mubr.bf16.gmra.mrb[0].mxu0 %v903
        %v1337 = vpop.f32.mrb[0].mxu0
        %v1338 = vadd.f32 0.0, %v1337
        %v1339 = vpop.f32.mrb[0].mxu0
        %v1340 = vadd.f32 0.0, %v1339
        %v1341 = vpop.f32.mrb[0].mxu0
        %v1342 = vadd.f32 0.0, %v1341
        %v1343 = vpop.f32.mrb[0].mxu0
        %v1344 = vadd.f32 0.0, %v1343
        %1345 = vmatprep.mubr.bf16.mxu0 0
        %1346 = vmatmul.mubr.bf16.gmra.mrb[0].mxu0 %v904
        %v1347 = vpop.f32.mrb[0].mxu0
        %v1348 = vadd.f32 0.0, %v1347
        %v1349 = vpop.f32.mrb[0].mxu0
        %v1350 = vadd.f32 0.0, %v1349
        %v1351 = vpop.f32.mrb[0].mxu0
        %v1352 = vadd.f32 0.0, %v1351
        %v1353 = vpop.f32.mrb[0].mxu0
        %v1354 = vadd.f32 0.0, %v1353
        %1355 = vmatprep.mubr.bf16.mxu0 0
        %1356 = vmatmul.mubr.bf16.gmra.mrb[0].mxu0 %v905
        %v1357 = vpop.f32.mrb[0].mxu0
        %v1358 = vadd.f32 0.0, %v1357
        %v1359 = vpop.f32.mrb[0].mxu0
        %v1360 = vadd.f32 0.0, %v1359
        %v1361 = vpop.f32.mrb[0].mxu0
        %v1362 = vadd.f32 0.0, %v1361
        %v1363 = vpop.f32.mrb[0].mxu0
        %v1364 = vadd.f32 0.0, %v1363
        %1365 = vmatprep.mubr.bf16.mxu0 0
        %1366 = vmatmul.mubr.bf16.gmra.mrb[0].mxu0 %v906
        %v1367 = vpop.f32.mrb[0].mxu0
        %v1368 = vadd.f32 0.0, %v1367
        %v1369 = vpop.f32.mrb[0].mxu0
        %v1370 = vadd.f32 0.0, %v1369
        %v1371 = vpop.f32.mrb[0].mxu0
        %v1372 = vadd.f32 0.0, %v1371
        %v1373 = vpop.f32.mrb[0].mxu0
        %v1374 = vadd.f32 0.0, %v1373
        %1375 = vdwg.mxu0
        %v1376 = vsel %vm942, 1, 0
        %v1377 = vsel %vm943, 1, 0
        %v1378 = vsel %vm944, 1, 0
        %v1379 = vsel %vm945, 1, 0
        %v1380 = vsel %vm946, 1, 0
        %v1381 = vsel %vm947, 1, 0
        %v1382 = vsel %vm948, 1, 0
        %v1383 = vsel %vm949, 1, 0
        %v1384 = vsel %vm950, 1, 0
        %v1385 = vsel %vm951, 1, 0
        %v1386 = vsel %vm952, 1, 0
        %v1387 = vsel %vm953, 1, 0
        %v1388 = vsel %vm954, 1, 0
        %v1389 = vsel %vm955, 1, 0
        %v1390 = vsel %vm956, 1, 0
        %v1391 = vsel %vm957, 1, 0
        %vm1392 = vcmp.eq.s32.totalorder %v1376, 1
        %vm1393 = vcmp.eq.s32.totalorder %v1377, 1
        %vm1394 = vcmp.eq.s32.totalorder %v1378, 1
        %vm1395 = vcmp.eq.s32.totalorder %v1379, 1
        %vm1396 = vcmp.eq.s32.totalorder %v1380, 1
        %vm1397 = vcmp.eq.s32.totalorder %v1381, 1
        %vm1398 = vcmp.eq.s32.totalorder %v1382, 1
        %vm1399 = vcmp.eq.s32.totalorder %v1383, 1
        %vm1400 = vcmp.eq.s32.totalorder %v1384, 1
        %vm1401 = vcmp.eq.s32.totalorder %v1385, 1
        %vm1402 = vcmp.eq.s32.totalorder %v1386, 1
        %vm1403 = vcmp.eq.s32.totalorder %v1387, 1
        %vm1404 = vcmp.eq.s32.totalorder %v1388, 1
        %vm1405 = vcmp.eq.s32.totalorder %v1389, 1
        %vm1406 = vcmp.eq.s32.totalorder %v1390, 1
        %vm1407 = vcmp.eq.s32.totalorder %v1391, 1
        %v1408 = vsel %vm1392, %v1185, -inf
        %v1409 = vsel %vm1392, %v1187, -inf
        %v1410 = vsel %vm1392, %v1298, -inf
        %v1411 = vsel %vm1392, %v1300, -inf
        %v1412 = vsel %vm1393, %v1189, -inf
        %v1413 = vsel %vm1393, %v1191, -inf
        %v1414 = vsel %vm1393, %v1302, -inf
        %v1415 = vsel %vm1393, %v1304, -inf
        %v1416 = vsel %vm1394, %v1195, -inf
        %v1417 = vsel %vm1394, %v1197, -inf
        %v1418 = vsel %vm1394, %v1308, -inf
        %v1419 = vsel %vm1394, %v1310, -inf
        %v1420 = vsel %vm1395, %v1199, -inf
        %v1421 = vsel %vm1395, %v1201, -inf
        %v1422 = vsel %vm1395, %v1312, -inf
        %v1423 = vsel %vm1395, %v1314, -inf
        %v1424 = vsel %vm1396, %v1205, -inf
        %v1425 = vsel %vm1396, %v1207, -inf
        %v1426 = vsel %vm1396, %v1318, -inf
        %v1427 = vsel %vm1396, %v1320, -inf
        %v1428 = vsel %vm1397, %v1209, -inf
        %v1429 = vsel %vm1397, %v1211, -inf
        %v1430 = vsel %vm1397, %v1322, -inf
        %v1431 = vsel %vm1397, %v1324, -inf
        %v1432 = vsel %vm1398, %v1215, -inf
        %v1433 = vsel %vm1398, %v1217, -inf
        %v1434 = vsel %vm1398, %v1328, -inf
        %v1435 = vsel %vm1398, %v1330, -inf
        %v1436 = vsel %vm1399, %v1219, -inf
        %v1437 = vsel %vm1399, %v1221, -inf
        %v1438 = vsel %vm1399, %v1332, -inf
        %v1439 = vsel %vm1399, %v1334, -inf
        %v1440 = vsel %vm1400, %v1225, -inf
        %v1441 = vsel %vm1400, %v1227, -inf
        %v1442 = vsel %vm1400, %v1338, -inf
        %v1443 = vsel %vm1400, %v1340, -inf
        %v1444 = vsel %vm1401, %v1229, -inf
        %v1445 = vsel %vm1401, %v1231, -inf
        %v1446 = vsel %vm1401, %v1342, -inf
        %v1447 = vsel %vm1401, %v1344, -inf
        %v1448 = vsel %vm1402, %v1235, -inf
        %v1449 = vsel %vm1402, %v1237, -inf
        %v1450 = vsel %vm1402, %v1348, -inf
        %v1451 = vsel %vm1402, %v1350, -inf
        %v1452 = vsel %vm1403, %v1239, -inf
        %v1453 = vsel %vm1403, %v1241, -inf
        %v1454 = vsel %vm1403, %v1352, -inf
        %v1455 = vsel %vm1403, %v1354, -inf
        %v1456 = vsel %vm1404, %v1245, -inf
        %v1457 = vsel %vm1404, %v1247, -inf
        %v1458 = vsel %vm1404, %v1358, -inf
        %v1459 = vsel %vm1404, %v1360, -inf
        %v1460 = vsel %vm1405, %v1249, -inf
        %v1461 = vsel %vm1405, %v1251, -inf
        %v1462 = vsel %vm1405, %v1362, -inf
        %v1463 = vsel %vm1405, %v1364, -inf
        %v1464 = vsel %vm1406, %v1255, -inf
        %v1465 = vsel %vm1406, %v1257, -inf
        %v1466 = vsel %vm1406, %v1368, -inf
        %v1467 = vsel %vm1406, %v1370, -inf
        %v1468 = vsel %vm1407, %v1259, -inf
        %v1469 = vsel %vm1407, %v1261, -inf
        %v1470 = vsel %vm1407, %v1372, -inf
        %v1471 = vsel %vm1407, %v1374, -inf
        %v1472 = vmax.f32 %v1408, %v1412
        %v1473 = vmax.f32 %v1472, %v1416
        %v1474 = vmax.f32 %v1473, %v1420
        %v1475 = vmax.f32 %v1474, %v1424
        %v1476 = vmax.f32 %v1475, %v1428
        %v1477 = vmax.f32 %v1476, %v1432
        %v1478 = vmax.f32 %v1477, %v1436
        %v1479 = vmax.f32 %v1478, %v1440
        %v1480 = vmax.f32 %v1479, %v1444
        %v1481 = vmax.f32 %v1480, %v1448
        %v1482 = vmax.f32 %v1481, %v1452
        %v1483 = vmax.f32 %v1482, %v1456
        %v1484 = vmax.f32 %v1483, %v1460
        %v1485 = vmax.f32 %v1484, %v1464
        %v1486 = vmax.f32 %v1485, %v1468
        %v1487 = vrot.slane %v1486, 4
        %v1488 = vmax.f32 %v1486, %v1487
        %v1489 = vrot.slane %v1488, 2
        %v1490 = vmax.f32 %v1488, %v1489
        %v1491 = vrot.slane %v1490, 1
        %v1492 = vmax.f32 %v1490, %v1491
        %v1493 = vmax.f32 %v1409, %v1413
        %v1494 = vmax.f32 %v1493, %v1417
        %v1495 = vmax.f32 %v1494, %v1421
        %v1496 = vmax.f32 %v1495, %v1425
        %v1497 = vmax.f32 %v1496, %v1429
        %v1498 = vmax.f32 %v1497, %v1433
        %v1499 = vmax.f32 %v1498, %v1437
        %v1500 = vmax.f32 %v1499, %v1441
        %v1501 = vmax.f32 %v1500, %v1445
        %v1502 = vmax.f32 %v1501, %v1449
        %v1503 = vmax.f32 %v1502, %v1453
        %v1504 = vmax.f32 %v1503, %v1457
        %v1505 = vmax.f32 %v1504, %v1461
        %v1506 = vmax.f32 %v1505, %v1465
        %v1507 = vmax.f32 %v1506, %v1469
        %v1508 = vrot.slane %v1507, 4
        %v1509 = vmax.f32 %v1507, %v1508
        %v1510 = vrot.slane %v1509, 2
        %v1511 = vmax.f32 %v1509, %v1510
        %v1512 = vrot.slane %v1511, 1
        %v1513 = vmax.f32 %v1511, %v1512
        %v1514 = vmax.f32 %v1410, %v1414
        %v1515 = vmax.f32 %v1514, %v1418
        %v1516 = vmax.f32 %v1515, %v1422
        %v1517 = vmax.f32 %v1516, %v1426
        %v1518 = vmax.f32 %v1517, %v1430
        %v1519 = vmax.f32 %v1518, %v1434
        %v1520 = vmax.f32 %v1519, %v1438
        %v1521 = vmax.f32 %v1520, %v1442
        %v1522 = vmax.f32 %v1521, %v1446
        %v1523 = vmax.f32 %v1522, %v1450
        %v1524 = vmax.f32 %v1523, %v1454
        %v1525 = vmax.f32 %v1524, %v1458
        %v1526 = vmax.f32 %v1525, %v1462
        %v1527 = vmax.f32 %v1526, %v1466
        %v1528 = vmax.f32 %v1527, %v1470
        %v1529 = vrot.slane %v1528, 4
        %v1530 = vmax.f32 %v1528, %v1529
        %v1531 = vrot.slane %v1530, 2
        %v1532 = vmax.f32 %v1530, %v1531
        %v1533 = vrot.slane %v1532, 1
        %v1534 = vmax.f32 %v1532, %v1533
        %v1535 = vmax.f32 %v1411, %v1415
        %v1536 = vmax.f32 %v1535, %v1419
        %v1537 = vmax.f32 %v1536, %v1423
        %v1538 = vmax.f32 %v1537, %v1427
        %v1539 = vmax.f32 %v1538, %v1431
        %v1540 = vmax.f32 %v1539, %v1435
        %v1541 = vmax.f32 %v1540, %v1439
        %v1542 = vmax.f32 %v1541, %v1443
        %v1543 = vmax.f32 %v1542, %v1447
        %v1544 = vmax.f32 %v1543, %v1451
        %v1545 = vmax.f32 %v1544, %v1455
        %v1546 = vmax.f32 %v1545, %v1459
        %v1547 = vmax.f32 %v1546, %v1463
        %v1548 = vmax.f32 %v1547, %v1467
        %v1549 = vmax.f32 %v1548, %v1471
        %v1550 = vrot.slane %v1549, 4
        %v1551 = vmax.f32 %v1549, %v1550
        %v1552 = vrot.slane %v1551, 2
        %v1553 = vmax.f32 %v1551, %v1552
        %v1554 = vrot.slane %v1553, 1
        %v1555 = vmax.f32 %v1553, %v1554
        %v1556 = vld [vmem:[%s6] sm:$0xf]
        %v1558 = vlaneseq
        %v1559 = vshrl.u32 %v1558, 7
        %v1560 = vsub.s32 0, %v1559
        %v1561 = vrot.slane %v1556, %v1560
        %v1562 = vlaneseq
        %v1563 = vshrl.u32 %v1562, 7
        %v1564 = vsub.s32 1, %v1563
        %v1565 = vrot.slane %v1556, %v1564
        %v1566 = vlaneseq
        %v1567 = vshrl.u32 %v1566, 7
        %v1568 = vsub.s32 2, %v1567
        %v1569 = vrot.slane %v1556, %v1568
        %v1570 = vlaneseq
        %v1571 = vshrl.u32 %v1570, 7
        %v1572 = vsub.s32 3, %v1571
        %v1573 = vrot.slane %v1556, %v1572
        %v1578 = vadd.f32 %v1492, %v1561
        %v1579 = vadd.f32 %v1513, %v1565
        %v1580 = vadd.f32 %v1534, %v1569
        %v1581 = vadd.f32 %v1555, %v1573
        %v1582 = vmax.f32 %v1578, 0.0
        %v1583 = vmax.f32 %v1579, 0.0
        %v1584 = vmax.f32 %v1580, 0.0
        %v1585 = vmax.f32 %v1581, 0.0
        %v1586 = vld [vmem:[#allocation2] sm:$0xf]
        %v1591 = vcombine.low %v1582, %v1583
        %v1592 = vcombine.low %v1584, %v1585
        %v1594 = vunpack.c.l.s4 1966171168
        %v1595 = vunpack.c.0.s8 %v1594
        %v1596 = vlaneseq
        %v1597 = vshrl.u32 %v1596, 7
        %v1598 = vsub.s32 %v1595, %v1597
        %v1599 = vrot.slane %v1591, %v1598
        %v1601 = vunpack.c.l.s4 1966171168
        %v1602 = vunpack.c.0.s8 %v1601
        %v1603 = vlaneseq
        %v1604 = vshrl.u32 %v1603, 7
        %v1605 = vsub.s32 %v1602, %v1604
        %v1606 = vrot.slane %v1592, %v1605
        %v1607 = vcombine.low %v1599, %v1606
        %v1609 = vunpack.c.l.s4 1966171168
        %v1610 = vunpack.c.0.s8 %v1609
        %v1611 = vlaneseq
        %v1612 = vshrl.u32 %v1611, 7
        %v1613 = vsub.s32 %v1610, %v1612
        %v1614 = vrot.slane %v1607, %v1613
        %v1616 = vmax.f32 %v1586, %v1614
        %v1617 = vlaneseq
        %vm1618 = vcmp.ge.s32.totalorder %v1617, 0
        %vm1619 = vcmp.lt.s32.totalorder %v1617, 512
        %vm1620 = vmand %vm1618, %vm1619
        %1621 = vst.msk [vmem:[#allocation2] sm:$0xf] %vm1620, %v1616
        %v1622 = vld [vmem:[#allocation3 + $0x10] sm:$0xff]
        %v1623 = vld [vmem:[#allocation3 + $0x18] sm:$0xff]
        %v1624 = vld [vmem:[#allocation3 + $0x30] sm:$0xff]
        %v1625 = vld [vmem:[#allocation3 + $0x38] sm:$0xff]
        %v1626 = vld [vmem:[#allocation3 + $0x50] sm:$0xff]
        %v1627 = vld [vmem:[#allocation3 + $0x58] sm:$0xff]
        %v1628 = vld [vmem:[#allocation3 + $0x70] sm:$0xff]
        %v1629 = vld [vmem:[#allocation3 + $0x78] sm:$0xff]
        %v1630 = vld [vmem:[#allocation3 + $0x90] sm:$0xff]
        %v1631 = vld [vmem:[#allocation3 + $0x98] sm:$0xff]
        %v1632 = vld [vmem:[#allocation3 + $0xb0] sm:$0xff]
        %v1633 = vld [vmem:[#allocation3 + $0xb8] sm:$0xff]
        %v1634 = vld [vmem:[#allocation3 + $0xd0] sm:$0xff]
        %v1635 = vld [vmem:[#allocation3 + $0xd8] sm:$0xff]
        %v1636 = vld [vmem:[#allocation3 + $0xf0] sm:$0xff]
        %v1637 = vld [vmem:[#allocation3 + $0xf8] sm:$0xff]
        %v1638 = vld [vmem:[#allocation3 + $0x110] sm:$0xff]
        %v1639 = vld [vmem:[#allocation3 + $0x118] sm:$0xff]
        %v1640 = vld [vmem:[#allocation3 + $0x130] sm:$0xff]
        %v1641 = vld [vmem:[#allocation3 + $0x138] sm:$0xff]
        %v1642 = vld [vmem:[#allocation3 + $0x150] sm:$0xff]
        %v1643 = vld [vmem:[#allocation3 + $0x158] sm:$0xff]
        %v1644 = vld [vmem:[#allocation3 + $0x170] sm:$0xff]
        %v1645 = vld [vmem:[#allocation3 + $0x178] sm:$0xff]
        %v1646 = vld [vmem:[#allocation3 + $0x190] sm:$0xff]
        %v1647 = vld [vmem:[#allocation3 + $0x198] sm:$0xff]
        %v1648 = vld [vmem:[#allocation3 + $0x1b0] sm:$0xff]
        %v1649 = vld [vmem:[#allocation3 + $0x1b8] sm:$0xff]
        %v1650 = vld [vmem:[#allocation3 + $0x1d0] sm:$0xff]
        %v1651 = vld [vmem:[#allocation3 + $0x1d8] sm:$0xff]
        %v1652 = vld [vmem:[#allocation3 + $0x1f0] sm:$0xff]
        %v1653 = vld [vmem:[#allocation3 + $0x1f8] sm:$0xff]
        %v1686 = vunpack.c.l.b16 %v1622
        %v1687 = vunpack.c.h.b16 %v1622
        %v1688 = vunpack.c.l.b16 %v1623
        %v1689 = vunpack.c.h.b16 %v1623
        %v1690 = vunpack.c.l.b16 %v1624
        %v1691 = vunpack.c.h.b16 %v1624
        %v1692 = vunpack.c.l.b16 %v1625
        %v1693 = vunpack.c.h.b16 %v1625
        %v1694 = vunpack.c.l.b16 %v1626
        %v1695 = vunpack.c.h.b16 %v1626
        %v1696 = vunpack.c.l.b16 %v1627
        %v1697 = vunpack.c.h.b16 %v1627
        %v1698 = vunpack.c.l.b16 %v1628
        %v1699 = vunpack.c.h.b16 %v1628
        %v1700 = vunpack.c.l.b16 %v1629
        %v1701 = vunpack.c.h.b16 %v1629
        %v1702 = vunpack.c.l.b16 %v1630
        %v1703 = vunpack.c.h.b16 %v1630
        %v1704 = vunpack.c.l.b16 %v1631
        %v1705 = vunpack.c.h.b16 %v1631
        %v1706 = vunpack.c.l.b16 %v1632
        %v1707 = vunpack.c.h.b16 %v1632
        %v1708 = vunpack.c.l.b16 %v1633
        %v1709 = vunpack.c.h.b16 %v1633
        %v1710 = vunpack.c.l.b16 %v1634
        %v1711 = vunpack.c.h.b16 %v1634
        %v1712 = vunpack.c.l.b16 %v1635
        %v1713 = vunpack.c.h.b16 %v1635
        %v1714 = vunpack.c.l.b16 %v1636
        %v1715 = vunpack.c.h.b16 %v1636
        %v1716 = vunpack.c.l.b16 %v1637
        %v1717 = vunpack.c.h.b16 %v1637
        %v1718 = vunpack.c.l.b16 %v1638
        %v1719 = vunpack.c.h.b16 %v1638
        %v1720 = vunpack.c.l.b16 %v1639
        %v1721 = vunpack.c.h.b16 %v1639
        %v1722 = vunpack.c.l.b16 %v1640
        %v1723 = vunpack.c.h.b16 %v1640
        %v1724 = vunpack.c.l.b16 %v1641
        %v1725 = vunpack.c.h.b16 %v1641
        %v1726 = vunpack.c.l.b16 %v1642
        %v1727 = vunpack.c.h.b16 %v1642
        %v1728 = vunpack.c.l.b16 %v1643
        %v1729 = vunpack.c.h.b16 %v1643
        %v1730 = vunpack.c.l.b16 %v1644
        %v1731 = vunpack.c.h.b16 %v1644
        %v1732 = vunpack.c.l.b16 %v1645
        %v1733 = vunpack.c.h.b16 %v1645
        %v1734 = vunpack.c.l.b16 %v1646
        %v1735 = vunpack.c.h.b16 %v1646
        %v1736 = vunpack.c.l.b16 %v1647
        %v1737 = vunpack.c.h.b16 %v1647
        %v1738 = vunpack.c.l.b16 %v1648
        %v1739 = vunpack.c.h.b16 %v1648
        %v1740 = vunpack.c.l.b16 %v1649
        %v1741 = vunpack.c.h.b16 %v1649
        %v1742 = vunpack.c.l.b16 %v1650
        %v1743 = vunpack.c.h.b16 %v1650
        %v1744 = vunpack.c.l.b16 %v1651
        %v1745 = vunpack.c.h.b16 %v1651
        %v1746 = vunpack.c.l.b16 %v1652
        %v1747 = vunpack.c.h.b16 %v1652
        %v1748 = vunpack.c.l.b16 %v1653
        %v1749 = vunpack.c.h.b16 %v1653
        %v1750 = vpack.c.b16 %v1690, %v1686
        %v1751 = vpack.c.b16 %v1691, %v1687
        %v1752 = vpack.c.b16 %v1692, %v1688
        %v1753 = vpack.c.b16 %v1693, %v1689
        %v1754 = vpack.c.b16 %v1698, %v1694
        %v1755 = vpack.c.b16 %v1699, %v1695
        %v1756 = vpack.c.b16 %v1700, %v1696
        %v1757 = vpack.c.b16 %v1701, %v1697
        %v1758 = vpack.c.b16 %v1706, %v1702
        %v1759 = vpack.c.b16 %v1707, %v1703
        %v1760 = vpack.c.b16 %v1708, %v1704
        %v1761 = vpack.c.b16 %v1709, %v1705
        %v1762 = vpack.c.b16 %v1714, %v1710
        %v1763 = vpack.c.b16 %v1715, %v1711
        %v1764 = vpack.c.b16 %v1716, %v1712
        %v1765 = vpack.c.b16 %v1717, %v1713
        %v1766 = vpack.c.b16 %v1722, %v1718
        %v1767 = vpack.c.b16 %v1723, %v1719
        %v1768 = vpack.c.b16 %v1724, %v1720
        %v1769 = vpack.c.b16 %v1725, %v1721
        %v1770 = vpack.c.b16 %v1730, %v1726
        %v1771 = vpack.c.b16 %v1731, %v1727
        %v1772 = vpack.c.b16 %v1732, %v1728
        %v1773 = vpack.c.b16 %v1733, %v1729
        %v1774 = vpack.c.b16 %v1738, %v1734
        %v1775 = vpack.c.b16 %v1739, %v1735
        %v1776 = vpack.c.b16 %v1740, %v1736
        %v1777 = vpack.c.b16 %v1741, %v1737
        %v1778 = vpack.c.b16 %v1746, %v1742
        %v1779 = vpack.c.b16 %v1747, %v1743
        %v1780 = vpack.c.b16 %v1748, %v1744
        %v1781 = vpack.c.b16 %v1749, %v1745
        %1814 = vmatprep.subr.bf16.mxu0 %v1751
        %1815 = vmatpush1.bf16.msra.mxu0 %v1750
        %1816 = vmatprep.subr.bf16.mxu0 %v1755
        %1817 = vmatpush1.bf16.msra.mxu0 %v1754
        %1818 = vmatprep.subr.bf16.mxu0 %v1759
        %1819 = vmatpush1.bf16.msra.mxu0 %v1758
        %1820 = vmatprep.subr.bf16.mxu0 %v1763
        %1821 = vmatpush1.bf16.msra.mxu0 %v1762
        %1822 = vmatprep.subr.bf16.mxu0 %v1767
        %1823 = vmatpush1.bf16.msra.mxu0 %v1766
        %1824 = vmatprep.subr.bf16.mxu0 %v1771
        %1825 = vmatpush1.bf16.msra.mxu0 %v1770
        %1826 = vmatprep.subr.bf16.mxu0 %v1775
        %1827 = vmatpush1.bf16.msra.mxu0 %v1774
        %1828 = vmatprep.subr.bf16.mxu0 %v1779
        %1829 = vmatpush1.bf16.msra.mxu0 %v1778
        %1830 = vmatprep.subr.bf16.mxu0 0
        %1831 = vmatpush1.bf16.msra.mxu0 0
        %1832 = vmatprep.subr.bf16.mxu0 0
        %1833 = vmatpush1.bf16.msra.mxu0 0
        %1834 = vmatprep.subr.bf16.mxu0 0
        %1835 = vmatpush1.bf16.msra.mxu0 0
        %1836 = vmatprep.subr.bf16.mxu0 0
        %1837 = vmatpush1.bf16.msra.mxu0 0
        %1838 = vmatprep.subr.bf16.mxu0 0
        %1839 = vmatpush1.bf16.msra.mxu0 0
        %1840 = vmatprep.subr.bf16.mxu0 0
        %1841 = vmatpush1.bf16.msra.mxu0 0
        %1842 = vmatprep.subr.bf16.mxu0 0
        %1843 = vmatpush1.bf16.msra.mxu0 0
        %1844 = vmatprep.subr.bf16.mxu0 0
        %1845 = vmatpush1.bf16.msra.mxu0 0
        %1846 = vmatprep.mubr.bf16.mxu0 0
        %1847 = vmatmul.mubr.bf16.gmra.mrb[0].mxu0 %v899
        %v1848 = vpop.f32.mrb[0].mxu0
        %v1849 = vadd.f32 0.0, %v1848
        %v1850 = vpop.f32.mrb[0].mxu0
        %v1851 = vadd.f32 0.0, %v1850
        %v1852 = vpop.f32.mrb[0].mxu0
        %v1853 = vadd.f32 0.0, %v1852
        %v1854 = vpop.f32.mrb[0].mxu0
        %v1855 = vadd.f32 0.0, %v1854
        %1856 = vmatprep.mubr.bf16.mxu0 0
        %1857 = vmatmul.mubr.bf16.gmra.mrb[0].mxu0 %v900
        %v1858 = vpop.f32.mrb[0].mxu0
        %v1859 = vadd.f32 0.0, %v1858
        %v1860 = vpop.f32.mrb[0].mxu0
        %v1861 = vadd.f32 0.0, %v1860
        %v1862 = vpop.f32.mrb[0].mxu0
        %v1863 = vadd.f32 0.0, %v1862
        %v1864 = vpop.f32.mrb[0].mxu0
        %v1865 = vadd.f32 0.0, %v1864
        %1866 = vmatprep.mubr.bf16.mxu0 0
        %1867 = vmatmul.mubr.bf16.gmra.mrb[0].mxu0 %v901
        %v1868 = vpop.f32.mrb[0].mxu0
        %v1869 = vadd.f32 0.0, %v1868
        %v1870 = vpop.f32.mrb[0].mxu0
        %v1871 = vadd.f32 0.0, %v1870
        %v1872 = vpop.f32.mrb[0].mxu0
        %v1873 = vadd.f32 0.0, %v1872
        %v1874 = vpop.f32.mrb[0].mxu0
        %v1875 = vadd.f32 0.0, %v1874
        %1876 = vmatprep.mubr.bf16.mxu0 0
        %1877 = vmatmul.mubr.bf16.gmra.mrb[0].mxu0 %v902
        %v1878 = vpop.f32.mrb[0].mxu0
        %v1879 = vadd.f32 0.0, %v1878
        %v1880 = vpop.f32.mrb[0].mxu0
        %v1881 = vadd.f32 0.0, %v1880
        %v1882 = vpop.f32.mrb[0].mxu0
        %v1883 = vadd.f32 0.0, %v1882
        %v1884 = vpop.f32.mrb[0].mxu0
        %v1885 = vadd.f32 0.0, %v1884
        %1886 = vmatprep.mubr.bf16.mxu0 0
        %1887 = vmatmul.mubr.bf16.gmra.mrb[0].mxu0 %v903
        %v1888 = vpop.f32.mrb[0].mxu0
        %v1889 = vadd.f32 0.0, %v1888
        %v1890 = vpop.f32.mrb[0].mxu0
        %v1891 = vadd.f32 0.0, %v1890
        %v1892 = vpop.f32.mrb[0].mxu0
        %v1893 = vadd.f32 0.0, %v1892
        %v1894 = vpop.f32.mrb[0].mxu0
        %v1895 = vadd.f32 0.0, %v1894
        %1896 = vmatprep.mubr.bf16.mxu0 0
        %1897 = vmatmul.mubr.bf16.gmra.mrb[0].mxu0 %v904
        %v1898 = vpop.f32.mrb[0].mxu0
        %v1899 = vadd.f32 0.0, %v1898
        %v1900 = vpop.f32.mrb[0].mxu0
        %v1901 = vadd.f32 0.0, %v1900
        %v1902 = vpop.f32.mrb[0].mxu0
        %v1903 = vadd.f32 0.0, %v1902
        %v1904 = vpop.f32.mrb[0].mxu0
        %v1905 = vadd.f32 0.0, %v1904
        %1906 = vmatprep.mubr.bf16.mxu0 0
        %1907 = vmatmul.mubr.bf16.gmra.mrb[0].mxu0 %v905
        %v1908 = vpop.f32.mrb[0].mxu0
        %v1909 = vadd.f32 0.0, %v1908
        %v1910 = vpop.f32.mrb[0].mxu0
        %v1911 = vadd.f32 0.0, %v1910
        %v1912 = vpop.f32.mrb[0].mxu0
        %v1913 = vadd.f32 0.0, %v1912
        %v1914 = vpop.f32.mrb[0].mxu0
        %v1915 = vadd.f32 0.0, %v1914
        %1916 = vmatprep.mubr.bf16.mxu0 0
        %1917 = vmatmul.mubr.bf16.gmra.mrb[0].mxu0 %v906
        %v1918 = vpop.f32.mrb[0].mxu0
        %v1919 = vadd.f32 0.0, %v1918
        %v1920 = vpop.f32.mrb[0].mxu0
        %v1921 = vadd.f32 0.0, %v1920
        %v1922 = vpop.f32.mrb[0].mxu0
        %v1923 = vadd.f32 0.0, %v1922
        %v1924 = vpop.f32.mrb[0].mxu0
        %v1925 = vadd.f32 0.0, %v1924
        %1926 = vdwg.mxu0
        %1927 = vmatprep.subr.bf16.mxu0 %v1753
        %1928 = vmatpush1.bf16.msra.mxu0 %v1752
        %1929 = vmatprep.subr.bf16.mxu0 %v1757
        %1930 = vmatpush1.bf16.msra.mxu0 %v1756
        %1931 = vmatprep.subr.bf16.mxu0 %v1761
        %1932 = vmatpush1.bf16.msra.mxu0 %v1760
        %1933 = vmatprep.subr.bf16.mxu0 %v1765
        %1934 = vmatpush1.bf16.msra.mxu0 %v1764
        %1935 = vmatprep.subr.bf16.mxu0 %v1769
        %1936 = vmatpush1.bf16.msra.mxu0 %v1768
        %1937 = vmatprep.subr.bf16.mxu0 %v1773
        %1938 = vmatpush1.bf16.msra.mxu0 %v1772
        %1939 = vmatprep.subr.bf16.mxu0 %v1777
        %1940 = vmatpush1.bf16.msra.mxu0 %v1776
        %1941 = vmatprep.subr.bf16.mxu0 %v1781
        %1942 = vmatpush1.bf16.msra.mxu0 %v1780
        %1943 = vmatprep.subr.bf16.mxu0 0
        %1944 = vmatpush1.bf16.msra.mxu0 0
        %1945 = vmatprep.subr.bf16.mxu0 0
        %1946 = vmatpush1.bf16.msra.mxu0 0
        %1947 = vmatprep.subr.bf16.mxu0 0
        %1948 = vmatpush1.bf16.msra.mxu0 0
        %1949 = vmatprep.subr.bf16.mxu0 0
        %1950 = vmatpush1.bf16.msra.mxu0 0
        %1951 = vmatprep.subr.bf16.mxu0 0
        %1952 = vmatpush1.bf16.msra.mxu0 0
        %1953 = vmatprep.subr.bf16.mxu0 0
        %1954 = vmatpush1.bf16.msra.mxu0 0
        %1955 = vmatprep.subr.bf16.mxu0 0
        %1956 = vmatpush1.bf16.msra.mxu0 0
        %1957 = vmatprep.subr.bf16.mxu0 0
        %1958 = vmatpush1.bf16.msra.mxu0 0
        %1959 = vmatprep.mubr.bf16.mxu0 0
        %1960 = vmatmul.mubr.bf16.gmra.mrb[0].mxu0 %v899
        %v1961 = vpop.f32.mrb[0].mxu0
        %v1962 = vadd.f32 0.0, %v1961
        %v1963 = vpop.f32.mrb[0].mxu0
        %v1964 = vadd.f32 0.0, %v1963
        %v1965 = vpop.f32.mrb[0].mxu0
        %v1966 = vadd.f32 0.0, %v1965
        %v1967 = vpop.f32.mrb[0].mxu0
        %v1968 = vadd.f32 0.0, %v1967
        %1969 = vmatprep.mubr.bf16.mxu0 0
        %1970 = vmatmul.mubr.bf16.gmra.mrb[0].mxu0 %v900
        %v1971 = vpop.f32.mrb[0].mxu0
        %v1972 = vadd.f32 0.0, %v1971
        %v1973 = vpop.f32.mrb[0].mxu0
        %v1974 = vadd.f32 0.0, %v1973
        %v1975 = vpop.f32.mrb[0].mxu0
        %v1976 = vadd.f32 0.0, %v1975
        %v1977 = vpop.f32.mrb[0].mxu0
        %v1978 = vadd.f32 0.0, %v1977
        %1979 = vmatprep.mubr.bf16.mxu0 0
        %1980 = vmatmul.mubr.bf16.gmra.mrb[0].mxu0 %v901
        %v1981 = vpop.f32.mrb[0].mxu0
        %v1982 = vadd.f32 0.0, %v1981
        %v1983 = vpop.f32.mrb[0].mxu0
        %v1984 = vadd.f32 0.0, %v1983
        %v1985 = vpop.f32.mrb[0].mxu0
        %v1986 = vadd.f32 0.0, %v1985
        %v1987 = vpop.f32.mrb[0].mxu0
        %v1988 = vadd.f32 0.0, %v1987
        %1989 = vmatprep.mubr.bf16.mxu0 0
        %1990 = vmatmul.mubr.bf16.gmra.mrb[0].mxu0 %v902
        %v1991 = vpop.f32.mrb[0].mxu0
        %v1992 = vadd.f32 0.0, %v1991
        %v1993 = vpop.f32.mrb[0].mxu0
        %v1994 = vadd.f32 0.0, %v1993
        %v1995 = vpop.f32.mrb[0].mxu0
        %v1996 = vadd.f32 0.0, %v1995
        %v1997 = vpop.f32.mrb[0].mxu0
        %v1998 = vadd.f32 0.0, %v1997
        %1999 = vmatprep.mubr.bf16.mxu0 0
        %2000 = vmatmul.mubr.bf16.gmra.mrb[0].mxu0 %v903
        %v2001 = vpop.f32.mrb[0].mxu0
        %v2002 = vadd.f32 0.0, %v2001
        %v2003 = vpop.f32.mrb[0].mxu0
        %v2004 = vadd.f32 0.0, %v2003
        %v2005 = vpop.f32.mrb[0].mxu0
        %v2006 = vadd.f32 0.0, %v2005
        %v2007 = vpop.f32.mrb[0].mxu0
        %v2008 = vadd.f32 0.0, %v2007
        %2009 = vmatprep.mubr.bf16.mxu0 0
        %2010 = vmatmul.mubr.bf16.gmra.mrb[0].mxu0 %v904
        %v2011 = vpop.f32.mrb[0].mxu0
        %v2012 = vadd.f32 0.0, %v2011
        %v2013 = vpop.f32.mrb[0].mxu0
        %v2014 = vadd.f32 0.0, %v2013
        %v2015 = vpop.f32.mrb[0].mxu0
        %v2016 = vadd.f32 0.0, %v2015
        %v2017 = vpop.f32.mrb[0].mxu0
        %v2018 = vadd.f32 0.0, %v2017
        %2019 = vmatprep.mubr.bf16.mxu0 0
        %2020 = vmatmul.mubr.bf16.gmra.mrb[0].mxu0 %v905
        %v2021 = vpop.f32.mrb[0].mxu0
        %v2022 = vadd.f32 0.0, %v2021
        %v2023 = vpop.f32.mrb[0].mxu0
        %v2024 = vadd.f32 0.0, %v2023
        %v2025 = vpop.f32.mrb[0].mxu0
        %v2026 = vadd.f32 0.0, %v2025
        %v2027 = vpop.f32.mrb[0].mxu0
        %v2028 = vadd.f32 0.0, %v2027
        %2029 = vmatprep.mubr.bf16.mxu0 0
        %2030 = vmatmul.mubr.bf16.gmra.mrb[0].mxu0 %v906
        %v2031 = vpop.f32.mrb[0].mxu0
        %v2032 = vadd.f32 0.0, %v2031
        %v2033 = vpop.f32.mrb[0].mxu0
        %v2034 = vadd.f32 0.0, %v2033
        %v2035 = vpop.f32.mrb[0].mxu0
        %v2036 = vadd.f32 0.0, %v2035
        %v2037 = vpop.f32.mrb[0].mxu0
        %v2038 = vadd.f32 0.0, %v2037
        %2039 = vdwg.mxu0
        %v2040 = vsel %vm1392, %v1849, -inf
        %v2041 = vsel %vm1392, %v1851, -inf
        %v2042 = vsel %vm1392, %v1962, -inf
        %v2043 = vsel %vm1392, %v1964, -inf
        %v2044 = vsel %vm1393, %v1853, -inf
        %v2045 = vsel %vm1393, %v1855, -inf
        %v2046 = vsel %vm1393, %v1966, -inf
        %v2047 = vsel %vm1393, %v1968, -inf
        %v2048 = vsel %vm1394, %v1859, -inf
        %v2049 = vsel %vm1394, %v1861, -inf
        %v2050 = vsel %vm1394, %v1972, -inf
        %v2051 = vsel %vm1394, %v1974, -inf
        %v2052 = vsel %vm1395, %v1863, -inf
        %v2053 = vsel %vm1395, %v1865, -inf
        %v2054 = vsel %vm1395, %v1976, -inf
        %v2055 = vsel %vm1395, %v1978, -inf
        %v2056 = vsel %vm1396, %v1869, -inf
        %v2057 = vsel %vm1396, %v1871, -inf
        %v2058 = vsel %vm1396, %v1982, -inf
        %v2059 = vsel %vm1396, %v1984, -inf
        %v2060 = vsel %vm1397, %v1873, -inf
        %v2061 = vsel %vm1397, %v1875, -inf
        %v2062 = vsel %vm1397, %v1986, -inf
        %v2063 = vsel %vm1397, %v1988, -inf
        %v2064 = vsel %vm1398, %v1879, -inf
        %v2065 = vsel %vm1398, %v1881, -inf
        %v2066 = vsel %vm1398, %v1992, -inf
        %v2067 = vsel %vm1398, %v1994, -inf
        %v2068 = vsel %vm1399, %v1883, -inf
        %v2069 = vsel %vm1399, %v1885, -inf
        %v2070 = vsel %vm1399, %v1996, -inf
        %v2071 = vsel %vm1399, %v1998, -inf
        %v2072 = vsel %vm1400, %v1889, -inf
        %v2073 = vsel %vm1400, %v1891, -inf
        %v2074 = vsel %vm1400, %v2002, -inf
        %v2075 = vsel %vm1400, %v2004, -inf
        %v2076 = vsel %vm1401, %v1893, -inf
        %v2077 = vsel %vm1401, %v1895, -inf
        %v2078 = vsel %vm1401, %v2006, -inf
        %v2079 = vsel %vm1401, %v2008, -inf
        %v2080 = vsel %vm1402, %v1899, -inf
        %v2081 = vsel %vm1402, %v1901, -inf
        %v2082 = vsel %vm1402, %v2012, -inf
        %v2083 = vsel %vm1402, %v2014, -inf
        %v2084 = vsel %vm1403, %v1903, -inf
        %v2085 = vsel %vm1403, %v1905, -inf
        %v2086 = vsel %vm1403, %v2016, -inf
        %v2087 = vsel %vm1403, %v2018, -inf
        %v2088 = vsel %vm1404, %v1909, -inf
        %v2089 = vsel %vm1404, %v1911, -inf
        %v2090 = vsel %vm1404, %v2022, -inf
        %v2091 = vsel %vm1404, %v2024, -inf
        %v2092 = vsel %vm1405, %v1913, -inf
        %v2093 = vsel %vm1405, %v1915, -inf
        %v2094 = vsel %vm1405, %v2026, -inf
        %v2095 = vsel %vm1405, %v2028, -inf
        %v2096 = vsel %vm1406, %v1919, -inf
        %v2097 = vsel %vm1406, %v1921, -inf
        %v2098 = vsel %vm1406, %v2032, -inf
        %v2099 = vsel %vm1406, %v2034, -inf
        %v2100 = vsel %vm1407, %v1923, -inf
        %v2101 = vsel %vm1407, %v1925, -inf
        %v2102 = vsel %vm1407, %v2036, -inf
        %v2103 = vsel %vm1407, %v2038, -inf
        %v2104 = vmax.f32 %v2040, %v2044
        %v2105 = vmax.f32 %v2104, %v2048
        %v2106 = vmax.f32 %v2105, %v2052
        %v2107 = vmax.f32 %v2106, %v2056
        %v2108 = vmax.f32 %v2107, %v2060
        %v2109 = vmax.f32 %v2108, %v2064
        %v2110 = vmax.f32 %v2109, %v2068
        %v2111 = vmax.f32 %v2110, %v2072
        %v2112 = vmax.f32 %v2111, %v2076
        %v2113 = vmax.f32 %v2112, %v2080
        %v2114 = vmax.f32 %v2113, %v2084
        %v2115 = vmax.f32 %v2114, %v2088
        %v2116 = vmax.f32 %v2115, %v2092
        %v2117 = vmax.f32 %v2116, %v2096
        %v2118 = vmax.f32 %v2117, %v2100
        %v2119 = vrot.slane %v2118, 4
        %v2120 = vmax.f32 %v2118, %v2119
        %v2121 = vrot.slane %v2120, 2
        %v2122 = vmax.f32 %v2120, %v2121
        %v2123 = vrot.slane %v2122, 1
        %v2124 = vmax.f32 %v2122, %v2123
        %v2125 = vmax.f32 %v2041, %v2045
        %v2126 = vmax.f32 %v2125, %v2049
        %v2127 = vmax.f32 %v2126, %v2053
        %v2128 = vmax.f32 %v2127, %v2057
        %v2129 = vmax.f32 %v2128, %v2061
        %v2130 = vmax.f32 %v2129, %v2065
        %v2131 = vmax.f32 %v2130, %v2069
        %v2132 = vmax.f32 %v2131, %v2073
        %v2133 = vmax.f32 %v2132, %v2077
        %v2134 = vmax.f32 %v2133, %v2081
        %v2135 = vmax.f32 %v2134, %v2085
        %v2136 = vmax.f32 %v2135, %v2089
        %v2137 = vmax.f32 %v2136, %v2093
        %v2138 = vmax.f32 %v2137, %v2097
        %v2139 = vmax.f32 %v2138, %v2101
        %v2140 = vrot.slane %v2139, 4
        %v2141 = vmax.f32 %v2139, %v2140
        %v2142 = vrot.slane %v2141, 2
        %v2143 = vmax.f32 %v2141, %v2142
        %v2144 = vrot.slane %v2143, 1
        %v2145 = vmax.f32 %v2143, %v2144
        %v2146 = vmax.f32 %v2042, %v2046
        %v2147 = vmax.f32 %v2146, %v2050
        %v2148 = vmax.f32 %v2147, %v2054
        %v2149 = vmax.f32 %v2148, %v2058
        %v2150 = vmax.f32 %v2149, %v2062
        %v2151 = vmax.f32 %v2150, %v2066
        %v2152 = vmax.f32 %v2151, %v2070
        %v2153 = vmax.f32 %v2152, %v2074
        %v2154 = vmax.f32 %v2153, %v2078
        %v2155 = vmax.f32 %v2154, %v2082
        %v2156 = vmax.f32 %v2155, %v2086
        %v2157 = vmax.f32 %v2156, %v2090
        %v2158 = vmax.f32 %v2157, %v2094
        %v2159 = vmax.f32 %v2158, %v2098
        %v2160 = vmax.f32 %v2159, %v2102
        %v2161 = vrot.slane %v2160, 4
        %v2162 = vmax.f32 %v2160, %v2161
        %v2163 = vrot.slane %v2162, 2
        %v2164 = vmax.f32 %v2162, %v2163
        %v2165 = vrot.slane %v2164, 1
        %v2166 = vmax.f32 %v2164, %v2165
        %v2167 = vmax.f32 %v2043, %v2047
        %v2168 = vmax.f32 %v2167, %v2051
        %v2169 = vmax.f32 %v2168, %v2055
        %v2170 = vmax.f32 %v2169, %v2059
        %v2171 = vmax.f32 %v2170, %v2063
        %v2172 = vmax.f32 %v2171, %v2067
        %v2173 = vmax.f32 %v2172, %v2071
        %v2174 = vmax.f32 %v2173, %v2075
        %v2175 = vmax.f32 %v2174, %v2079
        %v2176 = vmax.f32 %v2175, %v2083
        %v2177 = vmax.f32 %v2176, %v2087
        %v2178 = vmax.f32 %v2177, %v2091
        %v2179 = vmax.f32 %v2178, %v2095
        %v2180 = vmax.f32 %v2179, %v2099
        %v2181 = vmax.f32 %v2180, %v2103
        %v2182 = vrot.slane %v2181, 4
        %v2183 = vmax.f32 %v2181, %v2182
        %v2184 = vrot.slane %v2183, 2
        %v2185 = vmax.f32 %v2183, %v2184
        %v2186 = vrot.slane %v2185, 1
        %v2187 = vmax.f32 %v2185, %v2186
        %v2188 = vld [vmem:[%s6 + $0x4] sm:$0xf]
        %v2190 = vlaneseq
        %v2191 = vshrl.u32 %v2190, 7
        %v2192 = vsub.s32 0, %v2191
        %v2193 = vrot.slane %v2188, %v2192
        %v2194 = vlaneseq
        %v2195 = vshrl.u32 %v2194, 7
        %v2196 = vsub.s32 1, %v2195
        %v2197 = vrot.slane %v2188, %v2196
        %v2198 = vlaneseq
        %v2199 = vshrl.u32 %v2198, 7
        %v2200 = vsub.s32 2, %v2199
        %v2201 = vrot.slane %v2188, %v2200
        %v2202 = vlaneseq
        %v2203 = vshrl.u32 %v2202, 7
        %v2204 = vsub.s32 3, %v2203
        %v2205 = vrot.slane %v2188, %v2204
        %v2210 = vadd.f32 %v2124, %v2193
        %v2211 = vadd.f32 %v2145, %v2197
        %v2212 = vadd.f32 %v2166, %v2201
        %v2213 = vadd.f32 %v2187, %v2205
        %v2214 = vmax.f32 %v2210, 0.0
        %v2215 = vmax.f32 %v2211, 0.0
        %v2216 = vmax.f32 %v2212, 0.0
        %v2217 = vmax.f32 %v2213, 0.0
        %v2218 = vld [vmem:[#allocation2 + $0x4] sm:$0xf]
        %v2223 = vcombine.low %v2214, %v2215
        %v2224 = vcombine.low %v2216, %v2217
        %v2226 = vunpack.c.l.s4 1966171168
        %v2227 = vunpack.c.0.s8 %v2226
        %v2228 = vlaneseq
        %v2229 = vshrl.u32 %v2228, 7
        %v2230 = vsub.s32 %v2227, %v2229
        %v2231 = vrot.slane %v2223, %v2230
        %v2233 = vunpack.c.l.s4 1966171168
        %v2234 = vunpack.c.0.s8 %v2233
        %v2235 = vlaneseq
        %v2236 = vshrl.u32 %v2235, 7
        %v2237 = vsub.s32 %v2234, %v2236
        %v2238 = vrot.slane %v2224, %v2237
        %v2239 = vcombine.low %v2231, %v2238
        %v2241 = vunpack.c.l.s4 1966171168
        %v2242 = vunpack.c.0.s8 %v2241
        %v2243 = vlaneseq
        %v2244 = vshrl.u32 %v2243, 7
        %v2245 = vsub.s32 %v2242, %v2244
        %v2246 = vrot.slane %v2239, %v2245
        %v2248 = vmax.f32 %v2218, %v2246
        %2249 = vst.msk [vmem:[#allocation2 + $0x4] sm:$0xf] %vm1620, %v2248
        %p2250 = scmp.eq.s32.totalorder %s34, 1
        // Predicated region
        $region89: #{tpu_custom_call.1} parent=71 // pred_check
          %p2251 = pneg %p2250
        $region90: #{tpu_custom_call.1} parent=71 // pred_check_branch
          %2253 = sbr.rel (%p2251) target = $region92
        $region91: #{tpu_custom_call.1} parent=71 // pred_region
          %v2254 = vld [vmem:[#allocation2] sm:$0xff]
          %v2256 = vlaneseq
          %v2257 = vshrl.u32 %v2256, 7
          %v2258 = vsub.s32 0, %v2257
          %v2259 = vrot.slane %v2254, %v2258
          %v2260 = vlaneseq
          %v2261 = vshrl.u32 %v2260, 7
          %v2262 = vsub.s32 1, %v2261
          %v2263 = vrot.slane %v2254, %v2262
          %v2264 = vlaneseq
          %v2265 = vshrl.u32 %v2264, 7
          %v2266 = vsub.s32 2, %v2265
          %v2267 = vrot.slane %v2254, %v2266
          %v2268 = vlaneseq
          %v2269 = vshrl.u32 %v2268, 7
          %v2270 = vsub.s32 3, %v2269
          %v2271 = vrot.slane %v2254, %v2270
          %v2272 = vlaneseq
          %v2273 = vshrl.u32 %v2272, 7
          %v2274 = vsub.s32 4, %v2273
          %v2275 = vrot.slane %v2254, %v2274
          %v2276 = vlaneseq
          %v2277 = vshrl.u32 %v2276, 7
          %v2278 = vsub.s32 5, %v2277
          %v2279 = vrot.slane %v2254, %v2278
          %v2280 = vlaneseq
          %v2281 = vshrl.u32 %v2280, 7
          %v2282 = vsub.s32 6, %v2281
          %v2283 = vrot.slane %v2254, %v2282
          %v2284 = vlaneseq
          %v2285 = vshrl.u32 %v2284, 7
          %v2286 = vsub.s32 7, %v2285
          %v2287 = vrot.slane %v2254, %v2286
          %v2296 = vpack.c.bf16 %v2259, %v2259
          %v2297 = vpack.c.bf16 %v2263, %v2263
          %v2298 = vpack.c.bf16 %v2267, %v2267
          %v2299 = vpack.c.bf16 %v2271, %v2271
          %v2300 = vpack.c.bf16 %v2275, %v2275
          %v2301 = vpack.c.bf16 %v2279, %v2279
          %v2302 = vpack.c.bf16 %v2283, %v2283
          %v2303 = vpack.c.bf16 %v2287, %v2287
          %v2304 = vld [vmem:[#allocation6] sm:$0xff]
          %v2305 = vld [vmem:[#allocation6 + $0x8] sm:$0xff]
          %v2306 = vld [vmem:[#allocation6 + $0x10] sm:$0xff]
          %v2307 = vld [vmem:[#allocation6 + $0x18] sm:$0xff]
          %v2308 = vld [vmem:[#allocation6 + $0x20] sm:$0xff]
          %v2309 = vld [vmem:[#allocation6 + $0x28] sm:$0xff]
          %v2310 = vld [vmem:[#allocation6 + $0x30] sm:$0xff]
          %v2311 = vld [vmem:[#allocation6 + $0x38] sm:$0xff]
          %v2312 = vld [vmem:[#allocation6 + $0x40] sm:$0xff]
          %v2313 = vld [vmem:[#allocation6 + $0x48] sm:$0xff]
          %v2314 = vld [vmem:[#allocation6 + $0x50] sm:$0xff]
          %v2315 = vld [vmem:[#allocation6 + $0x58] sm:$0xff]
          %v2316 = vld [vmem:[#allocation6 + $0x60] sm:$0xff]
          %v2317 = vld [vmem:[#allocation6 + $0x68] sm:$0xff]
          %v2318 = vld [vmem:[#allocation6 + $0x70] sm:$0xff]
          %v2319 = vld [vmem:[#allocation6 + $0x78] sm:$0xff]
          %v2320 = vld [vmem:[#allocation6 + $0x80] sm:$0xff]
          %v2321 = vld [vmem:[#allocation6 + $0x88] sm:$0xff]
          %v2322 = vld [vmem:[#allocation6 + $0x90] sm:$0xff]
          %v2323 = vld [vmem:[#allocation6 + $0x98] sm:$0xff]
          %v2324 = vld [vmem:[#allocation6 + $0xa0] sm:$0xff]
          %v2325 = vld [vmem:[#allocation6 + $0xa8] sm:$0xff]
          %v2326 = vld [vmem:[#allocation6 + $0xb0] sm:$0xff]
          %v2327 = vld [vmem:[#allocation6 + $0xb8] sm:$0xff]
          %v2328 = vld [vmem:[#allocation6 + $0xc0] sm:$0xff]
          %v2329 = vld [vmem:[#allocation6 + $0xc8] sm:$0xff]
          %v2330 = vld [vmem:[#allocation6 + $0xd0] sm:$0xff]
          %v2331 = vld [vmem:[#allocation6 + $0xd8] sm:$0xff]
          %v2332 = vld [vmem:[#allocation6 + $0xe0] sm:$0xff]
          %v2333 = vld [vmem:[#allocation6 + $0xe8] sm:$0xff]
          %v2334 = vld [vmem:[#allocation6 + $0xf0] sm:$0xff]
          %v2335 = vld [vmem:[#allocation6 + $0xf8] sm:$0xff]
          %v2336 = vld [vmem:[#allocation6 + $0x100] sm:$0xff]
          %v2337 = vld [vmem:[#allocation6 + $0x108] sm:$0xff]
          %v2338 = vld [vmem:[#allocation6 + $0x110] sm:$0xff]
          %v2339 = vld [vmem:[#allocation6 + $0x118] sm:$0xff]
          %v2340 = vld [vmem:[#allocation6 + $0x120] sm:$0xff]
          %v2341 = vld [vmem:[#allocation6 + $0x128] sm:$0xff]
          %v2342 = vld [vmem:[#allocation6 + $0x130] sm:$0xff]
          %v2343 = vld [vmem:[#allocation6 + $0x138] sm:$0xff]
          %v2344 = vld [vmem:[#allocation6 + $0x140] sm:$0xff]
          %v2345 = vld [vmem:[#allocation6 + $0x148] sm:$0xff]
          %v2346 = vld [vmem:[#allocation6 + $0x150] sm:$0xff]
          %v2347 = vld [vmem:[#allocation6 + $0x158] sm:$0xff]
          %v2348 = vld [vmem:[#allocation6 + $0x160] sm:$0xff]
          %v2349 = vld [vmem:[#allocation6 + $0x168] sm:$0xff]
          %v2350 = vld [vmem:[#allocation6 + $0x170] sm:$0xff]
          %v2351 = vld [vmem:[#allocation6 + $0x178] sm:$0xff]
          %v2352 = vld [vmem:[#allocation6 + $0x180] sm:$0xff]
          %v2353 = vld [vmem:[#allocation6 + $0x188] sm:$0xff]
          %v2354 = vld [vmem:[#allocation6 + $0x190] sm:$0xff]
          %v2355 = vld [vmem:[#allocation6 + $0x198] sm:$0xff]
          %v2356 = vld [vmem:[#allocation6 + $0x1a0] sm:$0xff]
          %v2357 = vld [vmem:[#allocation6 + $0x1a8] sm:$0xff]
          %v2358 = vld [vmem:[#allocation6 + $0x1b0] sm:$0xff]
          %v2359 = vld [vmem:[#allocation6 + $0x1b8] sm:$0xff]
          %v2360 = vld [vmem:[#allocation6 + $0x1c0] sm:$0xff]
          %v2361 = vld [vmem:[#allocation6 + $0x1c8] sm:$0xff]
          %v2362 = vld [vmem:[#allocation6 + $0x1d0] sm:$0xff]
          %v2363 = vld [vmem:[#allocation6 + $0x1d8] sm:$0xff]
          %v2364 = vld [vmem:[#allocation6 + $0x1e0] sm:$0xff]
          %v2365 = vld [vmem:[#allocation6 + $0x1e8] sm:$0xff]
          %v2366 = vld [vmem:[#allocation6 + $0x1f0] sm:$0xff]
          %v2367 = vld [vmem:[#allocation6 + $0x1f8] sm:$0xff]
          %v2368 = vld [vmem:[#allocation6 + $0x200] sm:$0xff]
          %v2369 = vld [vmem:[#allocation6 + $0x208] sm:$0xff]
          %v2370 = vld [vmem:[#allocation6 + $0x210] sm:$0xff]
          %v2371 = vld [vmem:[#allocation6 + $0x218] sm:$0xff]
          %v2372 = vld [vmem:[#allocation6 + $0x220] sm:$0xff]
          %v2373 = vld [vmem:[#allocation6 + $0x228] sm:$0xff]
          %v2374 = vld [vmem:[#allocation6 + $0x230] sm:$0xff]
          %v2375 = vld [vmem:[#allocation6 + $0x238] sm:$0xff]
          %v2376 = vld [vmem:[#allocation6 + $0x240] sm:$0xff]
          %v2377 = vld [vmem:[#allocation6 + $0x248] sm:$0xff]
          %v2378 = vld [vmem:[#allocation6 + $0x250] sm:$0xff]
          %v2379 = vld [vmem:[#allocation6 + $0x258] sm:$0xff]
          %v2380 = vld [vmem:[#allocation6 + $0x260] sm:$0xff]
          %v2381 = vld [vmem:[#allocation6 + $0x268] sm:$0xff]
          %v2382 = vld [vmem:[#allocation6 + $0x270] sm:$0xff]
          %v2383 = vld [vmem:[#allocation6 + $0x278] sm:$0xff]
          %v2384 = vld [vmem:[#allocation6 + $0x280] sm:$0xff]
          %v2385 = vld [vmem:[#allocation6 + $0x288] sm:$0xff]
          %v2386 = vld [vmem:[#allocation6 + $0x290] sm:$0xff]
          %v2387 = vld [vmem:[#allocation6 + $0x298] sm:$0xff]
          %v2388 = vld [vmem:[#allocation6 + $0x2a0] sm:$0xff]
          %v2389 = vld [vmem:[#allocation6 + $0x2a8] sm:$0xff]
          %v2390 = vld [vmem:[#allocation6 + $0x2b0] sm:$0xff]
          %v2391 = vld [vmem:[#allocation6 + $0x2b8] sm:$0xff]
          %v2392 = vld [vmem:[#allocation6 + $0x2c0] sm:$0xff]
          %v2393 = vld [vmem:[#allocation6 + $0x2c8] sm:$0xff]
          %v2394 = vld [vmem:[#allocation6 + $0x2d0] sm:$0xff]
          %v2395 = vld [vmem:[#allocation6 + $0x2d8] sm:$0xff]
          %v2396 = vld [vmem:[#allocation6 + $0x2e0] sm:$0xff]
          %v2397 = vld [vmem:[#allocation6 + $0x2e8] sm:$0xff]
          %v2398 = vld [vmem:[#allocation6 + $0x2f0] sm:$0xff]
          %v2399 = vld [vmem:[#allocation6 + $0x2f8] sm:$0xff]
          %v2400 = vld [vmem:[#allocation6 + $0x300] sm:$0xff]
          %v2401 = vld [vmem:[#allocation6 + $0x308] sm:$0xff]
          %v2402 = vld [vmem:[#allocation6 + $0x310] sm:$0xff]
          %v2403 = vld [vmem:[#allocation6 + $0x318] sm:$0xff]
          %v2404 = vld [vmem:[#allocation6 + $0x320] sm:$0xff]
          %v2405 = vld [vmem:[#allocation6 + $0x328] sm:$0xff]
          %v2406 = vld [vmem:[#allocation6 + $0x330] sm:$0xff]
          %v2407 = vld [vmem:[#allocation6 + $0x338] sm:$0xff]
          %v2408 = vld [vmem:[#allocation6 + $0x340] sm:$0xff]
          %v2409 = vld [vmem:[#allocation6 + $0x348] sm:$0xff]
          %v2410 = vld [vmem:[#allocation6 + $0x350] sm:$0xff]
          %v2411 = vld [vmem:[#allocation6 + $0x358] sm:$0xff]
          %v2412 = vld [vmem:[#allocation6 + $0x360] sm:$0xff]
          %v2413 = vld [vmem:[#allocation6 + $0x368] sm:$0xff]
          %v2414 = vld [vmem:[#allocation6 + $0x370] sm:$0xff]
          %v2415 = vld [vmem:[#allocation6 + $0x378] sm:$0xff]
          %v2416 = vld [vmem:[#allocation6 + $0x380] sm:$0xff]
          %v2417 = vld [vmem:[#allocation6 + $0x388] sm:$0xff]
          %v2418 = vld [vmem:[#allocation6 + $0x390] sm:$0xff]
          %v2419 = vld [vmem:[#allocation6 + $0x398] sm:$0xff]
          %v2420 = vld [vmem:[#allocation6 + $0x3a0] sm:$0xff]
          %v2421 = vld [vmem:[#allocation6 + $0x3a8] sm:$0xff]
          %v2422 = vld [vmem:[#allocation6 + $0x3b0] sm:$0xff]
          %v2423 = vld [vmem:[#allocation6 + $0x3b8] sm:$0xff]
          %v2424 = vld [vmem:[#allocation6 + $0x3c0] sm:$0xff]
          %v2425 = vld [vmem:[#allocation6 + $0x3c8] sm:$0xff]
          %v2426 = vld [vmem:[#allocation6 + $0x3d0] sm:$0xff]
          %v2427 = vld [vmem:[#allocation6 + $0x3d8] sm:$0xff]
          %v2428 = vld [vmem:[#allocation6 + $0x3e0] sm:$0xff]
          %v2429 = vld [vmem:[#allocation6 + $0x3e8] sm:$0xff]
          %v2430 = vld [vmem:[#allocation6 + $0x3f0] sm:$0xff]
          %v2431 = vld [vmem:[#allocation6 + $0x3f8] sm:$0xff]
          %v2432 = vld [vmem:[#allocation6 + $0x400] sm:$0xff]
          %v2433 = vld [vmem:[#allocation6 + $0x408] sm:$0xff]
          %v2434 = vld [vmem:[#allocation6 + $0x410] sm:$0xff]
          %v2435 = vld [vmem:[#allocation6 + $0x418] sm:$0xff]
          %v2436 = vld [vmem:[#allocation6 + $0x420] sm:$0xff]
          %v2437 = vld [vmem:[#allocation6 + $0x428] sm:$0xff]
          %v2438 = vld [vmem:[#allocation6 + $0x430] sm:$0xff]
          %v2439 = vld [vmem:[#allocation6 + $0x438] sm:$0xff]
          %v2440 = vld [vmem:[#allocation6 + $0x440] sm:$0xff]
          %v2441 = vld [vmem:[#allocation6 + $0x448] sm:$0xff]
          %v2442 = vld [vmem:[#allocation6 + $0x450] sm:$0xff]
          %v2443 = vld [vmem:[#allocation6 + $0x458] sm:$0xff]
          %v2444 = vld [vmem:[#allocation6 + $0x460] sm:$0xff]
          %v2445 = vld [vmem:[#allocation6 + $0x468] sm:$0xff]
          %v2446 = vld [vmem:[#allocation6 + $0x470] sm:$0xff]
          %v2447 = vld [vmem:[#allocation6 + $0x478] sm:$0xff]
          %v2448 = vld [vmem:[#allocation6 + $0x480] sm:$0xff]
          %v2449 = vld [vmem:[#allocation6 + $0x488] sm:$0xff]
          %v2450 = vld [vmem:[#allocation6 + $0x490] sm:$0xff]
          %v2451 = vld [vmem:[#allocation6 + $0x498] sm:$0xff]
          %v2452 = vld [vmem:[#allocation6 + $0x4a0] sm:$0xff]
          %v2453 = vld [vmem:[#allocation6 + $0x4a8] sm:$0xff]
          %v2454 = vld [vmem:[#allocation6 + $0x4b0] sm:$0xff]
          %v2455 = vld [vmem:[#allocation6 + $0x4b8] sm:$0xff]
          %v2456 = vld [vmem:[#allocation6 + $0x4c0] sm:$0xff]
          %v2457 = vld [vmem:[#allocation6 + $0x4c8] sm:$0xff]
          %v2458 = vld [vmem:[#allocation6 + $0x4d0] sm:$0xff]
          %v2459 = vld [vmem:[#allocation6 + $0x4d8] sm:$0xff]
          %v2460 = vld [vmem:[#allocation6 + $0x4e0] sm:$0xff]
          %v2461 = vld [vmem:[#allocation6 + $0x4e8] sm:$0xff]
          %v2462 = vld [vmem:[#allocation6 + $0x4f0] sm:$0xff]
          %v2463 = vld [vmem:[#allocation6 + $0x4f8] sm:$0xff]
          %v2464 = vld [vmem:[#allocation6 + $0x500] sm:$0xff]
          %v2465 = vld [vmem:[#allocation6 + $0x508] sm:$0xff]
          %v2466 = vld [vmem:[#allocation6 + $0x510] sm:$0xff]
          %v2467 = vld [vmem:[#allocation6 + $0x518] sm:$0xff]
          %v2468 = vld [vmem:[#allocation6 + $0x520] sm:$0xff]
          %v2469 = vld [vmem:[#allocation6 + $0x528] sm:$0xff]
          %v2470 = vld [vmem:[#allocation6 + $0x530] sm:$0xff]
          %v2471 = vld [vmem:[#allocation6 + $0x538] sm:$0xff]
          %v2472 = vld [vmem:[#allocation6 + $0x540] sm:$0xff]
          %v2473 = vld [vmem:[#allocation6 + $0x548] sm:$0xff]
          %v2474 = vld [vmem:[#allocation6 + $0x550] sm:$0xff]
          %v2475 = vld [vmem:[#allocation6 + $0x558] sm:$0xff]
          %v2476 = vld [vmem:[#allocation6 + $0x560] sm:$0xff]
          %v2477 = vld [vmem:[#allocation6 + $0x568] sm:$0xff]
          %v2478 = vld [vmem:[#allocation6 + $0x570] sm:$0xff]
          %v2479 = vld [vmem:[#allocation6 + $0x578] sm:$0xff]
          %v2480 = vld [vmem:[#allocation6 + $0x580] sm:$0xff]
          %v2481 = vld [vmem:[#allocation6 + $0x588] sm:$0xff]
          %v2482 = vld [vmem:[#allocation6 + $0x590] sm:$0xff]
          %v2483 = vld [vmem:[#allocation6 + $0x598] sm:$0xff]
          %v2484 = vld [vmem:[#allocation6 + $0x5a0] sm:$0xff]
          %v2485 = vld [vmem:[#allocation6 + $0x5a8] sm:$0xff]
          %v2486 = vld [vmem:[#allocation6 + $0x5b0] sm:$0xff]
          %v2487 = vld [vmem:[#allocation6 + $0x5b8] sm:$0xff]
          %v2488 = vld [vmem:[#allocation6 + $0x5c0] sm:$0xff]
          %v2489 = vld [vmem:[#allocation6 + $0x5c8] sm:$0xff]
          %v2490 = vld [vmem:[#allocation6 + $0x5d0] sm:$0xff]
          %v2491 = vld [vmem:[#allocation6 + $0x5d8] sm:$0xff]
          %v2492 = vld [vmem:[#allocation6 + $0x5e0] sm:$0xff]
          %v2493 = vld [vmem:[#allocation6 + $0x5e8] sm:$0xff]
          %v2494 = vld [vmem:[#allocation6 + $0x5f0] sm:$0xff]
          %v2495 = vld [vmem:[#allocation6 + $0x5f8] sm:$0xff]
          %v2496 = vld [vmem:[#allocation6 + $0x600] sm:$0xff]
          %v2497 = vld [vmem:[#allocation6 + $0x608] sm:$0xff]
          %v2498 = vld [vmem:[#allocation6 + $0x610] sm:$0xff]
          %v2499 = vld [vmem:[#allocation6 + $0x618] sm:$0xff]
          %v2500 = vld [vmem:[#allocation6 + $0x620] sm:$0xff]
          %v2501 = vld [vmem:[#allocation6 + $0x628] sm:$0xff]
          %v2502 = vld [vmem:[#allocation6 + $0x630] sm:$0xff]
          %v2503 = vld [vmem:[#allocation6 + $0x638] sm:$0xff]
          %v2504 = vld [vmem:[#allocation6 + $0x640] sm:$0xff]
          %v2505 = vld [vmem:[#allocation6 + $0x648] sm:$0xff]
          %v2506 = vld [vmem:[#allocation6 + $0x650] sm:$0xff]
          %v2507 = vld [vmem:[#allocation6 + $0x658] sm:$0xff]
          %v2508 = vld [vmem:[#allocation6 + $0x660] sm:$0xff]
          %v2509 = vld [vmem:[#allocation6 + $0x668] sm:$0xff]
          %v2510 = vld [vmem:[#allocation6 + $0x670] sm:$0xff]
          %v2511 = vld [vmem:[#allocation6 + $0x678] sm:$0xff]
          %v2512 = vld [vmem:[#allocation6 + $0x680] sm:$0xff]
          %v2513 = vld [vmem:[#allocation6 + $0x688] sm:$0xff]
          %v2514 = vld [vmem:[#allocation6 + $0x690] sm:$0xff]
          %v2515 = vld [vmem:[#allocation6 + $0x698] sm:$0xff]
          %v2516 = vld [vmem:[#allocation6 + $0x6a0] sm:$0xff]
          %v2517 = vld [vmem:[#allocation6 + $0x6a8] sm:$0xff]
          %v2518 = vld [vmem:[#allocation6 + $0x6b0] sm:$0xff]
          %v2519 = vld [vmem:[#allocation6 + $0x6b8] sm:$0xff]
          %v2520 = vld [vmem:[#allocation6 + $0x6c0] sm:$0xff]
          %v2521 = vld [vmem:[#allocation6 + $0x6c8] sm:$0xff]
          %v2522 = vld [vmem:[#allocation6 + $0x6d0] sm:$0xff]
          %v2523 = vld [vmem:[#allocation6 + $0x6d8] sm:$0xff]
          %v2524 = vld [vmem:[#allocation6 + $0x6e0] sm:$0xff]
          %v2525 = vld [vmem:[#allocation6 + $0x6e8] sm:$0xff]
          %v2526 = vld [vmem:[#allocation6 + $0x6f0] sm:$0xff]
          %v2527 = vld [vmem:[#allocation6 + $0x6f8] sm:$0xff]
          %v2528 = vld [vmem:[#allocation6 + $0x700] sm:$0xff]
          %v2529 = vld [vmem:[#allocation6 + $0x708] sm:$0xff]
          %v2530 = vld [vmem:[#allocation6 + $0x710] sm:$0xff]
          %v2531 = vld [vmem:[#allocation6 + $0x718] sm:$0xff]
          %v2532 = vld [vmem:[#allocation6 + $0x720] sm:$0xff]
          %v2533 = vld [vmem:[#allocation6 + $0x728] sm:$0xff]
          %v2534 = vld [vmem:[#allocation6 + $0x730] sm:$0xff]
          %v2535 = vld [vmem:[#allocation6 + $0x738] sm:$0xff]
          %v2536 = vld [vmem:[#allocation6 + $0x740] sm:$0xff]
          %v2537 = vld [vmem:[#allocation6 + $0x748] sm:$0xff]
          %v2538 = vld [vmem:[#allocation6 + $0x750] sm:$0xff]
          %v2539 = vld [vmem:[#allocation6 + $0x758] sm:$0xff]
          %v2540 = vld [vmem:[#allocation6 + $0x760] sm:$0xff]
          %v2541 = vld [vmem:[#allocation6 + $0x768] sm:$0xff]
          %v2542 = vld [vmem:[#allocation6 + $0x770] sm:$0xff]
          %v2543 = vld [vmem:[#allocation6 + $0x778] sm:$0xff]
          %v2544 = vld [vmem:[#allocation6 + $0x780] sm:$0xff]
          %v2545 = vld [vmem:[#allocation6 + $0x788] sm:$0xff]
          %v2546 = vld [vmem:[#allocation6 + $0x790] sm:$0xff]
          %v2547 = vld [vmem:[#allocation6 + $0x798] sm:$0xff]
          %v2548 = vld [vmem:[#allocation6 + $0x7a0] sm:$0xff]
          %v2549 = vld [vmem:[#allocation6 + $0x7a8] sm:$0xff]
          %v2550 = vld [vmem:[#allocation6 + $0x7b0] sm:$0xff]
          %v2551 = vld [vmem:[#allocation6 + $0x7b8] sm:$0xff]
          %v2552 = vld [vmem:[#allocation6 + $0x7c0] sm:$0xff]
          %v2553 = vld [vmem:[#allocation6 + $0x7c8] sm:$0xff]
          %v2554 = vld [vmem:[#allocation6 + $0x7d0] sm:$0xff]
          %v2555 = vld [vmem:[#allocation6 + $0x7d8] sm:$0xff]
          %v2556 = vld [vmem:[#allocation6 + $0x7e0] sm:$0xff]
          %v2557 = vld [vmem:[#allocation6 + $0x7e8] sm:$0xff]
          %v2558 = vld [vmem:[#allocation6 + $0x7f0] sm:$0xff]
          %v2559 = vld [vmem:[#allocation6 + $0x7f8] sm:$0xff]
          %v2560 = vld [vmem:[%s8] sm:$0xf]
          %v2817 = vunpack.c.l.b16 %v2304
          %v2818 = vunpack.c.h.b16 %v2304
          %v2819 = vunpack.c.l.b16 %v2305
          %v2820 = vunpack.c.h.b16 %v2305
          %v2821 = vunpack.c.l.b16 %v2306
          %v2822 = vunpack.c.h.b16 %v2306
          %v2823 = vunpack.c.l.b16 %v2307
          %v2824 = vunpack.c.h.b16 %v2307
          %v2825 = vunpack.c.l.b16 %v2308
          %v2826 = vunpack.c.h.b16 %v2308
          %v2827 = vunpack.c.l.b16 %v2309
          %v2828 = vunpack.c.h.b16 %v2309
          %v2829 = vunpack.c.l.b16 %v2310
          %v2830 = vunpack.c.h.b16 %v2310
          %v2831 = vunpack.c.l.b16 %v2311
          %v2832 = vunpack.c.h.b16 %v2311
          %v2833 = vunpack.c.l.b16 %v2312
          %v2834 = vunpack.c.h.b16 %v2312
          %v2835 = vunpack.c.l.b16 %v2313
          %v2836 = vunpack.c.h.b16 %v2313
          %v2837 = vunpack.c.l.b16 %v2314
          %v2838 = vunpack.c.h.b16 %v2314
          %v2839 = vunpack.c.l.b16 %v2315
          %v2840 = vunpack.c.h.b16 %v2315
          %v2841 = vunpack.c.l.b16 %v2316
          %v2842 = vunpack.c.h.b16 %v2316
          %v2843 = vunpack.c.l.b16 %v2317
          %v2844 = vunpack.c.h.b16 %v2317
          %v2845 = vunpack.c.l.b16 %v2318
          %v2846 = vunpack.c.h.b16 %v2318
          %v2847 = vunpack.c.l.b16 %v2319
          %v2848 = vunpack.c.h.b16 %v2319
          %v2849 = vunpack.c.l.b16 %v2320
          %v2850 = vunpack.c.h.b16 %v2320
          %v2851 = vunpack.c.l.b16 %v2321
          %v2852 = vunpack.c.h.b16 %v2321
          %v2853 = vunpack.c.l.b16 %v2322
          %v2854 = vunpack.c.h.b16 %v2322
          %v2855 = vunpack.c.l.b16 %v2323
          %v2856 = vunpack.c.h.b16 %v2323
          %v2857 = vunpack.c.l.b16 %v2324
          %v2858 = vunpack.c.h.b16 %v2324
          %v2859 = vunpack.c.l.b16 %v2325
          %v2860 = vunpack.c.h.b16 %v2325
          %v2861 = vunpack.c.l.b16 %v2326
          %v2862 = vunpack.c.h.b16 %v2326
          %v2863 = vunpack.c.l.b16 %v2327
          %v2864 = vunpack.c.h.b16 %v2327
          %v2865 = vunpack.c.l.b16 %v2328
          %v2866 = vunpack.c.h.b16 %v2328
          %v2867 = vunpack.c.l.b16 %v2329
          %v2868 = vunpack.c.h.b16 %v2329
          %v2869 = vunpack.c.l.b16 %v2330
          %v2870 = vunpack.c.h.b16 %v2330
          %v2871 = vunpack.c.l.b16 %v2331
          %v2872 = vunpack.c.h.b16 %v2331
          %v2873 = vunpack.c.l.b16 %v2332
          %v2874 = vunpack.c.h.b16 %v2332
          %v2875 = vunpack.c.l.b16 %v2333
          %v2876 = vunpack.c.h.b16 %v2333
          %v2877 = vunpack.c.l.b16 %v2334
          %v2878 = vunpack.c.h.b16 %v2334
          %v2879 = vunpack.c.l.b16 %v2335
          %v2880 = vunpack.c.h.b16 %v2335
          %v2881 = vunpack.c.l.b16 %v2336
          %v2882 = vunpack.c.h.b16 %v2336
          %v2883 = vunpack.c.l.b16 %v2337
          %v2884 = vunpack.c.h.b16 %v2337
          %v2885 = vunpack.c.l.b16 %v2338
          %v2886 = vunpack.c.h.b16 %v2338
          %v2887 = vunpack.c.l.b16 %v2339
          %v2888 = vunpack.c.h.b16 %v2339
          %v2889 = vunpack.c.l.b16 %v2340
          %v2890 = vunpack.c.h.b16 %v2340
          %v2891 = vunpack.c.l.b16 %v2341
          %v2892 = vunpack.c.h.b16 %v2341
          %v2893 = vunpack.c.l.b16 %v2342
          %v2894 = vunpack.c.h.b16 %v2342
          %v2895 = vunpack.c.l.b16 %v2343
          %v2896 = vunpack.c.h.b16 %v2343
          %v2897 = vunpack.c.l.b16 %v2344
          %v2898 = vunpack.c.h.b16 %v2344
          %v2899 = vunpack.c.l.b16 %v2345
          %v2900 = vunpack.c.h.b16 %v2345
          %v2901 = vunpack.c.l.b16 %v2346
          %v2902 = vunpack.c.h.b16 %v2346
          %v2903 = vunpack.c.l.b16 %v2347
          %v2904 = vunpack.c.h.b16 %v2347
          %v2905 = vunpack.c.l.b16 %v2348
          %v2906 = vunpack.c.h.b16 %v2348
          %v2907 = vunpack.c.l.b16 %v2349
          %v2908 = vunpack.c.h.b16 %v2349
          %v2909 = vunpack.c.l.b16 %v2350
          %v2910 = vunpack.c.h.b16 %v2350
          %v2911 = vunpack.c.l.b16 %v2351
          %v2912 = vunpack.c.h.b16 %v2351
          %v2913 = vunpack.c.l.b16 %v2352
          %v2914 = vunpack.c.h.b16 %v2352
          %v2915 = vunpack.c.l.b16 %v2353
          %v2916 = vunpack.c.h.b16 %v2353
          %v2917 = vunpack.c.l.b16 %v2354
          %v2918 = vunpack.c.h.b16 %v2354
          %v2919 = vunpack.c.l.b16 %v2355
          %v2920 = vunpack.c.h.b16 %v2355
          %v2921 = vunpack.c.l.b16 %v2356
          %v2922 = vunpack.c.h.b16 %v2356
          %v2923 = vunpack.c.l.b16 %v2357
          %v2924 = vunpack.c.h.b16 %v2357
          %v2925 = vunpack.c.l.b16 %v2358
          %v2926 = vunpack.c.h.b16 %v2358
          %v2927 = vunpack.c.l.b16 %v2359
          %v2928 = vunpack.c.h.b16 %v2359
          %v2929 = vunpack.c.l.b16 %v2360
          %v2930 = vunpack.c.h.b16 %v2360
          %v2931 = vunpack.c.l.b16 %v2361
          %v2932 = vunpack.c.h.b16 %v2361
          %v2933 = vunpack.c.l.b16 %v2362
          %v2934 = vunpack.c.h.b16 %v2362
          %v2935 = vunpack.c.l.b16 %v2363
          %v2936 = vunpack.c.h.b16 %v2363
          %v2937 = vunpack.c.l.b16 %v2364
          %v2938 = vunpack.c.h.b16 %v2364
          %v2939 = vunpack.c.l.b16 %v2365
          %v2940 = vunpack.c.h.b16 %v2365
          %v2941 = vunpack.c.l.b16 %v2366
          %v2942 = vunpack.c.h.b16 %v2366
          %v2943 = vunpack.c.l.b16 %v2367
          %v2944 = vunpack.c.h.b16 %v2367
          %v2945 = vunpack.c.l.b16 %v2368
          %v2946 = vunpack.c.h.b16 %v2368
          %v2947 = vunpack.c.l.b16 %v2369
          %v2948 = vunpack.c.h.b16 %v2369
          %v2949 = vunpack.c.l.b16 %v2370
          %v2950 = vunpack.c.h.b16 %v2370
          %v2951 = vunpack.c.l.b16 %v2371
          %v2952 = vunpack.c.h.b16 %v2371
          %v2953 = vunpack.c.l.b16 %v2372
          %v2954 = vunpack.c.h.b16 %v2372
          %v2955 = vunpack.c.l.b16 %v2373
          %v2956 = vunpack.c.h.b16 %v2373
          %v2957 = vunpack.c.l.b16 %v2374
          %v2958 = vunpack.c.h.b16 %v2374
          %v2959 = vunpack.c.l.b16 %v2375
          %v2960 = vunpack.c.h.b16 %v2375
          %v2961 = vunpack.c.l.b16 %v2376
          %v2962 = vunpack.c.h.b16 %v2376
          %v2963 = vunpack.c.l.b16 %v2377
          %v2964 = vunpack.c.h.b16 %v2377
          %v2965 = vunpack.c.l.b16 %v2378
          %v2966 = vunpack.c.h.b16 %v2378
          %v2967 = vunpack.c.l.b16 %v2379
          %v2968 = vunpack.c.h.b16 %v2379
          %v2969 = vunpack.c.l.b16 %v2380
          %v2970 = vunpack.c.h.b16 %v2380
          %v2971 = vunpack.c.l.b16 %v2381
          %v2972 = vunpack.c.h.b16 %v2381
          %v2973 = vunpack.c.l.b16 %v2382
          %v2974 = vunpack.c.h.b16 %v2382
          %v2975 = vunpack.c.l.b16 %v2383
          %v2976 = vunpack.c.h.b16 %v2383
          %v2977 = vunpack.c.l.b16 %v2384
          %v2978 = vunpack.c.h.b16 %v2384
          %v2979 = vunpack.c.l.b16 %v2385
          %v2980 = vunpack.c.h.b16 %v2385
          %v2981 = vunpack.c.l.b16 %v2386
          %v2982 = vunpack.c.h.b16 %v2386
          %v2983 = vunpack.c.l.b16 %v2387
          %v2984 = vunpack.c.h.b16 %v2387
          %v2985 = vunpack.c.l.b16 %v2388
          %v2986 = vunpack.c.h.b16 %v2388
          %v2987 = vunpack.c.l.b16 %v2389
          %v2988 = vunpack.c.h.b16 %v2389
          %v2989 = vunpack.c.l.b16 %v2390
          %v2990 = vunpack.c.h.b16 %v2390
          %v2991 = vunpack.c.l.b16 %v2391
          %v2992 = vunpack.c.h.b16 %v2391
          %v2993 = vunpack.c.l.b16 %v2392
          %v2994 = vunpack.c.h.b16 %v2392
          %v2995 = vunpack.c.l.b16 %v2393
          %v2996 = vunpack.c.h.b16 %v2393
          %v2997 = vunpack.c.l.b16 %v2394
          %v2998 = vunpack.c.h.b16 %v2394
          %v2999 = vunpack.c.l.b16 %v2395
          %v3000 = vunpack.c.h.b16 %v2395
          %v3001 = vunpack.c.l.b16 %v2396
          %v3002 = vunpack.c.h.b16 %v2396
          %v3003 = vunpack.c.l.b16 %v2397
          %v3004 = vunpack.c.h.b16 %v2397
          %v3005 = vunpack.c.l.b16 %v2398
          %v3006 = vunpack.c.h.b16 %v2398
          %v3007 = vunpack.c.l.b16 %v2399
          %v3008 = vunpack.c.h.b16 %v2399
          %v3009 = vunpack.c.l.b16 %v2400
          %v3010 = vunpack.c.h.b16 %v2400
          %v3011 = vunpack.c.l.b16 %v2401
          %v3012 = vunpack.c.h.b16 %v2401
          %v3013 = vunpack.c.l.b16 %v2402
          %v3014 = vunpack.c.h.b16 %v2402
          %v3015 = vunpack.c.l.b16 %v2403
          %v3016 = vunpack.c.h.b16 %v2403
          %v3017 = vunpack.c.l.b16 %v2404
          %v3018 = vunpack.c.h.b16 %v2404
          %v3019 = vunpack.c.l.b16 %v2405
          %v3020 = vunpack.c.h.b16 %v2405
          %v3021 = vunpack.c.l.b16 %v2406
          %v3022 = vunpack.c.h.b16 %v2406
          %v3023 = vunpack.c.l.b16 %v2407
          %v3024 = vunpack.c.h.b16 %v2407
          %v3025 = vunpack.c.l.b16 %v2408
          %v3026 = vunpack.c.h.b16 %v2408
          %v3027 = vunpack.c.l.b16 %v2409
          %v3028 = vunpack.c.h.b16 %v2409
          %v3029 = vunpack.c.l.b16 %v2410
          %v3030 = vunpack.c.h.b16 %v2410
          %v3031 = vunpack.c.l.b16 %v2411
          %v3032 = vunpack.c.h.b16 %v2411
          %v3033 = vunpack.c.l.b16 %v2412
          %v3034 = vunpack.c.h.b16 %v2412
          %v3035 = vunpack.c.l.b16 %v2413
          %v3036 = vunpack.c.h.b16 %v2413
          %v3037 = vunpack.c.l.b16 %v2414
          %v3038 = vunpack.c.h.b16 %v2414
          %v3039 = vunpack.c.l.b16 %v2415
          %v3040 = vunpack.c.h.b16 %v2415
          %v3041 = vunpack.c.l.b16 %v2416
          %v3042 = vunpack.c.h.b16 %v2416
          %v3043 = vunpack.c.l.b16 %v2417
          %v3044 = vunpack.c.h.b16 %v2417
          %v3045 = vunpack.c.l.b16 %v2418
          %v3046 = vunpack.c.h.b16 %v2418
          %v3047 = vunpack.c.l.b16 %v2419
          %v3048 = vunpack.c.h.b16 %v2419
          %v3049 = vunpack.c.l.b16 %v2420
          %v3050 = vunpack.c.h.b16 %v2420
          %v3051 = vunpack.c.l.b16 %v2421
          %v3052 = vunpack.c.h.b16 %v2421
          %v3053 = vunpack.c.l.b16 %v2422
          %v3054 = vunpack.c.h.b16 %v2422
          %v3055 = vunpack.c.l.b16 %v2423
          %v3056 = vunpack.c.h.b16 %v2423
          %v3057 = vunpack.c.l.b16 %v2424
          %v3058 = vunpack.c.h.b16 %v2424
          %v3059 = vunpack.c.l.b16 %v2425
          %v3060 = vunpack.c.h.b16 %v2425
          %v3061 = vunpack.c.l.b16 %v2426
          %v3062 = vunpack.c.h.b16 %v2426
          %v3063 = vunpack.c.l.b16 %v2427
          %v3064 = vunpack.c.h.b16 %v2427
          %v3065 = vunpack.c.l.b16 %v2428
          %v3066 = vunpack.c.h.b16 %v2428
          %v3067 = vunpack.c.l.b16 %v2429
          %v3068 = vunpack.c.h.b16 %v2429
          %v3069 = vunpack.c.l.b16 %v2430
          %v3070 = vunpack.c.h.b16 %v2430
          %v3071 = vunpack.c.l.b16 %v2431
          %v3072 = vunpack.c.h.b16 %v2431
          %v3073 = vunpack.c.l.b16 %v2432
          %v3074 = vunpack.c.h.b16 %v2432
          %v3075 = vunpack.c.l.b16 %v2433
          %v3076 = vunpack.c.h.b16 %v2433
          %v3077 = vunpack.c.l.b16 %v2434
          %v3078 = vunpack.c.h.b16 %v2434
          %v3079 = vunpack.c.l.b16 %v2435
          %v3080 = vunpack.c.h.b16 %v2435
          %v3081 = vunpack.c.l.b16 %v2436
          %v3082 = vunpack.c.h.b16 %v2436
          %v3083 = vunpack.c.l.b16 %v2437
          %v3084 = vunpack.c.h.b16 %v2437
          %v3085 = vunpack.c.l.b16 %v2438
          %v3086 = vunpack.c.h.b16 %v2438
          %v3087 = vunpack.c.l.b16 %v2439
          %v3088 = vunpack.c.h.b16 %v2439
          %v3089 = vunpack.c.l.b16 %v2440
          %v3090 = vunpack.c.h.b16 %v2440
          %v3091 = vunpack.c.l.b16 %v2441
          %v3092 = vunpack.c.h.b16 %v2441
          %v3093 = vunpack.c.l.b16 %v2442
          %v3094 = vunpack.c.h.b16 %v2442
          %v3095 = vunpack.c.l.b16 %v2443
          %v3096 = vunpack.c.h.b16 %v2443
          %v3097 = vunpack.c.l.b16 %v2444
          %v3098 = vunpack.c.h.b16 %v2444
          %v3099 = vunpack.c.l.b16 %v2445
          %v3100 = vunpack.c.h.b16 %v2445
          %v3101 = vunpack.c.l.b16 %v2446
          %v3102 = vunpack.c.h.b16 %v2446
          %v3103 = vunpack.c.l.b16 %v2447
          %v3104 = vunpack.c.h.b16 %v2447
          %v3105 = vunpack.c.l.b16 %v2448
          %v3106 = vunpack.c.h.b16 %v2448
          %v3107 = vunpack.c.l.b16 %v2449
          %v3108 = vunpack.c.h.b16 %v2449
          %v3109 = vunpack.c.l.b16 %v2450
          %v3110 = vunpack.c.h.b16 %v2450
          %v3111 = vunpack.c.l.b16 %v2451
          %v3112 = vunpack.c.h.b16 %v2451
          %v3113 = vunpack.c.l.b16 %v2452
          %v3114 = vunpack.c.h.b16 %v2452
          %v3115 = vunpack.c.l.b16 %v2453
          %v3116 = vunpack.c.h.b16 %v2453
          %v3117 = vunpack.c.l.b16 %v2454
          %v3118 = vunpack.c.h.b16 %v2454
          %v3119 = vunpack.c.l.b16 %v2455
          %v3120 = vunpack.c.h.b16 %v2455
          %v3121 = vunpack.c.l.b16 %v2456
          %v3122 = vunpack.c.h.b16 %v2456
          %v3123 = vunpack.c.l.b16 %v2457
          %v3124 = vunpack.c.h.b16 %v2457
          %v3125 = vunpack.c.l.b16 %v2458
          %v3126 = vunpack.c.h.b16 %v2458
          %v3127 = vunpack.c.l.b16 %v2459
          %v3128 = vunpack.c.h.b16 %v2459
          %v3129 = vunpack.c.l.b16 %v2460
          %v3130 = vunpack.c.h.b16 %v2460
          %v3131 = vunpack.c.l.b16 %v2461
          %v3132 = vunpack.c.h.b16 %v2461
          %v3133 = vunpack.c.l.b16 %v2462
          %v3134 = vunpack.c.h.b16 %v2462
          %v3135 = vunpack.c.l.b16 %v2463
          %v3136 = vunpack.c.h.b16 %v2463
          %v3137 = vunpack.c.l.b16 %v2464
          %v3138 = vunpack.c.h.b16 %v2464
          %v3139 = vunpack.c.l.b16 %v2465
          %v3140 = vunpack.c.h.b16 %v2465
          %v3141 = vunpack.c.l.b16 %v2466
          %v3142 = vunpack.c.h.b16 %v2466
          %v3143 = vunpack.c.l.b16 %v2467
          %v3144 = vunpack.c.h.b16 %v2467
          %v3145 = vunpack.c.l.b16 %v2468
          %v3146 = vunpack.c.h.b16 %v2468
          %v3147 = vunpack.c.l.b16 %v2469
          %v3148 = vunpack.c.h.b16 %v2469
          %v3149 = vunpack.c.l.b16 %v2470
          %v3150 = vunpack.c.h.b16 %v2470
          %v3151 = vunpack.c.l.b16 %v2471
          %v3152 = vunpack.c.h.b16 %v2471
          %v3153 = vunpack.c.l.b16 %v2472
          %v3154 = vunpack.c.h.b16 %v2472
          %v3155 = vunpack.c.l.b16 %v2473
          %v3156 = vunpack.c.h.b16 %v2473
          %v3157 = vunpack.c.l.b16 %v2474
          %v3158 = vunpack.c.h.b16 %v2474
          %v3159 = vunpack.c.l.b16 %v2475
          %v3160 = vunpack.c.h.b16 %v2475
          %v3161 = vunpack.c.l.b16 %v2476
          %v3162 = vunpack.c.h.b16 %v2476
          %v3163 = vunpack.c.l.b16 %v2477
          %v3164 = vunpack.c.h.b16 %v2477
          %v3165 = vunpack.c.l.b16 %v2478
          %v3166 = vunpack.c.h.b16 %v2478
          %v3167 = vunpack.c.l.b16 %v2479
          %v3168 = vunpack.c.h.b16 %v2479
          %v3169 = vunpack.c.l.b16 %v2480
          %v3170 = vunpack.c.h.b16 %v2480
          %v3171 = vunpack.c.l.b16 %v2481
          %v3172 = vunpack.c.h.b16 %v2481
          %v3173 = vunpack.c.l.b16 %v2482
          %v3174 = vunpack.c.h.b16 %v2482
          %v3175 = vunpack.c.l.b16 %v2483
          %v3176 = vunpack.c.h.b16 %v2483
          %v3177 = vunpack.c.l.b16 %v2484
          %v3178 = vunpack.c.h.b16 %v2484
          %v3179 = vunpack.c.l.b16 %v2485
          %v3180 = vunpack.c.h.b16 %v2485
          %v3181 = vunpack.c.l.b16 %v2486
          %v3182 = vunpack.c.h.b16 %v2486
          %v3183 = vunpack.c.l.b16 %v2487
          %v3184 = vunpack.c.h.b16 %v2487
          %v3185 = vunpack.c.l.b16 %v2488
          %v3186 = vunpack.c.h.b16 %v2488
          %v3187 = vunpack.c.l.b16 %v2489
          %v3188 = vunpack.c.h.b16 %v2489
          %v3189 = vunpack.c.l.b16 %v2490
          %v3190 = vunpack.c.h.b16 %v2490
          %v3191 = vunpack.c.l.b16 %v2491
          %v3192 = vunpack.c.h.b16 %v2491
          %v3193 = vunpack.c.l.b16 %v2492
          %v3194 = vunpack.c.h.b16 %v2492
          %v3195 = vunpack.c.l.b16 %v2493
          %v3196 = vunpack.c.h.b16 %v2493
          %v3197 = vunpack.c.l.b16 %v2494
          %v3198 = vunpack.c.h.b16 %v2494
          %v3199 = vunpack.c.l.b16 %v2495
          %v3200 = vunpack.c.h.b16 %v2495
          %v3201 = vunpack.c.l.b16 %v2496
          %v3202 = vunpack.c.h.b16 %v2496
          %v3203 = vunpack.c.l.b16 %v2497
          %v3204 = vunpack.c.h.b16 %v2497
          %v3205 = vunpack.c.l.b16 %v2498
          %v3206 = vunpack.c.h.b16 %v2498
          %v3207 = vunpack.c.l.b16 %v2499
          %v3208 = vunpack.c.h.b16 %v2499
          %v3209 = vunpack.c.l.b16 %v2500
          %v3210 = vunpack.c.h.b16 %v2500
          %v3211 = vunpack.c.l.b16 %v2501
          %v3212 = vunpack.c.h.b16 %v2501
          %v3213 = vunpack.c.l.b16 %v2502
          %v3214 = vunpack.c.h.b16 %v2502
          %v3215 = vunpack.c.l.b16 %v2503
          %v3216 = vunpack.c.h.b16 %v2503
          %v3217 = vunpack.c.l.b16 %v2504
          %v3218 = vunpack.c.h.b16 %v2504
          %v3219 = vunpack.c.l.b16 %v2505
          %v3220 = vunpack.c.h.b16 %v2505
          %v3221 = vunpack.c.l.b16 %v2506
          %v3222 = vunpack.c.h.b16 %v2506
          %v3223 = vunpack.c.l.b16 %v2507
          %v3224 = vunpack.c.h.b16 %v2507
          %v3225 = vunpack.c.l.b16 %v2508
          %v3226 = vunpack.c.h.b16 %v2508
          %v3227 = vunpack.c.l.b16 %v2509
          %v3228 = vunpack.c.h.b16 %v2509
          %v3229 = vunpack.c.l.b16 %v2510
          %v3230 = vunpack.c.h.b16 %v2510
          %v3231 = vunpack.c.l.b16 %v2511
          %v3232 = vunpack.c.h.b16 %v2511
          %v3233 = vunpack.c.l.b16 %v2512
          %v3234 = vunpack.c.h.b16 %v2512
          %v3235 = vunpack.c.l.b16 %v2513
          %v3236 = vunpack.c.h.b16 %v2513
          %v3237 = vunpack.c.l.b16 %v2514
          %v3238 = vunpack.c.h.b16 %v2514
          %v3239 = vunpack.c.l.b16 %v2515
          %v3240 = vunpack.c.h.b16 %v2515
          %v3241 = vunpack.c.l.b16 %v2516
          %v3242 = vunpack.c.h.b16 %v2516
          %v3243 = vunpack.c.l.b16 %v2517
          %v3244 = vunpack.c.h.b16 %v2517
          %v3245 = vunpack.c.l.b16 %v2518
          %v3246 = vunpack.c.h.b16 %v2518
          %v3247 = vunpack.c.l.b16 %v2519
          %v3248 = vunpack.c.h.b16 %v2519
          %v3249 = vunpack.c.l.b16 %v2520
          %v3250 = vunpack.c.h.b16 %v2520
          %v3251 = vunpack.c.l.b16 %v2521
          %v3252 = vunpack.c.h.b16 %v2521
          %v3253 = vunpack.c.l.b16 %v2522
          %v3254 = vunpack.c.h.b16 %v2522
          %v3255 = vunpack.c.l.b16 %v2523
          %v3256 = vunpack.c.h.b16 %v2523
          %v3257 = vunpack.c.l.b16 %v2524
          %v3258 = vunpack.c.h.b16 %v2524
          %v3259 = vunpack.c.l.b16 %v2525
          %v3260 = vunpack.c.h.b16 %v2525
          %v3261 = vunpack.c.l.b16 %v2526
          %v3262 = vunpack.c.h.b16 %v2526
          %v3263 = vunpack.c.l.b16 %v2527
          %v3264 = vunpack.c.h.b16 %v2527
          %v3265 = vunpack.c.l.b16 %v2528
          %v3266 = vunpack.c.h.b16 %v2528
          %v3267 = vunpack.c.l.b16 %v2529
          %v3268 = vunpack.c.h.b16 %v2529
          %v3269 = vunpack.c.l.b16 %v2530
          %v3270 = vunpack.c.h.b16 %v2530
          %v3271 = vunpack.c.l.b16 %v2531
          %v3272 = vunpack.c.h.b16 %v2531
          %v3273 = vunpack.c.l.b16 %v2532
          %v3274 = vunpack.c.h.b16 %v2532
          %v3275 = vunpack.c.l.b16 %v2533
          %v3276 = vunpack.c.h.b16 %v2533
          %v3277 = vunpack.c.l.b16 %v2534
          %v3278 = vunpack.c.h.b16 %v2534
          %v3279 = vunpack.c.l.b16 %v2535
          %v3280 = vunpack.c.h.b16 %v2535
          %v3281 = vunpack.c.l.b16 %v2536
          %v3282 = vunpack.c.h.b16 %v2536
          %v3283 = vunpack.c.l.b16 %v2537
          %v3284 = vunpack.c.h.b16 %v2537
          %v3285 = vunpack.c.l.b16 %v2538
          %v3286 = vunpack.c.h.b16 %v2538
          %v3287 = vunpack.c.l.b16 %v2539
          %v3288 = vunpack.c.h.b16 %v2539
          %v3289 = vunpack.c.l.b16 %v2540
          %v3290 = vunpack.c.h.b16 %v2540
          %v3291 = vunpack.c.l.b16 %v2541
          %v3292 = vunpack.c.h.b16 %v2541
          %v3293 = vunpack.c.l.b16 %v2542
          %v3294 = vunpack.c.h.b16 %v2542
          %v3295 = vunpack.c.l.b16 %v2543
          %v3296 = vunpack.c.h.b16 %v2543
          %v3297 = vunpack.c.l.b16 %v2544
          %v3298 = vunpack.c.h.b16 %v2544
          %v3299 = vunpack.c.l.b16 %v2545
          %v3300 = vunpack.c.h.b16 %v2545
          %v3301 = vunpack.c.l.b16 %v2546
          %v3302 = vunpack.c.h.b16 %v2546
          %v3303 = vunpack.c.l.b16 %v2547
          %v3304 = vunpack.c.h.b16 %v2547
          %v3305 = vunpack.c.l.b16 %v2548
          %v3306 = vunpack.c.h.b16 %v2548
          %v3307 = vunpack.c.l.b16 %v2549
          %v3308 = vunpack.c.h.b16 %v2549
          %v3309 = vunpack.c.l.b16 %v2550
          %v3310 = vunpack.c.h.b16 %v2550
          %v3311 = vunpack.c.l.b16 %v2551
          %v3312 = vunpack.c.h.b16 %v2551
          %v3313 = vunpack.c.l.b16 %v2552
          %v3314 = vunpack.c.h.b16 %v2552
          %v3315 = vunpack.c.l.b16 %v2553
          %v3316 = vunpack.c.h.b16 %v2553
          %v3317 = vunpack.c.l.b16 %v2554
          %v3318 = vunpack.c.h.b16 %v2554
          %v3319 = vunpack.c.l.b16 %v2555
          %v3320 = vunpack.c.h.b16 %v2555
          %v3321 = vunpack.c.l.b16 %v2556
          %v3322 = vunpack.c.h.b16 %v2556
          %v3323 = vunpack.c.l.b16 %v2557
          %v3324 = vunpack.c.h.b16 %v2557
          %v3325 = vunpack.c.l.b16 %v2558
          %v3326 = vunpack.c.h.b16 %v2558
          %v3327 = vunpack.c.l.b16 %v2559
          %v3328 = vunpack.c.h.b16 %v2559
          %v3329 = vpack.c.b16 %v2821, %v2817
          %v3330 = vpack.c.b16 %v2822, %v2818
          %v3331 = vpack.c.b16 %v2823, %v2819
          %v3332 = vpack.c.b16 %v2824, %v2820
          %v3333 = vpack.c.b16 %v2829, %v2825
          %v3334 = vpack.c.b16 %v2830, %v2826
          %v3335 = vpack.c.b16 %v2831, %v2827
          %v3336 = vpack.c.b16 %v2832, %v2828
          %v3337 = vpack.c.b16 %v2837, %v2833
          %v3338 = vpack.c.b16 %v2838, %v2834
          %v3339 = vpack.c.b16 %v2839, %v2835
          %v3340 = vpack.c.b16 %v2840, %v2836
          %v3341 = vpack.c.b16 %v2845, %v2841
          %v3342 = vpack.c.b16 %v2846, %v2842
          %v3343 = vpack.c.b16 %v2847, %v2843
          %v3344 = vpack.c.b16 %v2848, %v2844
          %v3345 = vpack.c.b16 %v2853, %v2849
          %v3346 = vpack.c.b16 %v2854, %v2850
          %v3347 = vpack.c.b16 %v2855, %v2851
          %v3348 = vpack.c.b16 %v2856, %v2852
          %v3349 = vpack.c.b16 %v2861, %v2857
          %v3350 = vpack.c.b16 %v2862, %v2858
          %v3351 = vpack.c.b16 %v2863, %v2859
          %v3352 = vpack.c.b16 %v2864, %v2860
          %v3353 = vpack.c.b16 %v2869, %v2865
          %v3354 = vpack.c.b16 %v2870, %v2866
          %v3355 = vpack.c.b16 %v2871, %v2867
          %v3356 = vpack.c.b16 %v2872, %v2868
          %v3357 = vpack.c.b16 %v2877, %v2873
          %v3358 = vpack.c.b16 %v2878, %v2874
          %v3359 = vpack.c.b16 %v2879, %v2875
          %v3360 = vpack.c.b16 %v2880, %v2876
          %v3361 = vpack.c.b16 %v2885, %v2881
          %v3362 = vpack.c.b16 %v2886, %v2882
          %v3363 = vpack.c.b16 %v2887, %v2883
          %v3364 = vpack.c.b16 %v2888, %v2884
          %v3365 = vpack.c.b16 %v2893, %v2889
          %v3366 = vpack.c.b16 %v2894, %v2890
          %v3367 = vpack.c.b16 %v2895, %v2891
          %v3368 = vpack.c.b16 %v2896, %v2892
          %v3369 = vpack.c.b16 %v2901, %v2897
          %v3370 = vpack.c.b16 %v2902, %v2898
          %v3371 = vpack.c.b16 %v2903, %v2899
          %v3372 = vpack.c.b16 %v2904, %v2900
          %v3373 = vpack.c.b16 %v2909, %v2905
          %v3374 = vpack.c.b16 %v2910, %v2906
          %v3375 = vpack.c.b16 %v2911, %v2907
          %v3376 = vpack.c.b16 %v2912, %v2908
          %v3377 = vpack.c.b16 %v2917, %v2913
          %v3378 = vpack.c.b16 %v2918, %v2914
          %v3379 = vpack.c.b16 %v2919, %v2915
          %v3380 = vpack.c.b16 %v2920, %v2916
          %v3381 = vpack.c.b16 %v2925, %v2921
          %v3382 = vpack.c.b16 %v2926, %v2922
          %v3383 = vpack.c.b16 %v2927, %v2923
          %v3384 = vpack.c.b16 %v2928, %v2924
          %v3385 = vpack.c.b16 %v2933, %v2929
          %v3386 = vpack.c.b16 %v2934, %v2930
          %v3387 = vpack.c.b16 %v2935, %v2931
          %v3388 = vpack.c.b16 %v2936, %v2932
          %v3389 = vpack.c.b16 %v2941, %v2937
          %v3390 = vpack.c.b16 %v2942, %v2938
          %v3391 = vpack.c.b16 %v2943, %v2939
          %v3392 = vpack.c.b16 %v2944, %v2940
          %v3393 = vpack.c.b16 %v2949, %v2945
          %v3394 = vpack.c.b16 %v2950, %v2946
          %v3395 = vpack.c.b16 %v2951, %v2947
          %v3396 = vpack.c.b16 %v2952, %v2948
          %v3397 = vpack.c.b16 %v2957, %v2953
          %v3398 = vpack.c.b16 %v2958, %v2954
          %v3399 = vpack.c.b16 %v2959, %v2955
          %v3400 = vpack.c.b16 %v2960, %v2956
          %v3401 = vpack.c.b16 %v2965, %v2961
          %v3402 = vpack.c.b16 %v2966, %v2962
          %v3403 = vpack.c.b16 %v2967, %v2963
          %v3404 = vpack.c.b16 %v2968, %v2964
          %v3405 = vpack.c.b16 %v2973, %v2969
          %v3406 = vpack.c.b16 %v2974, %v2970
          %v3407 = vpack.c.b16 %v2975, %v2971
          %v3408 = vpack.c.b16 %v2976, %v2972
          %v3409 = vpack.c.b16 %v2981, %v2977
          %v3410 = vpack.c.b16 %v2982, %v2978
          %v3411 = vpack.c.b16 %v2983, %v2979
          %v3412 = vpack.c.b16 %v2984, %v2980
          %v3413 = vpack.c.b16 %v2989, %v2985
          %v3414 = vpack.c.b16 %v2990, %v2986
          %v3415 = vpack.c.b16 %v2991, %v2987
          %v3416 = vpack.c.b16 %v2992, %v2988
          %v3417 = vpack.c.b16 %v2997, %v2993
          %v3418 = vpack.c.b16 %v2998, %v2994
          %v3419 = vpack.c.b16 %v2999, %v2995
          %v3420 = vpack.c.b16 %v3000, %v2996
          %v3421 = vpack.c.b16 %v3005, %v3001
          %v3422 = vpack.c.b16 %v3006, %v3002
          %v3423 = vpack.c.b16 %v3007, %v3003
          %v3424 = vpack.c.b16 %v3008, %v3004
          %v3425 = vpack.c.b16 %v3013, %v3009
          %v3426 = vpack.c.b16 %v3014, %v3010
          %v3427 = vpack.c.b16 %v3015, %v3011
          %v3428 = vpack.c.b16 %v3016, %v3012
          %v3429 = vpack.c.b16 %v3021, %v3017
          %v3430 = vpack.c.b16 %v3022, %v3018
          %v3431 = vpack.c.b16 %v3023, %v3019
          %v3432 = vpack.c.b16 %v3024, %v3020
          %v3433 = vpack.c.b16 %v3029, %v3025
          %v3434 = vpack.c.b16 %v3030, %v3026
          %v3435 = vpack.c.b16 %v3031, %v3027
          %v3436 = vpack.c.b16 %v3032, %v3028
          %v3437 = vpack.c.b16 %v3037, %v3033
          %v3438 = vpack.c.b16 %v3038, %v3034
          %v3439 = vpack.c.b16 %v3039, %v3035
          %v3440 = vpack.c.b16 %v3040, %v3036
          %v3441 = vpack.c.b16 %v3045, %v3041
          %v3442 = vpack.c.b16 %v3046, %v3042
          %v3443 = vpack.c.b16 %v3047, %v3043
          %v3444 = vpack.c.b16 %v3048, %v3044
          %v3445 = vpack.c.b16 %v3053, %v3049
          %v3446 = vpack.c.b16 %v3054, %v3050
          %v3447 = vpack.c.b16 %v3055, %v3051
          %v3448 = vpack.c.b16 %v3056, %v3052
          %v3449 = vpack.c.b16 %v3061, %v3057
          %v3450 = vpack.c.b16 %v3062, %v3058
          %v3451 = vpack.c.b16 %v3063, %v3059
          %v3452 = vpack.c.b16 %v3064, %v3060
          %v3453 = vpack.c.b16 %v3069, %v3065
          %v3454 = vpack.c.b16 %v3070, %v3066
          %v3455 = vpack.c.b16 %v3071, %v3067
          %v3456 = vpack.c.b16 %v3072, %v3068
          %v3457 = vpack.c.b16 %v3077, %v3073
          %v3458 = vpack.c.b16 %v3078, %v3074
          %v3459 = vpack.c.b16 %v3079, %v3075
          %v3460 = vpack.c.b16 %v3080, %v3076
          %v3461 = vpack.c.b16 %v3085, %v3081
          %v3462 = vpack.c.b16 %v3086, %v3082
          %v3463 = vpack.c.b16 %v3087, %v3083
          %v3464 = vpack.c.b16 %v3088, %v3084
          %v3465 = vpack.c.b16 %v3093, %v3089
          %v3466 = vpack.c.b16 %v3094, %v3090
          %v3467 = vpack.c.b16 %v3095, %v3091
          %v3468 = vpack.c.b16 %v3096, %v3092
          %v3469 = vpack.c.b16 %v3101, %v3097
          %v3470 = vpack.c.b16 %v3102, %v3098
          %v3471 = vpack.c.b16 %v3103, %v3099
          %v3472 = vpack.c.b16 %v3104, %v3100
          %v3473 = vpack.c.b16 %v3109, %v3105
          %v3474 = vpack.c.b16 %v3110, %v3106
          %v3475 = vpack.c.b16 %v3111, %v3107
          %v3476 = vpack.c.b16 %v3112, %v3108
          %v3477 = vpack.c.b16 %v3117, %v3113
          %v3478 = vpack.c.b16 %v3118, %v3114
          %v3479 = vpack.c.b16 %v3119, %v3115
          %v3480 = vpack.c.b16 %v3120, %v3116
          %v3481 = vpack.c.b16 %v3125, %v3121
          %v3482 = vpack.c.b16 %v3126, %v3122
          %v3483 = vpack.c.b16 %v3127, %v3123
          %v3484 = vpack.c.b16 %v3128, %v3124
          %v3485 = vpack.c.b16 %v3133, %v3129
          %v3486 = vpack.c.b16 %v3134, %v3130
          %v3487 = vpack.c.b16 %v3135, %v3131
          %v3488 = vpack.c.b16 %v3136, %v3132
          %v3489 = vpack.c.b16 %v3141, %v3137
          %v3490 = vpack.c.b16 %v3142, %v3138
          %v3491 = vpack.c.b16 %v3143, %v3139
          %v3492 = vpack.c.b16 %v3144, %v3140
          %v3493 = vpack.c.b16 %v3149, %v3145
          %v3494 = vpack.c.b16 %v3150, %v3146
          %v3495 = vpack.c.b16 %v3151, %v3147
          %v3496 = vpack.c.b16 %v3152, %v3148
          %v3497 = vpack.c.b16 %v3157, %v3153
          %v3498 = vpack.c.b16 %v3158, %v3154
          %v3499 = vpack.c.b16 %v3159, %v3155
          %v3500 = vpack.c.b16 %v3160, %v3156
          %v3501 = vpack.c.b16 %v3165, %v3161
          %v3502 = vpack.c.b16 %v3166, %v3162
          %v3503 = vpack.c.b16 %v3167, %v3163
          %v3504 = vpack.c.b16 %v3168, %v3164
          %v3505 = vpack.c.b16 %v3173, %v3169
          %v3506 = vpack.c.b16 %v3174, %v3170
          %v3507 = vpack.c.b16 %v3175, %v3171
          %v3508 = vpack.c.b16 %v3176, %v3172
          %v3509 = vpack.c.b16 %v3181, %v3177
          %v3510 = vpack.c.b16 %v3182, %v3178
          %v3511 = vpack.c.b16 %v3183, %v3179
          %v3512 = vpack.c.b16 %v3184, %v3180
          %v3513 = vpack.c.b16 %v3189, %v3185
          %v3514 = vpack.c.b16 %v3190, %v3186
          %v3515 = vpack.c.b16 %v3191, %v3187
          %v3516 = vpack.c.b16 %v3192, %v3188
          %v3517 = vpack.c.b16 %v3197, %v3193
          %v3518 = vpack.c.b16 %v3198, %v3194
          %v3519 = vpack.c.b16 %v3199, %v3195
          %v3520 = vpack.c.b16 %v3200, %v3196
          %v3521 = vpack.c.b16 %v3205, %v3201
          %v3522 = vpack.c.b16 %v3206, %v3202
          %v3523 = vpack.c.b16 %v3207, %v3203
          %v3524 = vpack.c.b16 %v3208, %v3204
          %v3525 = vpack.c.b16 %v3213, %v3209
          %v3526 = vpack.c.b16 %v3214, %v3210
          %v3527 = vpack.c.b16 %v3215, %v3211
          %v3528 = vpack.c.b16 %v3216, %v3212
          %v3529 = vpack.c.b16 %v3221, %v3217
          %v3530 = vpack.c.b16 %v3222, %v3218
          %v3531 = vpack.c.b16 %v3223, %v3219
          %v3532 = vpack.c.b16 %v3224, %v3220
          %v3533 = vpack.c.b16 %v3229, %v3225
          %v3534 = vpack.c.b16 %v3230, %v3226
          %v3535 = vpack.c.b16 %v3231, %v3227
          %v3536 = vpack.c.b16 %v3232, %v3228
          %v3537 = vpack.c.b16 %v3237, %v3233
          %v3538 = vpack.c.b16 %v3238, %v3234
          %v3539 = vpack.c.b16 %v3239, %v3235
          %v3540 = vpack.c.b16 %v3240, %v3236
          %v3541 = vpack.c.b16 %v3245, %v3241
          %v3542 = vpack.c.b16 %v3246, %v3242
          %v3543 = vpack.c.b16 %v3247, %v3243
          %v3544 = vpack.c.b16 %v3248, %v3244
          %v3545 = vpack.c.b16 %v3253, %v3249
          %v3546 = vpack.c.b16 %v3254, %v3250
          %v3547 = vpack.c.b16 %v3255, %v3251
          %v3548 = vpack.c.b16 %v3256, %v3252
          %v3549 = vpack.c.b16 %v3261, %v3257
          %v3550 = vpack.c.b16 %v3262, %v3258
          %v3551 = vpack.c.b16 %v3263, %v3259
          %v3552 = vpack.c.b16 %v3264, %v3260
          %v3553 = vpack.c.b16 %v3269, %v3265
          %v3554 = vpack.c.b16 %v3270, %v3266
          %v3555 = vpack.c.b16 %v3271, %v3267
          %v3556 = vpack.c.b16 %v3272, %v3268
          %v3557 = vpack.c.b16 %v3277, %v3273
          %v3558 = vpack.c.b16 %v3278, %v3274
          %v3559 = vpack.c.b16 %v3279, %v3275
          %v3560 = vpack.c.b16 %v3280, %v3276
          %v3561 = vpack.c.b16 %v3285, %v3281
          %v3562 = vpack.c.b16 %v3286, %v3282
          %v3563 = vpack.c.b16 %v3287, %v3283
          %v3564 = vpack.c.b16 %v3288, %v3284
          %v3565 = vpack.c.b16 %v3293, %v3289
          %v3566 = vpack.c.b16 %v3294, %v3290
          %v3567 = vpack.c.b16 %v3295, %v3291
          %v3568 = vpack.c.b16 %v3296, %v3292
          %v3569 = vpack.c.b16 %v3301, %v3297
          %v3570 = vpack.c.b16 %v3302, %v3298
          %v3571 = vpack.c.b16 %v3303, %v3299
          %v3572 = vpack.c.b16 %v3304, %v3300
          %v3573 = vpack.c.b16 %v3309, %v3305
          %v3574 = vpack.c.b16 %v3310, %v3306
          %v3575 = vpack.c.b16 %v3311, %v3307
          %v3576 = vpack.c.b16 %v3312, %v3308
          %v3577 = vpack.c.b16 %v3317, %v3313
          %v3578 = vpack.c.b16 %v3318, %v3314
          %v3579 = vpack.c.b16 %v3319, %v3315
          %v3580 = vpack.c.b16 %v3320, %v3316
          %v3581 = vpack.c.b16 %v3325, %v3321
          %v3582 = vpack.c.b16 %v3326, %v3322
          %v3583 = vpack.c.b16 %v3327, %v3323
          %v3584 = vpack.c.b16 %v3328, %v3324
          %v3842 = vlaneseq
          %v3843 = vshrl.u32 %v3842, 7
          %v3844 = vsub.s32 0, %v3843
          %v3845 = vrot.slane %v2560, %v3844
          %v3846 = vlaneseq
          %v3847 = vshrl.u32 %v3846, 7
          %v3848 = vsub.s32 1, %v3847
          %v3849 = vrot.slane %v2560, %v3848
          %v3850 = vlaneseq
          %v3851 = vshrl.u32 %v3850, 7
          %v3852 = vsub.s32 2, %v3851
          %v3853 = vrot.slane %v2560, %v3852
          %v3854 = vlaneseq
          %v3855 = vshrl.u32 %v3854, 7
          %v3856 = vsub.s32 3, %v3855
          %v3857 = vrot.slane %v2560, %v3856
          %3862 = vmatprep.subr.bf16.mxu0 %v3330
          %3863 = vmatpush1.bf16.msra.mxu0 %v3329
          %3864 = vmatprep.subr.bf16.mxu0 %v3334
          %3865 = vmatpush1.bf16.msra.mxu0 %v3333
          %3866 = vmatprep.subr.bf16.mxu0 %v3338
          %3867 = vmatpush1.bf16.msra.mxu0 %v3337
          %3868 = vmatprep.subr.bf16.mxu0 %v3342
          %3869 = vmatpush1.bf16.msra.mxu0 %v3341
          %3870 = vmatprep.subr.bf16.mxu0 %v3346
          %3871 = vmatpush1.bf16.msra.mxu0 %v3345
          %3872 = vmatprep.subr.bf16.mxu0 %v3350
          %3873 = vmatpush1.bf16.msra.mxu0 %v3349
          %3874 = vmatprep.subr.bf16.mxu0 %v3354
          %3875 = vmatpush1.bf16.msra.mxu0 %v3353
          %3876 = vmatprep.subr.bf16.mxu0 %v3358
          %3877 = vmatpush1.bf16.msra.mxu0 %v3357
          %3878 = vmatprep.subr.bf16.mxu0 %v3362
          %3879 = vmatpush1.bf16.msra.mxu0 %v3361
          %3880 = vmatprep.subr.bf16.mxu0 %v3366
          %3881 = vmatpush1.bf16.msra.mxu0 %v3365
          %3882 = vmatprep.subr.bf16.mxu0 %v3370
          %3883 = vmatpush1.bf16.msra.mxu0 %v3369
          %3884 = vmatprep.subr.bf16.mxu0 %v3374
          %3885 = vmatpush1.bf16.msra.mxu0 %v3373
          %3886 = vmatprep.subr.bf16.mxu0 %v3378
          %3887 = vmatpush1.bf16.msra.mxu0 %v3377
          %3888 = vmatprep.subr.bf16.mxu0 %v3382
          %3889 = vmatpush1.bf16.msra.mxu0 %v3381
          %3890 = vmatprep.subr.bf16.mxu0 %v3386
          %3891 = vmatpush1.bf16.msra.mxu0 %v3385
          %3892 = vmatprep.subr.bf16.mxu0 %v3390
          %3893 = vmatpush1.bf16.msra.mxu0 %v3389
          %3894 = vmatprep.mubr.bf16.mxu0 %v2297
          %3895 = vmatmul.mubr.bf16.gmra.mrb[0].mxu0 %v2296
          %v3896 = vpop.f32.mrb[0].mxu0
          %v3897 = vadd.f32 %v3845, %v3896
          %v3898 = vpop.f32.mrb[0].mxu0
          %v3899 = vadd.f32 %v3849, %v3898
          %v3900 = vpop.f32.mrb[0].mxu0
          %v3901 = vpop.f32.mrb[0].mxu0
          %3902 = vdwg.mxu0
          %3903 = vmatprep.subr.bf16.mxu0 %v3394
          %3904 = vmatpush1.bf16.msra.mxu0 %v3393
          %3905 = vmatprep.subr.bf16.mxu0 %v3398
          %3906 = vmatpush1.bf16.msra.mxu0 %v3397
          %3907 = vmatprep.subr.bf16.mxu0 %v3402
          %3908 = vmatpush1.bf16.msra.mxu0 %v3401
          %3909 = vmatprep.subr.bf16.mxu0 %v3406
          %3910 = vmatpush1.bf16.msra.mxu0 %v3405
          %3911 = vmatprep.subr.bf16.mxu0 %v3410
          %3912 = vmatpush1.bf16.msra.mxu0 %v3409
          %3913 = vmatprep.subr.bf16.mxu0 %v3414
          %3914 = vmatpush1.bf16.msra.mxu0 %v3413
          %3915 = vmatprep.subr.bf16.mxu0 %v3418
          %3916 = vmatpush1.bf16.msra.mxu0 %v3417
          %3917 = vmatprep.subr.bf16.mxu0 %v3422
          %3918 = vmatpush1.bf16.msra.mxu0 %v3421
          %3919 = vmatprep.subr.bf16.mxu0 %v3426
          %3920 = vmatpush1.bf16.msra.mxu0 %v3425
          %3921 = vmatprep.subr.bf16.mxu0 %v3430
          %3922 = vmatpush1.bf16.msra.mxu0 %v3429
          %3923 = vmatprep.subr.bf16.mxu0 %v3434
          %3924 = vmatpush1.bf16.msra.mxu0 %v3433
          %3925 = vmatprep.subr.bf16.mxu0 %v3438
          %3926 = vmatpush1.bf16.msra.mxu0 %v3437
          %3927 = vmatprep.subr.bf16.mxu0 %v3442
          %3928 = vmatpush1.bf16.msra.mxu0 %v3441
          %3929 = vmatprep.subr.bf16.mxu0 %v3446
          %3930 = vmatpush1.bf16.msra.mxu0 %v3445
          %3931 = vmatprep.subr.bf16.mxu0 %v3450
          %3932 = vmatpush1.bf16.msra.mxu0 %v3449
          %3933 = vmatprep.subr.bf16.mxu0 %v3454
          %3934 = vmatpush1.bf16.msra.mxu0 %v3453
          %3935 = vmatprep.mubr.bf16.mxu0 %v2299
          %3936 = vmatmul.mubr.bf16.gmra.mrb[0].mxu0 %v2298
          %v3937 = vpop.f32.mrb[0].mxu0
          %v3938 = vadd.f32 %v3897, %v3937
          %v3939 = vpop.f32.mrb[0].mxu0
          %v3940 = vadd.f32 %v3899, %v3939
          %v3941 = vpop.f32.mrb[0].mxu0
          %v3942 = vpop.f32.mrb[0].mxu0
          %3943 = vdwg.mxu0
          %3944 = vmatprep.subr.bf16.mxu0 %v3458
          %3945 = vmatpush1.bf16.msra.mxu0 %v3457
          %3946 = vmatprep.subr.bf16.mxu0 %v3462
          %3947 = vmatpush1.bf16.msra.mxu0 %v3461
          %3948 = vmatprep.subr.bf16.mxu0 %v3466
          %3949 = vmatpush1.bf16.msra.mxu0 %v3465
          %3950 = vmatprep.subr.bf16.mxu0 %v3470
          %3951 = vmatpush1.bf16.msra.mxu0 %v3469
          %3952 = vmatprep.subr.bf16.mxu0 %v3474
          %3953 = vmatpush1.bf16.msra.mxu0 %v3473
          %3954 = vmatprep.subr.bf16.mxu0 %v3478
          %3955 = vmatpush1.bf16.msra.mxu0 %v3477
          %3956 = vmatprep.subr.bf16.mxu0 %v3482
          %3957 = vmatpush1.bf16.msra.mxu0 %v3481
          %3958 = vmatprep.subr.bf16.mxu0 %v3486
          %3959 = vmatpush1.bf16.msra.mxu0 %v3485
          %3960 = vmatprep.subr.bf16.mxu0 %v3490
          %3961 = vmatpush1.bf16.msra.mxu0 %v3489
          %3962 = vmatprep.subr.bf16.mxu0 %v3494
          %3963 = vmatpush1.bf16.msra.mxu0 %v3493
          %3964 = vmatprep.subr.bf16.mxu0 %v3498
          %3965 = vmatpush1.bf16.msra.mxu0 %v3497
          %3966 = vmatprep.subr.bf16.mxu0 %v3502
          %3967 = vmatpush1.bf16.msra.mxu0 %v3501
          %3968 = vmatprep.subr.bf16.mxu0 %v3506
          %3969 = vmatpush1.bf16.msra.mxu0 %v3505
          %3970 = vmatprep.subr.bf16.mxu0 %v3510
          %3971 = vmatpush1.bf16.msra.mxu0 %v3509
          %3972 = vmatprep.subr.bf16.mxu0 %v3514
          %3973 = vmatpush1.bf16.msra.mxu0 %v3513
          %3974 = vmatprep.subr.bf16.mxu0 %v3518
          %3975 = vmatpush1.bf16.msra.mxu0 %v3517
          %3976 = vmatprep.mubr.bf16.mxu0 %v2301
          %3977 = vmatmul.mubr.bf16.gmra.mrb[0].mxu0 %v2300
          %v3978 = vpop.f32.mrb[0].mxu0
          %v3979 = vadd.f32 %v3938, %v3978
          %v3980 = vpop.f32.mrb[0].mxu0
          %v3981 = vadd.f32 %v3940, %v3980
          %v3982 = vpop.f32.mrb[0].mxu0
          %v3983 = vpop.f32.mrb[0].mxu0
          %3984 = vdwg.mxu0
          %3985 = vmatprep.subr.bf16.mxu0 %v3522
          %3986 = vmatpush1.bf16.msra.mxu0 %v3521
          %3987 = vmatprep.subr.bf16.mxu0 %v3526
          %3988 = vmatpush1.bf16.msra.mxu0 %v3525
          %3989 = vmatprep.subr.bf16.mxu0 %v3530
          %3990 = vmatpush1.bf16.msra.mxu0 %v3529
          %3991 = vmatprep.subr.bf16.mxu0 %v3534
          %3992 = vmatpush1.bf16.msra.mxu0 %v3533
          %3993 = vmatprep.subr.bf16.mxu0 %v3538
          %3994 = vmatpush1.bf16.msra.mxu0 %v3537
          %3995 = vmatprep.subr.bf16.mxu0 %v3542
          %3996 = vmatpush1.bf16.msra.mxu0 %v3541
          %3997 = vmatprep.subr.bf16.mxu0 %v3546
          %3998 = vmatpush1.bf16.msra.mxu0 %v3545
          %3999 = vmatprep.subr.bf16.mxu0 %v3550
          %4000 = vmatpush1.bf16.msra.mxu0 %v3549
          %4001 = vmatprep.subr.bf16.mxu0 %v3554
          %4002 = vmatpush1.bf16.msra.mxu0 %v3553
          %4003 = vmatprep.subr.bf16.mxu0 %v3558
          %4004 = vmatpush1.bf16.msra.mxu0 %v3557
          %4005 = vmatprep.subr.bf16.mxu0 %v3562
          %4006 = vmatpush1.bf16.msra.mxu0 %v3561
          %4007 = vmatprep.subr.bf16.mxu0 %v3566
          %4008 = vmatpush1.bf16.msra.mxu0 %v3565
          %4009 = vmatprep.subr.bf16.mxu0 %v3570
          %4010 = vmatpush1.bf16.msra.mxu0 %v3569
          %4011 = vmatprep.subr.bf16.mxu0 %v3574
          %4012 = vmatpush1.bf16.msra.mxu0 %v3573
          %4013 = vmatprep.subr.bf16.mxu0 %v3578
          %4014 = vmatpush1.bf16.msra.mxu0 %v3577
          %4015 = vmatprep.subr.bf16.mxu0 %v3582
          %4016 = vmatpush1.bf16.msra.mxu0 %v3581
          %4017 = vmatprep.mubr.bf16.mxu0 %v2303
          %4018 = vmatmul.mubr.bf16.gmra.mrb[0].mxu0 %v2302
          %v4019 = vpop.f32.mrb[0].mxu0
          %v4020 = vadd.f32 %v3979, %v4019
          %v4021 = vpop.f32.mrb[0].mxu0
          %v4022 = vadd.f32 %v3981, %v4021
          %v4023 = vpop.f32.mrb[0].mxu0
          %v4024 = vpop.f32.mrb[0].mxu0
          %4025 = vdwg.mxu0
          %4026 = vmatprep.subr.bf16.mxu0 %v3332
          %4027 = vmatpush1.bf16.msra.mxu0 %v3331
          %4028 = vmatprep.subr.bf16.mxu0 %v3336
          %4029 = vmatpush1.bf16.msra.mxu0 %v3335
          %4030 = vmatprep.subr.bf16.mxu0 %v3340
          %4031 = vmatpush1.bf16.msra.mxu0 %v3339
          %4032 = vmatprep.subr.bf16.mxu0 %v3344
          %4033 = vmatpush1.bf16.msra.mxu0 %v3343
          %4034 = vmatprep.subr.bf16.mxu0 %v3348
          %4035 = vmatpush1.bf16.msra.mxu0 %v3347
          %4036 = vmatprep.subr.bf16.mxu0 %v3352
          %4037 = vmatpush1.bf16.msra.mxu0 %v3351
          %4038 = vmatprep.subr.bf16.mxu0 %v3356
          %4039 = vmatpush1.bf16.msra.mxu0 %v3355
          %4040 = vmatprep.subr.bf16.mxu0 %v3360
          %4041 = vmatpush1.bf16.msra.mxu0 %v3359
          %4042 = vmatprep.subr.bf16.mxu0 %v3364
          %4043 = vmatpush1.bf16.msra.mxu0 %v3363
          %4044 = vmatprep.subr.bf16.mxu0 %v3368
          %4045 = vmatpush1.bf16.msra.mxu0 %v3367
          %4046 = vmatprep.subr.bf16.mxu0 %v3372
          %4047 = vmatpush1.bf16.msra.mxu0 %v3371
          %4048 = vmatprep.subr.bf16.mxu0 %v3376
          %4049 = vmatpush1.bf16.msra.mxu0 %v3375
          %4050 = vmatprep.subr.bf16.mxu0 %v3380
          %4051 = vmatpush1.bf16.msra.mxu0 %v3379
          %4052 = vmatprep.subr.bf16.mxu0 %v3384
          %4053 = vmatpush1.bf16.msra.mxu0 %v3383
          %4054 = vmatprep.subr.bf16.mxu0 %v3388
          %4055 = vmatpush1.bf16.msra.mxu0 %v3387
          %4056 = vmatprep.subr.bf16.mxu0 %v3392
          %4057 = vmatpush1.bf16.msra.mxu0 %v3391
          %4058 = vmatprep.mubr.bf16.mxu0 %v2297
          %4059 = vmatmul.mubr.bf16.gmra.mrb[0].mxu0 %v2296
          %v4060 = vpop.f32.mrb[0].mxu0
          %v4061 = vadd.f32 %v3853, %v4060
          %v4062 = vpop.f32.mrb[0].mxu0
          %v4063 = vadd.f32 %v3857, %v4062
          %v4064 = vpop.f32.mrb[0].mxu0
          %v4065 = vpop.f32.mrb[0].mxu0
          %4066 = vdwg.mxu0
          %4067 = vmatprep.subr.bf16.mxu0 %v3396
          %4068 = vmatpush1.bf16.msra.mxu0 %v3395
          %4069 = vmatprep.subr.bf16.mxu0 %v3400
          %4070 = vmatpush1.bf16.msra.mxu0 %v3399
          %4071 = vmatprep.subr.bf16.mxu0 %v3404
          %4072 = vmatpush1.bf16.msra.mxu0 %v3403
          %4073 = vmatprep.subr.bf16.mxu0 %v3408
          %4074 = vmatpush1.bf16.msra.mxu0 %v3407
          %4075 = vmatprep.subr.bf16.mxu0 %v3412
          %4076 = vmatpush1.bf16.msra.mxu0 %v3411
          %4077 = vmatprep.subr.bf16.mxu0 %v3416
          %4078 = vmatpush1.bf16.msra.mxu0 %v3415
          %4079 = vmatprep.subr.bf16.mxu0 %v3420
          %4080 = vmatpush1.bf16.msra.mxu0 %v3419
          %4081 = vmatprep.subr.bf16.mxu0 %v3424
          %4082 = vmatpush1.bf16.msra.mxu0 %v3423
          %4083 = vmatprep.subr.bf16.mxu0 %v3428
          %4084 = vmatpush1.bf16.msra.mxu0 %v3427
          %4085 = vmatprep.subr.bf16.mxu0 %v3432
          %4086 = vmatpush1.bf16.msra.mxu0 %v3431
          %4087 = vmatprep.subr.bf16.mxu0 %v3436
          %4088 = vmatpush1.bf16.msra.mxu0 %v3435
          %4089 = vmatprep.subr.bf16.mxu0 %v3440
          %4090 = vmatpush1.bf16.msra.mxu0 %v3439
          %4091 = vmatprep.subr.bf16.mxu0 %v3444
          %4092 = vmatpush1.bf16.msra.mxu0 %v3443
          %4093 = vmatprep.subr.bf16.mxu0 %v3448
          %4094 = vmatpush1.bf16.msra.mxu0 %v3447
          %4095 = vmatprep.subr.bf16.mxu0 %v3452
          %4096 = vmatpush1.bf16.msra.mxu0 %v3451
          %4097 = vmatprep.subr.bf16.mxu0 %v3456
          %4098 = vmatpush1.bf16.msra.mxu0 %v3455
          %4099 = vmatprep.mubr.bf16.mxu0 %v2299
          %4100 = vmatmul.mubr.bf16.gmra.mrb[0].mxu0 %v2298
          %v4101 = vpop.f32.mrb[0].mxu0
          %v4102 = vadd.f32 %v4061, %v4101
          %v4103 = vpop.f32.mrb[0].mxu0
          %v4104 = vadd.f32 %v4063, %v4103
          %v4105 = vpop.f32.mrb[0].mxu0
          %v4106 = vpop.f32.mrb[0].mxu0
          %4107 = vdwg.mxu0
          %4108 = vmatprep.subr.bf16.mxu0 %v3460
          %4109 = vmatpush1.bf16.msra.mxu0 %v3459
          %4110 = vmatprep.subr.bf16.mxu0 %v3464
          %4111 = vmatpush1.bf16.msra.mxu0 %v3463
          %4112 = vmatprep.subr.bf16.mxu0 %v3468
          %4113 = vmatpush1.bf16.msra.mxu0 %v3467
          %4114 = vmatprep.subr.bf16.mxu0 %v3472
          %4115 = vmatpush1.bf16.msra.mxu0 %v3471
          %4116 = vmatprep.subr.bf16.mxu0 %v3476
          %4117 = vmatpush1.bf16.msra.mxu0 %v3475
          %4118 = vmatprep.subr.bf16.mxu0 %v3480
          %4119 = vmatpush1.bf16.msra.mxu0 %v3479
          %4120 = vmatprep.subr.bf16.mxu0 %v3484
          %4121 = vmatpush1.bf16.msra.mxu0 %v3483
          %4122 = vmatprep.subr.bf16.mxu0 %v3488
          %4123 = vmatpush1.bf16.msra.mxu0 %v3487
          %4124 = vmatprep.subr.bf16.mxu0 %v3492
          %4125 = vmatpush1.bf16.msra.mxu0 %v3491
          %4126 = vmatprep.subr.bf16.mxu0 %v3496
          %4127 = vmatpush1.bf16.msra.mxu0 %v3495
          %4128 = vmatprep.subr.bf16.mxu0 %v3500
          %4129 = vmatpush1.bf16.msra.mxu0 %v3499
          %4130 = vmatprep.subr.bf16.mxu0 %v3504
          %4131 = vmatpush1.bf16.msra.mxu0 %v3503
          %4132 = vmatprep.subr.bf16.mxu0 %v3508
          %4133 = vmatpush1.bf16.msra.mxu0 %v3507
          %4134 = vmatprep.subr.bf16.mxu0 %v3512
          %4135 = vmatpush1.bf16.msra.mxu0 %v3511
          %4136 = vmatprep.subr.bf16.mxu0 %v3516
          %4137 = vmatpush1.bf16.msra.mxu0 %v3515
          %4138 = vmatprep.subr.bf16.mxu0 %v3520
          %4139 = vmatpush1.bf16.msra.mxu0 %v3519
          %4140 = vmatprep.mubr.bf16.mxu0 %v2301
          %4141 = vmatmul.mubr.bf16.gmra.mrb[0].mxu0 %v2300
          %v4142 = vpop.f32.mrb[0].mxu0
          %v4143 = vadd.f32 %v4102, %v4142
          %v4144 = vpop.f32.mrb[0].mxu0
          %v4145 = vadd.f32 %v4104, %v4144
          %v4146 = vpop.f32.mrb[0].mxu0
          %v4147 = vpop.f32.mrb[0].mxu0
          %4148 = vdwg.mxu0
          %4149 = vmatprep.subr.bf16.mxu0 %v3524
          %4150 = vmatpush1.bf16.msra.mxu0 %v3523
          %4151 = vmatprep.subr.bf16.mxu0 %v3528
          %4152 = vmatpush1.bf16.msra.mxu0 %v3527
          %4153 = vmatprep.subr.bf16.mxu0 %v3532
          %4154 = vmatpush1.bf16.msra.mxu0 %v3531
          %4155 = vmatprep.subr.bf16.mxu0 %v3536
          %4156 = vmatpush1.bf16.msra.mxu0 %v3535
          %4157 = vmatprep.subr.bf16.mxu0 %v3540
          %4158 = vmatpush1.bf16.msra.mxu0 %v3539
          %4159 = vmatprep.subr.bf16.mxu0 %v3544
          %4160 = vmatpush1.bf16.msra.mxu0 %v3543
          %4161 = vmatprep.subr.bf16.mxu0 %v3548
          %4162 = vmatpush1.bf16.msra.mxu0 %v3547
          %4163 = vmatprep.subr.bf16.mxu0 %v3552
          %4164 = vmatpush1.bf16.msra.mxu0 %v3551
          %4165 = vmatprep.subr.bf16.mxu0 %v3556
          %4166 = vmatpush1.bf16.msra.mxu0 %v3555
          %4167 = vmatprep.subr.bf16.mxu0 %v3560
          %4168 = vmatpush1.bf16.msra.mxu0 %v3559
          %4169 = vmatprep.subr.bf16.mxu0 %v3564
          %4170 = vmatpush1.bf16.msra.mxu0 %v3563
          %4171 = vmatprep.subr.bf16.mxu0 %v3568
          %4172 = vmatpush1.bf16.msra.mxu0 %v3567
          %4173 = vmatprep.subr.bf16.mxu0 %v3572
          %4174 = vmatpush1.bf16.msra.mxu0 %v3571
          %4175 = vmatprep.subr.bf16.mxu0 %v3576
          %4176 = vmatpush1.bf16.msra.mxu0 %v3575
          %4177 = vmatprep.subr.bf16.mxu0 %v3580
          %4178 = vmatpush1.bf16.msra.mxu0 %v3579
          %4179 = vmatprep.subr.bf16.mxu0 %v3584
          %4180 = vmatpush1.bf16.msra.mxu0 %v3583
          %4181 = vmatprep.mubr.bf16.mxu0 %v2303
          %4182 = vmatmul.mubr.bf16.gmra.mrb[0].mxu0 %v2302
          %v4183 = vpop.f32.mrb[0].mxu0
          %v4184 = vadd.f32 %v4143, %v4183
          %v4185 = vpop.f32.mrb[0].mxu0
          %v4186 = vadd.f32 %v4145, %v4185
          %v4187 = vpop.f32.mrb[0].mxu0
          %v4188 = vpop.f32.mrb[0].mxu0
          %4189 = vdwg.mxu0
          %v4190 = vmax.f32 %v4020, 0.0
          %v4191 = vmax.f32 %v4022, 0.0
          %v4192 = vmax.f32 %v4184, 0.0
          %v4193 = vmax.f32 %v4186, 0.0
          %v4194 = vpack.c.bf16 %v4190, %v4190
          %v4195 = vpack.c.bf16 %v4191, %v4191
          %v4196 = vpack.c.bf16 %v4192, %v4192
          %v4197 = vpack.c.bf16 %v4193, %v4193
          %v4198 = vld [vmem:[#allocation8] sm:$0xff]
          %v4199 = vld [vmem:[#allocation8 + $0x8] sm:$0xff]
          %v4200 = vld [vmem:[#allocation8 + $0x10] sm:$0xff]
          %v4201 = vld [vmem:[#allocation8 + $0x18] sm:$0xff]
          %v4202 = vld [vmem:[#allocation8 + $0x20] sm:$0xff]
          %v4203 = vld [vmem:[#allocation8 + $0x28] sm:$0xff]
          %v4204 = vld [vmem:[#allocation8 + $0x30] sm:$0xff]
          %v4205 = vld [vmem:[#allocation8 + $0x38] sm:$0xff]
          %v4206 = vld [vmem:[#allocation8 + $0x40] sm:$0xff]
          %v4207 = vld [vmem:[#allocation8 + $0x48] sm:$0xff]
          %v4208 = vld [vmem:[#allocation8 + $0x50] sm:$0xff]
          %v4209 = vld [vmem:[#allocation8 + $0x58] sm:$0xff]
          %v4210 = vld [vmem:[#allocation8 + $0x60] sm:$0xff]
          %v4211 = vld [vmem:[#allocation8 + $0x68] sm:$0xff]
          %v4212 = vld [vmem:[#allocation8 + $0x70] sm:$0xff]
          %v4213 = vld [vmem:[#allocation8 + $0x78] sm:$0xff]
          %v4214 = vld [vmem:[#allocation8 + $0x80] sm:$0xff]
          %v4215 = vld [vmem:[#allocation8 + $0x88] sm:$0xff]
          %v4216 = vld [vmem:[#allocation8 + $0x90] sm:$0xff]
          %v4217 = vld [vmem:[#allocation8 + $0x98] sm:$0xff]
          %v4218 = vld [vmem:[#allocation8 + $0xa0] sm:$0xff]
          %v4219 = vld [vmem:[#allocation8 + $0xa8] sm:$0xff]
          %v4220 = vld [vmem:[#allocation8 + $0xb0] sm:$0xff]
          %v4221 = vld [vmem:[#allocation8 + $0xb8] sm:$0xff]
          %v4222 = vld [vmem:[#allocation8 + $0xc0] sm:$0xff]
          %v4223 = vld [vmem:[#allocation8 + $0xc8] sm:$0xff]
          %v4224 = vld [vmem:[#allocation8 + $0xd0] sm:$0xff]
          %v4225 = vld [vmem:[#allocation8 + $0xd8] sm:$0xff]
          %v4226 = vld [vmem:[#allocation8 + $0xe0] sm:$0xff]
          %v4227 = vld [vmem:[#allocation8 + $0xe8] sm:$0xff]
          %v4228 = vld [vmem:[#allocation8 + $0xf0] sm:$0xff]
          %v4229 = vld [vmem:[#allocation8 + $0xf8] sm:$0xff]
          %v4230 = vld [vmem:[#allocation8 + $0x100] sm:$0xff]
          %v4231 = vld [vmem:[#allocation8 + $0x108] sm:$0xff]
          %v4232 = vld [vmem:[#allocation8 + $0x110] sm:$0xff]
          %v4233 = vld [vmem:[#allocation8 + $0x118] sm:$0xff]
          %v4234 = vld [vmem:[#allocation8 + $0x120] sm:$0xff]
          %v4235 = vld [vmem:[#allocation8 + $0x128] sm:$0xff]
          %v4236 = vld [vmem:[#allocation8 + $0x130] sm:$0xff]
          %v4237 = vld [vmem:[#allocation8 + $0x138] sm:$0xff]
          %v4238 = vld [vmem:[#allocation8 + $0x140] sm:$0xff]
          %v4239 = vld [vmem:[#allocation8 + $0x148] sm:$0xff]
          %v4240 = vld [vmem:[#allocation8 + $0x150] sm:$0xff]
          %v4241 = vld [vmem:[#allocation8 + $0x158] sm:$0xff]
          %v4242 = vld [vmem:[#allocation8 + $0x160] sm:$0xff]
          %v4243 = vld [vmem:[#allocation8 + $0x168] sm:$0xff]
          %v4244 = vld [vmem:[#allocation8 + $0x170] sm:$0xff]
          %v4245 = vld [vmem:[#allocation8 + $0x178] sm:$0xff]
          %v4246 = vld [vmem:[#allocation8 + $0x180] sm:$0xff]
          %v4247 = vld [vmem:[#allocation8 + $0x188] sm:$0xff]
          %v4248 = vld [vmem:[#allocation8 + $0x190] sm:$0xff]
          %v4249 = vld [vmem:[#allocation8 + $0x198] sm:$0xff]
          %v4250 = vld [vmem:[#allocation8 + $0x1a0] sm:$0xff]
          %v4251 = vld [vmem:[#allocation8 + $0x1a8] sm:$0xff]
          %v4252 = vld [vmem:[#allocation8 + $0x1b0] sm:$0xff]
          %v4253 = vld [vmem:[#allocation8 + $0x1b8] sm:$0xff]
          %v4254 = vld [vmem:[#allocation8 + $0x1c0] sm:$0xff]
          %v4255 = vld [vmem:[#allocation8 + $0x1c8] sm:$0xff]
          %v4256 = vld [vmem:[#allocation8 + $0x1d0] sm:$0xff]
          %v4257 = vld [vmem:[#allocation8 + $0x1d8] sm:$0xff]
          %v4258 = vld [vmem:[#allocation8 + $0x1e0] sm:$0xff]
          %v4259 = vld [vmem:[#allocation8 + $0x1e8] sm:$0xff]
          %v4260 = vld [vmem:[#allocation8 + $0x1f0] sm:$0xff]
          %v4261 = vld [vmem:[#allocation8 + $0x1f8] sm:$0xff]
          %v4262 = vld [vmem:[%s10] sm:$0x3]
          %v4327 = vunpack.c.l.b16 %v4198
          %v4328 = vunpack.c.h.b16 %v4198
          %v4329 = vunpack.c.l.b16 %v4199
          %v4330 = vunpack.c.h.b16 %v4199
          %v4331 = vunpack.c.l.b16 %v4200
          %v4332 = vunpack.c.h.b16 %v4200
          %v4333 = vunpack.c.l.b16 %v4201
          %v4334 = vunpack.c.h.b16 %v4201
          %v4335 = vunpack.c.l.b16 %v4202
          %v4336 = vunpack.c.h.b16 %v4202
          %v4337 = vunpack.c.l.b16 %v4203
          %v4338 = vunpack.c.h.b16 %v4203
          %v4339 = vunpack.c.l.b16 %v4204
          %v4340 = vunpack.c.h.b16 %v4204
          %v4341 = vunpack.c.l.b16 %v4205
          %v4342 = vunpack.c.h.b16 %v4205
          %v4343 = vunpack.c.l.b16 %v4206
          %v4344 = vunpack.c.h.b16 %v4206
          %v4345 = vunpack.c.l.b16 %v4207
          %v4346 = vunpack.c.h.b16 %v4207
          %v4347 = vunpack.c.l.b16 %v4208
          %v4348 = vunpack.c.h.b16 %v4208
          %v4349 = vunpack.c.l.b16 %v4209
          %v4350 = vunpack.c.h.b16 %v4209
          %v4351 = vunpack.c.l.b16 %v4210
          %v4352 = vunpack.c.h.b16 %v4210
          %v4353 = vunpack.c.l.b16 %v4211
          %v4354 = vunpack.c.h.b16 %v4211
          %v4355 = vunpack.c.l.b16 %v4212
          %v4356 = vunpack.c.h.b16 %v4212
          %v4357 = vunpack.c.l.b16 %v4213
          %v4358 = vunpack.c.h.b16 %v4213
          %v4359 = vunpack.c.l.b16 %v4214
          %v4360 = vunpack.c.h.b16 %v4214
          %v4361 = vunpack.c.l.b16 %v4215
          %v4362 = vunpack.c.h.b16 %v4215
          %v4363 = vunpack.c.l.b16 %v4216
          %v4364 = vunpack.c.h.b16 %v4216
          %v4365 = vunpack.c.l.b16 %v4217
          %v4366 = vunpack.c.h.b16 %v4217
          %v4367 = vunpack.c.l.b16 %v4218
          %v4368 = vunpack.c.h.b16 %v4218
          %v4369 = vunpack.c.l.b16 %v4219
          %v4370 = vunpack.c.h.b16 %v4219
          %v4371 = vunpack.c.l.b16 %v4220
          %v4372 = vunpack.c.h.b16 %v4220
          %v4373 = vunpack.c.l.b16 %v4221
          %v4374 = vunpack.c.h.b16 %v4221
          %v4375 = vunpack.c.l.b16 %v4222
          %v4376 = vunpack.c.h.b16 %v4222
          %v4377 = vunpack.c.l.b16 %v4223
          %v4378 = vunpack.c.h.b16 %v4223
          %v4379 = vunpack.c.l.b16 %v4224
          %v4380 = vunpack.c.h.b16 %v4224
          %v4381 = vunpack.c.l.b16 %v4225
          %v4382 = vunpack.c.h.b16 %v4225
          %v4383 = vunpack.c.l.b16 %v4226
          %v4384 = vunpack.c.h.b16 %v4226
          %v4385 = vunpack.c.l.b16 %v4227
          %v4386 = vunpack.c.h.b16 %v4227
          %v4387 = vunpack.c.l.b16 %v4228
          %v4388 = vunpack.c.h.b16 %v4228
          %v4389 = vunpack.c.l.b16 %v4229
          %v4390 = vunpack.c.h.b16 %v4229
          %v4391 = vunpack.c.l.b16 %v4230
          %v4392 = vunpack.c.h.b16 %v4230
          %v4393 = vunpack.c.l.b16 %v4231
          %v4394 = vunpack.c.h.b16 %v4231
          %v4395 = vunpack.c.l.b16 %v4232
          %v4396 = vunpack.c.h.b16 %v4232
          %v4397 = vunpack.c.l.b16 %v4233
          %v4398 = vunpack.c.h.b16 %v4233
          %v4399 = vunpack.c.l.b16 %v4234
          %v4400 = vunpack.c.h.b16 %v4234
          %v4401 = vunpack.c.l.b16 %v4235
          %v4402 = vunpack.c.h.b16 %v4235
          %v4403 = vunpack.c.l.b16 %v4236
          %v4404 = vunpack.c.h.b16 %v4236
          %v4405 = vunpack.c.l.b16 %v4237
          %v4406 = vunpack.c.h.b16 %v4237
          %v4407 = vunpack.c.l.b16 %v4238
          %v4408 = vunpack.c.h.b16 %v4238
          %v4409 = vunpack.c.l.b16 %v4239
          %v4410 = vunpack.c.h.b16 %v4239
          %v4411 = vunpack.c.l.b16 %v4240
          %v4412 = vunpack.c.h.b16 %v4240
          %v4413 = vunpack.c.l.b16 %v4241
          %v4414 = vunpack.c.h.b16 %v4241
          %v4415 = vunpack.c.l.b16 %v4242
          %v4416 = vunpack.c.h.b16 %v4242
          %v4417 = vunpack.c.l.b16 %v4243
          %v4418 = vunpack.c.h.b16 %v4243
          %v4419 = vunpack.c.l.b16 %v4244
          %v4420 = vunpack.c.h.b16 %v4244
          %v4421 = vunpack.c.l.b16 %v4245
          %v4422 = vunpack.c.h.b16 %v4245
          %v4423 = vunpack.c.l.b16 %v4246
          %v4424 = vunpack.c.h.b16 %v4246
          %v4425 = vunpack.c.l.b16 %v4247
          %v4426 = vunpack.c.h.b16 %v4247
          %v4427 = vunpack.c.l.b16 %v4248
          %v4428 = vunpack.c.h.b16 %v4248
          %v4429 = vunpack.c.l.b16 %v4249
          %v4430 = vunpack.c.h.b16 %v4249
          %v4431 = vunpack.c.l.b16 %v4250
          %v4432 = vunpack.c.h.b16 %v4250
          %v4433 = vunpack.c.l.b16 %v4251
          %v4434 = vunpack.c.h.b16 %v4251
          %v4435 = vunpack.c.l.b16 %v4252
          %v4436 = vunpack.c.h.b16 %v4252
          %v4437 = vunpack.c.l.b16 %v4253
          %v4438 = vunpack.c.h.b16 %v4253
          %v4439 = vunpack.c.l.b16 %v4254
          %v4440 = vunpack.c.h.b16 %v4254
          %v4441 = vunpack.c.l.b16 %v4255
          %v4442 = vunpack.c.h.b16 %v4255
          %v4443 = vunpack.c.l.b16 %v4256
          %v4444 = vunpack.c.h.b16 %v4256
          %v4445 = vunpack.c.l.b16 %v4257
          %v4446 = vunpack.c.h.b16 %v4257
          %v4447 = vunpack.c.l.b16 %v4258
          %v4448 = vunpack.c.h.b16 %v4258
          %v4449 = vunpack.c.l.b16 %v4259
          %v4450 = vunpack.c.h.b16 %v4259
          %v4451 = vunpack.c.l.b16 %v4260
          %v4452 = vunpack.c.h.b16 %v4260
          %v4453 = vunpack.c.l.b16 %v4261
          %v4454 = vunpack.c.h.b16 %v4261
          %v4455 = vpack.c.b16 %v4329, %v4327
          %v4456 = vpack.c.b16 %v4330, %v4328
          %v4457 = vpack.c.b16 %v4333, %v4331
          %v4458 = vpack.c.b16 %v4334, %v4332
          %v4459 = vpack.c.b16 %v4337, %v4335
          %v4460 = vpack.c.b16 %v4338, %v4336
          %v4461 = vpack.c.b16 %v4341, %v4339
          %v4462 = vpack.c.b16 %v4342, %v4340
          %v4463 = vpack.c.b16 %v4345, %v4343
          %v4464 = vpack.c.b16 %v4346, %v4344
          %v4465 = vpack.c.b16 %v4349, %v4347
          %v4466 = vpack.c.b16 %v4350, %v4348
          %v4467 = vpack.c.b16 %v4353, %v4351
          %v4468 = vpack.c.b16 %v4354, %v4352
          %v4469 = vpack.c.b16 %v4357, %v4355
          %v4470 = vpack.c.b16 %v4358, %v4356
          %v4471 = vpack.c.b16 %v4361, %v4359
          %v4472 = vpack.c.b16 %v4362, %v4360
          %v4473 = vpack.c.b16 %v4365, %v4363
          %v4474 = vpack.c.b16 %v4366, %v4364
          %v4475 = vpack.c.b16 %v4369, %v4367
          %v4476 = vpack.c.b16 %v4370, %v4368
          %v4477 = vpack.c.b16 %v4373, %v4371
          %v4478 = vpack.c.b16 %v4374, %v4372
          %v4479 = vpack.c.b16 %v4377, %v4375
          %v4480 = vpack.c.b16 %v4378, %v4376
          %v4481 = vpack.c.b16 %v4381, %v4379
          %v4482 = vpack.c.b16 %v4382, %v4380
          %v4483 = vpack.c.b16 %v4385, %v4383
          %v4484 = vpack.c.b16 %v4386, %v4384
          %v4485 = vpack.c.b16 %v4389, %v4387
          %v4486 = vpack.c.b16 %v4390, %v4388
          %v4487 = vpack.c.b16 %v4393, %v4391
          %v4488 = vpack.c.b16 %v4394, %v4392
          %v4489 = vpack.c.b16 %v4397, %v4395
          %v4490 = vpack.c.b16 %v4398, %v4396
          %v4491 = vpack.c.b16 %v4401, %v4399
          %v4492 = vpack.c.b16 %v4402, %v4400
          %v4493 = vpack.c.b16 %v4405, %v4403
          %v4494 = vpack.c.b16 %v4406, %v4404
          %v4495 = vpack.c.b16 %v4409, %v4407
          %v4496 = vpack.c.b16 %v4410, %v4408
          %v4497 = vpack.c.b16 %v4413, %v4411
          %v4498 = vpack.c.b16 %v4414, %v4412
          %v4499 = vpack.c.b16 %v4417, %v4415
          %v4500 = vpack.c.b16 %v4418, %v4416
          %v4501 = vpack.c.b16 %v4421, %v4419
          %v4502 = vpack.c.b16 %v4422, %v4420
          %v4503 = vpack.c.b16 %v4425, %v4423
          %v4504 = vpack.c.b16 %v4426, %v4424
          %v4505 = vpack.c.b16 %v4429, %v4427
          %v4506 = vpack.c.b16 %v4430, %v4428
          %v4507 = vpack.c.b16 %v4433, %v4431
          %v4508 = vpack.c.b16 %v4434, %v4432
          %v4509 = vpack.c.b16 %v4437, %v4435
          %v4510 = vpack.c.b16 %v4438, %v4436
          %v4511 = vpack.c.b16 %v4441, %v4439
          %v4512 = vpack.c.b16 %v4442, %v4440
          %v4513 = vpack.c.b16 %v4445, %v4443
          %v4514 = vpack.c.b16 %v4446, %v4444
          %v4515 = vpack.c.b16 %v4449, %v4447
          %v4516 = vpack.c.b16 %v4450, %v4448
          %v4517 = vpack.c.b16 %v4453, %v4451
          %v4518 = vpack.c.b16 %v4454, %v4452
          %v4584 = vlaneseq
          %v4585 = vshrl.u32 %v4584, 7
          %v4586 = vsub.s32 0, %v4585
          %v4587 = vrot.slane %v4262, %v4586
          %v4588 = vlaneseq
          %v4589 = vshrl.u32 %v4588, 7
          %v4590 = vsub.s32 1, %v4589
          %v4591 = vrot.slane %v4262, %v4590
          %4594 = vmatprep.subr.bf16.mxu0 %v4456
          %4595 = vmatpush1.bf16.msra.mxu0 %v4455
          %4596 = vmatprep.subr.bf16.mxu0 %v4458
          %4597 = vmatpush1.bf16.msra.mxu0 %v4457
          %4598 = vmatprep.subr.bf16.mxu0 %v4460
          %4599 = vmatpush1.bf16.msra.mxu0 %v4459
          %4600 = vmatprep.subr.bf16.mxu0 %v4462
          %4601 = vmatpush1.bf16.msra.mxu0 %v4461
          %4602 = vmatprep.subr.bf16.mxu0 %v4464
          %4603 = vmatpush1.bf16.msra.mxu0 %v4463
          %4604 = vmatprep.subr.bf16.mxu0 %v4466
          %4605 = vmatpush1.bf16.msra.mxu0 %v4465
          %4606 = vmatprep.subr.bf16.mxu0 %v4468
          %4607 = vmatpush1.bf16.msra.mxu0 %v4467
          %4608 = vmatprep.subr.bf16.mxu0 %v4470
          %4609 = vmatpush1.bf16.msra.mxu0 %v4469
          %4610 = vmatprep.subr.bf16.mxu0 %v4472
          %4611 = vmatpush1.bf16.msra.mxu0 %v4471
          %4612 = vmatprep.subr.bf16.mxu0 %v4474
          %4613 = vmatpush1.bf16.msra.mxu0 %v4473
          %4614 = vmatprep.subr.bf16.mxu0 %v4476
          %4615 = vmatpush1.bf16.msra.mxu0 %v4475
          %4616 = vmatprep.subr.bf16.mxu0 %v4478
          %4617 = vmatpush1.bf16.msra.mxu0 %v4477
          %4618 = vmatprep.subr.bf16.mxu0 %v4480
          %4619 = vmatpush1.bf16.msra.mxu0 %v4479
          %4620 = vmatprep.subr.bf16.mxu0 %v4482
          %4621 = vmatpush1.bf16.msra.mxu0 %v4481
          %4622 = vmatprep.subr.bf16.mxu0 %v4484
          %4623 = vmatpush1.bf16.msra.mxu0 %v4483
          %4624 = vmatprep.subr.bf16.mxu0 %v4486
          %4625 = vmatpush1.bf16.msra.mxu0 %v4485
          %4626 = vmatprep.mubr.bf16.mxu0 %v4195
          %4627 = vmatmul.mubr.bf16.gmra.mrb[0].mxu0 %v4194
          %v4628 = vpop.f32.mrb[0].mxu0
          %v4629 = vadd.f32 %v4587, %v4628
          %v4630 = vpop.f32.mrb[0].mxu0
          %v4631 = vadd.f32 %v4591, %v4630
          %v4632 = vpop.f32.mrb[0].mxu0
          %v4633 = vpop.f32.mrb[0].mxu0
          %4634 = vdwg.mxu0
          %4635 = vmatprep.subr.bf16.mxu0 %v4488
          %4636 = vmatpush1.bf16.msra.mxu0 %v4487
          %4637 = vmatprep.subr.bf16.mxu0 %v4490
          %4638 = vmatpush1.bf16.msra.mxu0 %v4489
          %4639 = vmatprep.subr.bf16.mxu0 %v4492
          %4640 = vmatpush1.bf16.msra.mxu0 %v4491
          %4641 = vmatprep.subr.bf16.mxu0 %v4494
          %4642 = vmatpush1.bf16.msra.mxu0 %v4493
          %4643 = vmatprep.subr.bf16.mxu0 %v4496
          %4644 = vmatpush1.bf16.msra.mxu0 %v4495
          %4645 = vmatprep.subr.bf16.mxu0 %v4498
          %4646 = vmatpush1.bf16.msra.mxu0 %v4497
          %4647 = vmatprep.subr.bf16.mxu0 %v4500
          %4648 = vmatpush1.bf16.msra.mxu0 %v4499
          %4649 = vmatprep.subr.bf16.mxu0 %v4502
          %4650 = vmatpush1.bf16.msra.mxu0 %v4501
          %4651 = vmatprep.subr.bf16.mxu0 %v4504
          %4652 = vmatpush1.bf16.msra.mxu0 %v4503
          %4653 = vmatprep.subr.bf16.mxu0 %v4506
          %4654 = vmatpush1.bf16.msra.mxu0 %v4505
          %4655 = vmatprep.subr.bf16.mxu0 %v4508
          %4656 = vmatpush1.bf16.msra.mxu0 %v4507
          %4657 = vmatprep.subr.bf16.mxu0 %v4510
          %4658 = vmatpush1.bf16.msra.mxu0 %v4509
          %4659 = vmatprep.subr.bf16.mxu0 %v4512
          %4660 = vmatpush1.bf16.msra.mxu0 %v4511
          %4661 = vmatprep.subr.bf16.mxu0 %v4514
          %4662 = vmatpush1.bf16.msra.mxu0 %v4513
          %4663 = vmatprep.subr.bf16.mxu0 %v4516
          %4664 = vmatpush1.bf16.msra.mxu0 %v4515
          %4665 = vmatprep.subr.bf16.mxu0 %v4518
          %4666 = vmatpush1.bf16.msra.mxu0 %v4517
          %4667 = vmatprep.mubr.bf16.mxu0 %v4197
          %4668 = vmatmul.mubr.bf16.gmra.mrb[0].mxu0 %v4196
          %v4669 = vpop.f32.mrb[0].mxu0
          %v4670 = vadd.f32 %v4629, %v4669
          %v4671 = vpop.f32.mrb[0].mxu0
          %v4672 = vadd.f32 %v4631, %v4671
          %v4673 = vpop.f32.mrb[0].mxu0
          %v4674 = vpop.f32.mrb[0].mxu0
          %4675 = vdwg.mxu0
          %v4676 = vmax.f32 %v4670, 0.0
          %v4677 = vmax.f32 %v4672, 0.0
          %v4678 = vpack.c.bf16 %v4676, %v4676
          %v4679 = vpack.c.bf16 %v4677, %v4677
          %v4680 = vld [vmem:[%s11] sm:$0xff]
          %v4681 = vld [vmem:[%s11 + $0x8] sm:$0xff]
          %v4682 = vld [vmem:[%s11 + $0x10] sm:$0xff]
          %v4683 = vld [vmem:[%s11 + $0x18] sm:$0xff]
          %v4684 = vld [vmem:[%s11 + $0x20] sm:$0xff]
          %v4685 = vld [vmem:[%s11 + $0x28] sm:$0xff]
          %v4686 = vld [vmem:[%s11 + $0x30] sm:$0xff]
          %v4687 = vld [vmem:[%s11 + $0x38] sm:$0xff]
          %v4688 = vld [vmem:[%s11 + $0x40] sm:$0xff]
          %v4689 = vld [vmem:[%s11 + $0x48] sm:$0xff]
          %v4690 = vld [vmem:[%s11 + $0x50] sm:$0xff]
          %v4691 = vld [vmem:[%s11 + $0x58] sm:$0xff]
          %v4692 = vld [vmem:[%s11 + $0x60] sm:$0xff]
          %v4693 = vld [vmem:[%s11 + $0x68] sm:$0xff]
          %v4694 = vld [vmem:[%s11 + $0x70] sm:$0xff]
          %v4695 = vld [vmem:[%s11 + $0x78] sm:$0xff]
          %v4696 = vld [vmem:[%s11 + $0x80] sm:$0xff]
          %v4697 = vld [vmem:[%s11 + $0x88] sm:$0xff]
          %v4698 = vld [vmem:[%s11 + $0x90] sm:$0xff]
          %v4699 = vld [vmem:[%s11 + $0x98] sm:$0xff]
          %v4700 = vld [vmem:[%s11 + $0xa0] sm:$0xff]
          %v4701 = vld [vmem:[%s11 + $0xa8] sm:$0xff]
          %v4702 = vld [vmem:[%s11 + $0xb0] sm:$0xff]
          %v4703 = vld [vmem:[%s11 + $0xb8] sm:$0xff]
          %v4704 = vld [vmem:[%s11 + $0xc0] sm:$0xff]
          %v4705 = vld [vmem:[%s11 + $0xc8] sm:$0xff]
          %v4706 = vld [vmem:[%s11 + $0xd0] sm:$0xff]
          %v4707 = vld [vmem:[%s11 + $0xd8] sm:$0xff]
          %v4708 = vld [vmem:[%s11 + $0xe0] sm:$0xff]
          %v4709 = vld [vmem:[%s11 + $0xe8] sm:$0xff]
          %v4710 = vld [vmem:[%s11 + $0xf0] sm:$0xff]
          %v4711 = vld [vmem:[%s11 + $0xf8] sm:$0xff]
          %v4712 = vld [vmem:[%s12] sm:$0x3]
          %v4745 = vunpack.c.l.b16 %v4680
          %v4746 = vunpack.c.h.b16 %v4680
          %v4747 = vunpack.c.l.b16 %v4681
          %v4748 = vunpack.c.h.b16 %v4681
          %v4749 = vunpack.c.l.b16 %v4682
          %v4750 = vunpack.c.h.b16 %v4682
          %v4751 = vunpack.c.l.b16 %v4683
          %v4752 = vunpack.c.h.b16 %v4683
          %v4753 = vunpack.c.l.b16 %v4684
          %v4754 = vunpack.c.h.b16 %v4684
          %v4755 = vunpack.c.l.b16 %v4685
          %v4756 = vunpack.c.h.b16 %v4685
          %v4757 = vunpack.c.l.b16 %v4686
          %v4758 = vunpack.c.h.b16 %v4686
          %v4759 = vunpack.c.l.b16 %v4687
          %v4760 = vunpack.c.h.b16 %v4687
          %v4761 = vunpack.c.l.b16 %v4688
          %v4762 = vunpack.c.h.b16 %v4688
          %v4763 = vunpack.c.l.b16 %v4689
          %v4764 = vunpack.c.h.b16 %v4689
          %v4765 = vunpack.c.l.b16 %v4690
          %v4766 = vunpack.c.h.b16 %v4690
          %v4767 = vunpack.c.l.b16 %v4691
          %v4768 = vunpack.c.h.b16 %v4691
          %v4769 = vunpack.c.l.b16 %v4692
          %v4770 = vunpack.c.h.b16 %v4692
          %v4771 = vunpack.c.l.b16 %v4693
          %v4772 = vunpack.c.h.b16 %v4693
          %v4773 = vunpack.c.l.b16 %v4694
          %v4774 = vunpack.c.h.b16 %v4694
          %v4775 = vunpack.c.l.b16 %v4695
          %v4776 = vunpack.c.h.b16 %v4695
          %v4777 = vunpack.c.l.b16 %v4696
          %v4778 = vunpack.c.h.b16 %v4696
          %v4779 = vunpack.c.l.b16 %v4697
          %v4780 = vunpack.c.h.b16 %v4697
          %v4781 = vunpack.c.l.b16 %v4698
          %v4782 = vunpack.c.h.b16 %v4698
          %v4783 = vunpack.c.l.b16 %v4699
          %v4784 = vunpack.c.h.b16 %v4699
          %v4785 = vunpack.c.l.b16 %v4700
          %v4786 = vunpack.c.h.b16 %v4700
          %v4787 = vunpack.c.l.b16 %v4701
          %v4788 = vunpack.c.h.b16 %v4701
          %v4789 = vunpack.c.l.b16 %v4702
          %v4790 = vunpack.c.h.b16 %v4702
          %v4791 = vunpack.c.l.b16 %v4703
          %v4792 = vunpack.c.h.b16 %v4703
          %v4793 = vunpack.c.l.b16 %v4704
          %v4794 = vunpack.c.h.b16 %v4704
          %v4795 = vunpack.c.l.b16 %v4705
          %v4796 = vunpack.c.h.b16 %v4705
          %v4797 = vunpack.c.l.b16 %v4706
          %v4798 = vunpack.c.h.b16 %v4706
          %v4799 = vunpack.c.l.b16 %v4707
          %v4800 = vunpack.c.h.b16 %v4707
          %v4801 = vunpack.c.l.b16 %v4708
          %v4802 = vunpack.c.h.b16 %v4708
          %v4803 = vunpack.c.l.b16 %v4709
          %v4804 = vunpack.c.h.b16 %v4709
          %v4805 = vunpack.c.l.b16 %v4710
          %v4806 = vunpack.c.h.b16 %v4710
          %v4807 = vunpack.c.l.b16 %v4711
          %v4808 = vunpack.c.h.b16 %v4711
          %v4809 = vpack.c.b16 %v4747, %v4745
          %v4810 = vpack.c.b16 %v4748, %v4746
          %v4811 = vpack.c.b16 %v4751, %v4749
          %v4812 = vpack.c.b16 %v4752, %v4750
          %v4813 = vpack.c.b16 %v4755, %v4753
          %v4814 = vpack.c.b16 %v4756, %v4754
          %v4815 = vpack.c.b16 %v4759, %v4757
          %v4816 = vpack.c.b16 %v4760, %v4758
          %v4817 = vpack.c.b16 %v4763, %v4761
          %v4818 = vpack.c.b16 %v4764, %v4762
          %v4819 = vpack.c.b16 %v4767, %v4765
          %v4820 = vpack.c.b16 %v4768, %v4766
          %v4821 = vpack.c.b16 %v4771, %v4769
          %v4822 = vpack.c.b16 %v4772, %v4770
          %v4823 = vpack.c.b16 %v4775, %v4773
          %v4824 = vpack.c.b16 %v4776, %v4774
          %v4825 = vpack.c.b16 %v4779, %v4777
          %v4826 = vpack.c.b16 %v4780, %v4778
          %v4827 = vpack.c.b16 %v4783, %v4781
          %v4828 = vpack.c.b16 %v4784, %v4782
          %v4829 = vpack.c.b16 %v4787, %v4785
          %v4830 = vpack.c.b16 %v4788, %v4786
          %v4831 = vpack.c.b16 %v4791, %v4789
          %v4832 = vpack.c.b16 %v4792, %v4790
          %v4833 = vpack.c.b16 %v4795, %v4793
          %v4834 = vpack.c.b16 %v4796, %v4794
          %v4835 = vpack.c.b16 %v4799, %v4797
          %v4836 = vpack.c.b16 %v4800, %v4798
          %v4837 = vpack.c.b16 %v4803, %v4801
          %v4838 = vpack.c.b16 %v4804, %v4802
          %v4839 = vpack.c.b16 %v4807, %v4805
          %v4840 = vpack.c.b16 %v4808, %v4806
          %v4874 = vlaneseq
          %v4875 = vshrl.u32 %v4874, 7
          %v4876 = vsub.s32 0, %v4875
          %v4877 = vrot.slane %v4712, %v4876
          %v4878 = vlaneseq
          %v4879 = vshrl.u32 %v4878, 7
          %v4880 = vsub.s32 1, %v4879
          %v4881 = vrot.slane %v4712, %v4880
          %4884 = vmatprep.subr.bf16.mxu0 %v4810
          %4885 = vmatpush1.bf16.msra.mxu0 %v4809
          %4886 = vmatprep.subr.bf16.mxu0 %v4812
          %4887 = vmatpush1.bf16.msra.mxu0 %v4811
          %4888 = vmatprep.subr.bf16.mxu0 %v4814
          %4889 = vmatpush1.bf16.msra.mxu0 %v4813
          %4890 = vmatprep.subr.bf16.mxu0 %v4816
          %4891 = vmatpush1.bf16.msra.mxu0 %v4815
          %4892 = vmatprep.subr.bf16.mxu0 %v4818
          %4893 = vmatpush1.bf16.msra.mxu0 %v4817
          %4894 = vmatprep.subr.bf16.mxu0 %v4820
          %4895 = vmatpush1.bf16.msra.mxu0 %v4819
          %4896 = vmatprep.subr.bf16.mxu0 %v4822
          %4897 = vmatpush1.bf16.msra.mxu0 %v4821
          %4898 = vmatprep.subr.bf16.mxu0 %v4824
          %4899 = vmatpush1.bf16.msra.mxu0 %v4823
          %4900 = vmatprep.subr.bf16.mxu0 %v4826
          %4901 = vmatpush1.bf16.msra.mxu0 %v4825
          %4902 = vmatprep.subr.bf16.mxu0 %v4828
          %4903 = vmatpush1.bf16.msra.mxu0 %v4827
          %4904 = vmatprep.subr.bf16.mxu0 %v4830
          %4905 = vmatpush1.bf16.msra.mxu0 %v4829
          %4906 = vmatprep.subr.bf16.mxu0 %v4832
          %4907 = vmatpush1.bf16.msra.mxu0 %v4831
          %4908 = vmatprep.subr.bf16.mxu0 %v4834
          %4909 = vmatpush1.bf16.msra.mxu0 %v4833
          %4910 = vmatprep.subr.bf16.mxu0 %v4836
          %4911 = vmatpush1.bf16.msra.mxu0 %v4835
          %4912 = vmatprep.subr.bf16.mxu0 %v4838
          %4913 = vmatpush1.bf16.msra.mxu0 %v4837
          %4914 = vmatprep.subr.bf16.mxu0 %v4840
          %4915 = vmatpush1.bf16.msra.mxu0 %v4839
          %4916 = vmatprep.mubr.bf16.mxu0 %v4679
          %4917 = vmatmul.mubr.bf16.gmra.mrb[0].mxu0 %v4678
          %v4918 = vpop.f32.mrb[0].mxu0
          %v4919 = vadd.f32 %v4877, %v4918
          %v4920 = vpop.f32.mrb[0].mxu0
          %v4921 = vadd.f32 %v4881, %v4920
          %v4922 = vpop.f32.mrb[0].mxu0
          %v4923 = vpop.f32.mrb[0].mxu0
          %4924 = vdwg.mxu0
          %v4925 = vlaneseq
          %v4926 = vand.u32 %v4925, 127
          %v4927 = vadd.s32 %v4926, 128
          %vm4928 = vcmp.lt.s32.totalorder %v4926, 0
          %v4929 = vsub.s32 0, %v4926
          %v4930 = vsel %vm4928, %v4929, %v4926
          %v4931 = vmul.u32.u64.compose %v4930, 4042322161
          %v4932 = vextract.low.u32 %v4931
          %v4933 = vextract.high.u32 %v4931
          %v4934 = vshrl.u32 %v4933, 4
          %v4935 = vmul.u32 %v4934, 17
          %v4936 = vsub.s32 %v4930, %v4935
          %v4937 = vsub.s32 0, %v4936
          %v4938 = vsel %vm4928, %v4937, %v4936
          %vm4939 = vcmp.lt.s32.totalorder %v4927, 0
          %v4940 = vsub.s32 0, %v4927
          %v4941 = vsel %vm4939, %v4940, %v4927
          %v4942 = vmul.u32.u64.compose %v4941, 4042322161
          %v4943 = vextract.low.u32 %v4942
          %v4944 = vextract.high.u32 %v4942
          %v4945 = vshrl.u32 %v4944, 4
          %v4946 = vmul.u32 %v4945, 17
          %v4947 = vsub.s32 %v4941, %v4946
          %v4948 = vsub.s32 0, %v4947
          %v4949 = vsel %vm4939, %v4948, %v4947
          %vm4950 = vcmp.ne.s32.totalorder %v4938, 0
          %vm4951 = vcmp.ne.s32.totalorder %v4949, 0
          %vm4952 = vcmp.lt.s32.totalorder %v4938, 0
          %vm4953 = vcmp.lt.s32.totalorder %v4949, 0
          %vm4954 = vmand %vm4952, %vm4950
          %vm4955 = vmand %vm4953, %vm4951
          %v4956 = vadd.s32 %v4938, 17
          %v4957 = vadd.s32 %v4949, 17
          %v4958 = vsel %vm4954, %v4956, %v4938
          %v4959 = vsel %vm4955, %v4957, %v4949
          %vm4960 = vcmp.eq.s32.totalorder %v4958, 0
          %vm4961 = vcmp.eq.s32.totalorder %v4959, 0
          %v4962 = vsel %vm4960, 1.0, 0.0
          %v4963 = vsel %vm4961, 1.0, 0.0
          %v4964 = vadd.f32 %v4919, %v4962
          %v4965 = vadd.f32 %v4921, %v4963
          %v4968 = vcombine.low %v4964, %v4965
          %v4970 = vunpack.c.l.s4 1966171168
          %v4971 = vunpack.c.0.s8 %v4970
          %v4972 = vlaneseq
          %v4973 = vshrl.u32 %v4972, 7
          %v4974 = vsub.s32 %v4971, %v4973
          %v4975 = vrot.slane %v4968, %v4974
          %v4977 = vunpack.c.l.s4 1966171168
          %v4978 = vunpack.c.0.s8 %v4977
          %v4979 = vlaneseq
          %v4980 = vshrl.u32 %v4979, 7
          %v4981 = vsub.s32 %v4978, %v4980
          %v4982 = vrot.slane %v4975, %v4981
          %vm4984 = vcmp.lt.s32.totalorder %v1617, 256
          %vm4985 = vmand %vm1618, %vm4984
          %4986 = vst.msk [vmem:[%s512] sm:$0x3] %vm4985, %v4982
        $region92: #{tpu_custom_call.1} parent=71 // pred_fallthru
          _
        %s4987 = sand.u32 %s329, 1
        %s4988 = scalar_lea.sflag [#allocation5], %s4987
        %s4989 = sand.u32 %s329, 1
        %s4990 = smul.addr %s4989, 2
        %s4991 = scalar_lea.vmem [#allocation9], %s4990
        // Predicated region
        $region93: #{tpu_custom_call.1} parent=71 // pred_check
          %p4992 = pneg %p339
        $region94: #{tpu_custom_call.1} parent=71 // pred_check_branch
          %4994 = sbr.rel (%p4992) target = $region96
        $region95: #{tpu_custom_call.1} parent=71 // pred_region
          %s4996 = ssub.s32 32, 32
          %4997 = vsyncadd %s4988, %s4996
          %s4998 = smul.addr %s33, 2
          %s4999 = smul.addr %s4998, 16
          %s5000 = scalar_lea.hbm %s13, %s4999
          %s5002 = sshll.u32 %s4991, 4
          %s5003 = int_to_ptr.vmem [resolvable:$true] %s5002
          %5005 = dma.vmem_to_hbm [thread:$0]  %s5003, 32, %s5000, %s4988
        $region96: #{tpu_custom_call.1} parent=71 // pred_fallthru
          _
      $region72: #{tpu_custom_call.1} parent=5 // pred_fallthru
        _
      %p5006 = scmp.le.s32.totalorder 2, %s24
      // Predicated region
      $region97: #{tpu_custom_call.1} parent=5 // pred_check
        %p5007 = pneg %p5006
      $region98: #{tpu_custom_call.1} parent=5 // pred_check_branch
        %5009 = sbr.rel (%p5007) target = $region100
      $region99: #{tpu_custom_call.1} parent=5 // pred_region
        %s5010 = ssub.s32 %s24, 2
        // Predicated region
        $region101: #{tpu_custom_call.1} parent=99 // pred_check
          %p5011 = pneg %p345
        $region102: #{tpu_custom_call.1} parent=99 // pred_check_branch
          %5013 = sbr.rel (%p5011) target = $region104
        $region103: #{tpu_custom_call.1} parent=99 // pred_region
          %s5014 = sand.u32 %s330, 1
          %s5015 = scalar_lea.sflag [#allocation5], %s5014
          %s5016 = sand.u32 %s330, 1
          %s5017 = smul.addr %s5016, 2
          %s5018 = scalar_lea.vmem [#allocation9], %s5017
          %5019 = dma.done %s5015, 32
        $region104: #{tpu_custom_call.1} parent=99 // pred_fallthru
          _
      $region100: #{tpu_custom_call.1} parent=5 // pred_fallthru
        _
    $region6: #{tpu_custom_call.1} parent=1 // loop_footer
      %s28 = sadd.s32 1, %s24
    $region7: #{tpu_custom_call.1} parent=1 // loop_footer_branch
      %23 = sbr.rel target = $region3
    $region8: #{tpu_custom_call.1} parent=1 // loop_exit
      _
    %5020 = vsyncpa [#allocation4], 1
    %s5021 = scalar_lea.sflag [#allocation4], 1
    %5022 = vsyncpa %s5021, 1
    %5023 = vsyncpa [#allocation7], 1
    %5024 = vsyncpa [#allocation5], 1
    %s5025 = scalar_lea.sflag [#allocation5], 1
    %5026 = vsyncpa %s5025, 1

</llo_original>
